<compile_context>
chip_gen: v7x
topology: tpu7x:2x2x1
jax: 0.10.0
libtpu: 0.0.40
codegen_flags: <defaults>
</compile_context>

<pallas_src>
import functools
import math

import jax
import jax.numpy as jnp
from jax.experimental import pallas as pl
from jax.experimental.pallas import tpu as pltpu


def _make_s4d_kernel(l_max: int, seq_l: int):
    """Fused (SSM kernel recurrence + causal depthwise conv + D*x skip)."""

    def kernel(dA_ref, dB_ref, c_ref, dskip_ref, xpad_ref, y_ref):
        dA = dA_ref[...]          # (R, N, N)   R = batch * d_model rows
        C = c_ref[...]            # (R, N)
        state = dB_ref[...]       # (R, N)      state_0 = dB
        dskip = dskip_ref[...]    # (R, 1)
        xpad = xpad_ref[...]      # (R, l_max-1+seq_l)  time left-padded w/ 0s

        rows = xpad.shape[0]
        acc = jnp.zeros((rows, seq_l), jnp.float32)

        # kernel[r, s] = C[r] . state_s ;  state_{s+1} = dA[r] @ state_s
        # y[r, t]      = sum_s kernel[r, s] * x[r, t - s]   (+ D*x via tap 0)
        # Runs ONCE (no batch grid).  At these sizes every lag window lives in
        # a single (8,128) lane tile, so each static slice is a cheap lane
        # rotate/select; at real L this loop should become a Toeplitz/im2col
        # MXU matmul and the recurrence a log-depth Krylov doubling.
        for s in range(l_max):
            kcol = jnp.sum(C * state, axis=-1, keepdims=True)        # (R, 1)
            if s == 0:
                kcol = kcol + dskip          # fold the D*x skip into tap 0
            start = l_max - 1 - s            # static slice start
            acc = acc + kcol * xpad[:, start:start + seq_l]
            if s + 1 < l_max:
                state = jnp.sum(dA * state[:, None, :], axis=-1)     # (R, N)

        y_ref[...] = acc                     # single store of the whole slab

    return kernel


def _discretize(params, n):
    """Plain-JAX glue: bilinear discretization (A, B) -> (dA, dB)."""
    # TODO(synk): torch.linalg.solve has no Pallas equivalent; kept in JAX glue.
    A = -jax.vmap(jnp.diag)(jnp.exp(params["L"]))                    # (D, N, N)
    A = A + jnp.einsum("dnk,dkm->dnm", params["P_left"], params["P_right"])
    dt = jnp.exp(params["log_dt"])                                   # (D, 1)
    A = A * dt[..., None]
    B = params["B"] * dt                                             # (D, N)
    eye = jnp.eye(n, dtype=A.dtype)[None]
    dA = jnp.linalg.solve(eye - A / 2, eye + A / 2)                  # (D, N, N)
    dB = jnp.linalg.solve(eye - A / 2, B[..., None])[..., 0]         # (D, N)
    return dA, dB


@functools.partial(jax.jit, static_argnames=("n", "l_max"))
def s4d_forward(x, params, *, n, l_max):
    """x: (batch, L, d_model) -> y: (batch, L, d_model) (PyTorch convention)."""
    batch, seq_l, d_model = x.shape
    assert seq_l <= l_max, "forward requires L <= l_max (matches the FFT path)"
    assert params["C"].shape == (d_model, n)

    dA, dB = _discretize(params, n)
    rows = batch * d_model

    # Layout plumbing (wrapper side): fold batch into the sublane axis and
    # left-pad time by l_max-1 zeros so the causal conv only needs static
    # slices inside the kernel.  Row r = b * d_model + d.
    x_rows = jnp.transpose(x, (0, 2, 1)).reshape(rows, seq_l)
    x_pad = jnp.pad(x_rows, ((0, 0), (l_max - 1, 0)))      # (rows, l_max-1+L)

    # Pre-tile per-channel params over batch (row r uses channel r % d_model).
    dA_r = jnp.tile(dA, (batch, 1, 1))                     # (rows, n, n)
    dB_r = jnp.tile(dB, (batch, 1))                        # (rows, n)
    C_r = jnp.tile(params["C"], (batch, 1))                # (rows, n)
    D_r = jnp.tile(params["D"][:, None], (batch, 1))       # (rows, 1)

    vmem = pl.BlockSpec(memory_space=pltpu.MemorySpace.VMEM)
    y_rows = pl.pallas_call(
        _make_s4d_kernel(l_max, seq_l),
        out_shape=jax.ShapeDtypeStruct((rows, seq_l), jnp.float32),
        in_specs=[vmem, vmem, vmem, vmem, vmem],
        out_specs=vmem,
    )(dA_r, dB_r, C_r, D_r, x_pad)

    return jnp.transpose(y_rows.reshape(batch, d_model, seq_l), (0, 2, 1))


def s4d_reference(x, params, *, n, l_max):
    """Pure-JAX reference mirroring the PyTorch FFT path exactly."""
    dA, dB = _discretize(params, n)
    state = dB[..., None]                                  # (D, N, 1)
    cols = []
    for _ in range(l_max):
        cols.append(jnp.einsum("dn,dn->d", params["C"], state[..., 0]))
        state = dA @ state
    kernel = jnp.stack(cols, axis=-1)                      # (D, l_max)

    xt = jnp.transpose(x, (0, 2, 1))                       # (B, D, L)
    kf = jnp.fft.rfft(kernel, n=2 * l_max)
    xf = jnp.fft.rfft(xt, n=2 * l_max)
    y = jnp.fft.irfft(xf * kf, n=2 * l_max)[..., : x.shape[1]]
    y = y + params["D"][None, :, None] * xt
    return jnp.transpose(y, (0, 2, 1))


def init_params(key, d_model, n, dt):
    k1, k2, k3, k4 = jax.random.split(key, 4)
    return {
        "L": jnp.full((d_model, n), 0.5, jnp.float32),
        "P_left": 0.01 * jax.random.normal(k1, (d_model, n, 2), jnp.float32),
        "P_right": 0.01 * jax.random.normal(k2, (d_model, 2, n), jnp.float32),
        "B": jax.random.normal(k3, (d_model, n), jnp.float32) / math.sqrt(n),
        "C": jax.random.normal(k4, (d_model, n), jnp.float32) / math.sqrt(n),
        "D": jnp.ones((d_model,), jnp.float32),
        "log_dt": jnp.log(dt * jnp.ones((d_model, 1), jnp.float32)),
    }


if __name__ == "__main__":
    BATCH, D_MODEL, N_STATE, L_MAX, DT = 2, 4, 8, 16, 0.1
    SEQ_L = L_MAX

    key = jax.random.PRNGKey(0)
    pkey, xkey = jax.random.split(key)
    params = init_params(pkey, D_MODEL, N_STATE, DT)
    x = jax.random.normal(xkey, (BATCH, SEQ_L, D_MODEL), jnp.float32)

    y = jax.block_until_ready(s4d_forward(x, params, n=N_STATE, l_max=L_MAX))
    y_ref = jax.block_until_ready(s4d_reference(x, params, n=N_STATE, l_max=L_MAX))

    assert y.shape == (BATCH, SEQ_L, D_MODEL)
    assert bool(jnp.allclose(y, y_ref, atol=1e-4, rtol=1e-4))
    print("KERNEL_OK")
</pallas_src>

<mosaic_0001>
module attributes {stable_mosaic.version = 11 : i64} {
  func.func @kernel(%arg0: memref<8x8x8xf32, #tpu.memory_space<vmem>>, %arg1: memref<8x8xf32, #tpu.memory_space<vmem>>, %arg2: memref<8x8xf32, #tpu.memory_space<vmem>>, %arg3: memref<8x1xf32, #tpu.memory_space<vmem>>, %arg4: memref<8x31xf32, #tpu.memory_space<vmem>>, %arg5: memref<8x16xf32, #tpu.memory_space<vmem>>) attributes {dimension_semantics = [], scalar_prefetch = 0 : i64, scratch_operands = 0 : i64, tpu.core_type = #tpu.core_type<tc>} {
    %c0 = arith.constant 0 : index
    %c0_0 = arith.constant 0 : index
    %c0_1 = arith.constant 0 : index
    %0 = vector.load %arg0[%c0, %c0_0, %c0_1] : memref<8x8x8xf32, #tpu.memory_space<vmem>>, vector<8x8x8xf32>
    %c0_2 = arith.constant 0 : index
    %c0_3 = arith.constant 0 : index
    %1 = vector.load %arg2[%c0_2, %c0_3] : memref<8x8xf32, #tpu.memory_space<vmem>>, vector<8x8xf32>
    %c0_4 = arith.constant 0 : index
    %c0_5 = arith.constant 0 : index
    %2 = vector.load %arg1[%c0_4, %c0_5] : memref<8x8xf32, #tpu.memory_space<vmem>>, vector<8x8xf32>
    %c0_6 = arith.constant 0 : index
    %c0_7 = arith.constant 0 : index
    %3 = vector.load %arg3[%c0_6, %c0_7] : memref<8x1xf32, #tpu.memory_space<vmem>>, vector<8x1xf32>
    %c0_8 = arith.constant 0 : index
    %c0_9 = arith.constant 0 : index
    %4 = vector.load %arg4[%c0_8, %c0_9] : memref<8x31xf32, #tpu.memory_space<vmem>>, vector<8x31xf32>
    %cst = arith.constant 0.000000e+00 : f32
    %5 = vector.broadcast %cst : f32 to vector<8x16xf32>
    %6 = arith.mulf %1, %2 : vector<8x8xf32>
    %cst_10 = arith.constant dense<0.000000e+00> : vector<8xf32>
    %7 = vector.multi_reduction <add>, %6, %cst_10 [1] : vector<8x8xf32> to vector<8xf32>
    %8 = vector.shape_cast %7 : vector<8xf32> to vector<8x1xf32>
    %9 = arith.addf %8, %3 : vector<8x1xf32>
    %10 = vector.extract_strided_slice %4 {offsets = [0, 15], sizes = [8, 16], strides = [1, 1]} : vector<8x31xf32> to vector<8x16xf32>
    %11 = vector.broadcast %9 : vector<8x1xf32> to vector<8x16xf32>
    %12 = arith.mulf %11, %10 : vector<8x16xf32>
    %13 = arith.addf %5, %12 : vector<8x16xf32>
    %14 = vector.shape_cast %2 : vector<8x8xf32> to vector<8x1x8xf32>
    %15 = vector.broadcast %14 : vector<8x1x8xf32> to vector<8x8x8xf32>
    %16 = arith.mulf %0, %15 : vector<8x8x8xf32>
    %cst_11 = arith.constant dense<0.000000e+00> : vector<8x8xf32>
    %17 = vector.multi_reduction <add>, %16, %cst_11 [2] : vector<8x8x8xf32> to vector<8x8xf32>
    %18 = arith.mulf %1, %17 : vector<8x8xf32>
    %cst_12 = arith.constant dense<0.000000e+00> : vector<8xf32>
    %19 = vector.multi_reduction <add>, %18, %cst_12 [1] : vector<8x8xf32> to vector<8xf32>
    %20 = vector.shape_cast %19 : vector<8xf32> to vector<8x1xf32>
    %21 = vector.extract_strided_slice %4 {offsets = [0, 14], sizes = [8, 16], strides = [1, 1]} : vector<8x31xf32> to vector<8x16xf32>
    %22 = vector.broadcast %20 : vector<8x1xf32> to vector<8x16xf32>
    %23 = arith.mulf %22, %21 : vector<8x16xf32>
    %24 = arith.addf %13, %23 : vector<8x16xf32>
    %25 = vector.shape_cast %17 : vector<8x8xf32> to vector<8x1x8xf32>
    %26 = vector.broadcast %25 : vector<8x1x8xf32> to vector<8x8x8xf32>
    %27 = arith.mulf %0, %26 : vector<8x8x8xf32>
    %cst_13 = arith.constant dense<0.000000e+00> : vector<8x8xf32>
    %28 = vector.multi_reduction <add>, %27, %cst_13 [2] : vector<8x8x8xf32> to vector<8x8xf32>
    %29 = arith.mulf %1, %28 : vector<8x8xf32>
    %cst_14 = arith.constant dense<0.000000e+00> : vector<8xf32>
    %30 = vector.multi_reduction <add>, %29, %cst_14 [1] : vector<8x8xf32> to vector<8xf32>
    %31 = vector.shape_cast %30 : vector<8xf32> to vector<8x1xf32>
    %32 = vector.extract_strided_slice %4 {offsets = [0, 13], sizes = [8, 16], strides = [1, 1]} : vector<8x31xf32> to vector<8x16xf32>
    %33 = vector.broadcast %31 : vector<8x1xf32> to vector<8x16xf32>
    %34 = arith.mulf %33, %32 : vector<8x16xf32>
    %35 = arith.addf %24, %34 : vector<8x16xf32>
    %36 = vector.shape_cast %28 : vector<8x8xf32> to vector<8x1x8xf32>
    %37 = vector.broadcast %36 : vector<8x1x8xf32> to vector<8x8x8xf32>
    %38 = arith.mulf %0, %37 : vector<8x8x8xf32>
    %cst_15 = arith.constant dense<0.000000e+00> : vector<8x8xf32>
    %39 = vector.multi_reduction <add>, %38, %cst_15 [2] : vector<8x8x8xf32> to vector<8x8xf32>
    %40 = arith.mulf %1, %39 : vector<8x8xf32>
    %cst_16 = arith.constant dense<0.000000e+00> : vector<8xf32>
    %41 = vector.multi_reduction <add>, %40, %cst_16 [1] : vector<8x8xf32> to vector<8xf32>
    %42 = vector.shape_cast %41 : vector<8xf32> to vector<8x1xf32>
    %43 = vector.extract_strided_slice %4 {offsets = [0, 12], sizes = [8, 16], strides = [1, 1]} : vector<8x31xf32> to vector<8x16xf32>
    %44 = vector.broadcast %42 : vector<8x1xf32> to vector<8x16xf32>
    %45 = arith.mulf %44, %43 : vector<8x16xf32>
    %46 = arith.addf %35, %45 : vector<8x16xf32>
    %47 = vector.shape_cast %39 : vector<8x8xf32> to vector<8x1x8xf32>
    %48 = vector.broadcast %47 : vector<8x1x8xf32> to vector<8x8x8xf32>
    %49 = arith.mulf %0, %48 : vector<8x8x8xf32>
    %cst_17 = arith.constant dense<0.000000e+00> : vector<8x8xf32>
    %50 = vector.multi_reduction <add>, %49, %cst_17 [2] : vector<8x8x8xf32> to vector<8x8xf32>
    %51 = arith.mulf %1, %50 : vector<8x8xf32>
    %cst_18 = arith.constant dense<0.000000e+00> : vector<8xf32>
    %52 = vector.multi_reduction <add>, %51, %cst_18 [1] : vector<8x8xf32> to vector<8xf32>
    %53 = vector.shape_cast %52 : vector<8xf32> to vector<8x1xf32>
    %54 = vector.extract_strided_slice %4 {offsets = [0, 11], sizes = [8, 16], strides = [1, 1]} : vector<8x31xf32> to vector<8x16xf32>
    %55 = vector.broadcast %53 : vector<8x1xf32> to vector<8x16xf32>
    %56 = arith.mulf %55, %54 : vector<8x16xf32>
    %57 = arith.addf %46, %56 : vector<8x16xf32>
    %58 = vector.shape_cast %50 : vector<8x8xf32> to vector<8x1x8xf32>
    %59 = vector.broadcast %58 : vector<8x1x8xf32> to vector<8x8x8xf32>
    %60 = arith.mulf %0, %59 : vector<8x8x8xf32>
    %cst_19 = arith.constant dense<0.000000e+00> : vector<8x8xf32>
    %61 = vector.multi_reduction <add>, %60, %cst_19 [2] : vector<8x8x8xf32> to vector<8x8xf32>
    %62 = arith.mulf %1, %61 : vector<8x8xf32>
    %cst_20 = arith.constant dense<0.000000e+00> : vector<8xf32>
    %63 = vector.multi_reduction <add>, %62, %cst_20 [1] : vector<8x8xf32> to vector<8xf32>
    %64 = vector.shape_cast %63 : vector<8xf32> to vector<8x1xf32>
    %65 = vector.extract_strided_slice %4 {offsets = [0, 10], sizes = [8, 16], strides = [1, 1]} : vector<8x31xf32> to vector<8x16xf32>
    %66 = vector.broadcast %64 : vector<8x1xf32> to vector<8x16xf32>
    %67 = arith.mulf %66, %65 : vector<8x16xf32>
    %68 = arith.addf %57, %67 : vector<8x16xf32>
    %69 = vector.shape_cast %61 : vector<8x8xf32> to vector<8x1x8xf32>
    %70 = vector.broadcast %69 : vector<8x1x8xf32> to vector<8x8x8xf32>
    %71 = arith.mulf %0, %70 : vector<8x8x8xf32>
    %cst_21 = arith.constant dense<0.000000e+00> : vector<8x8xf32>
    %72 = vector.multi_reduction <add>, %71, %cst_21 [2] : vector<8x8x8xf32> to vector<8x8xf32>
    %73 = arith.mulf %1, %72 : vector<8x8xf32>
    %cst_22 = arith.constant dense<0.000000e+00> : vector<8xf32>
    %74 = vector.multi_reduction <add>, %73, %cst_22 [1] : vector<8x8xf32> to vector<8xf32>
    %75 = vector.shape_cast %74 : vector<8xf32> to vector<8x1xf32>
    %76 = vector.extract_strided_slice %4 {offsets = [0, 9], sizes = [8, 16], strides = [1, 1]} : vector<8x31xf32> to vector<8x16xf32>
    %77 = vector.broadcast %75 : vector<8x1xf32> to vector<8x16xf32>
    %78 = arith.mulf %77, %76 : vector<8x16xf32>
    %79 = arith.addf %68, %78 : vector<8x16xf32>
    %80 = vector.shape_cast %72 : vector<8x8xf32> to vector<8x1x8xf32>
    %81 = vector.broadcast %80 : vector<8x1x8xf32> to vector<8x8x8xf32>
    %82 = arith.mulf %0, %81 : vector<8x8x8xf32>
    %cst_23 = arith.constant dense<0.000000e+00> : vector<8x8xf32>
    %83 = vector.multi_reduction <add>, %82, %cst_23 [2] : vector<8x8x8xf32> to vector<8x8xf32>
    %84 = arith.mulf %1, %83 : vector<8x8xf32>
    %cst_24 = arith.constant dense<0.000000e+00> : vector<8xf32>
    %85 = vector.multi_reduction <add>, %84, %cst_24 [1] : vector<8x8xf32> to vector<8xf32>
    %86 = vector.shape_cast %85 : vector<8xf32> to vector<8x1xf32>
    %87 = vector.extract_strided_slice %4 {offsets = [0, 8], sizes = [8, 16], strides = [1, 1]} : vector<8x31xf32> to vector<8x16xf32>
    %88 = vector.broadcast %86 : vector<8x1xf32> to vector<8x16xf32>
    %89 = arith.mulf %88, %87 : vector<8x16xf32>
    %90 = arith.addf %79, %89 : vector<8x16xf32>
    %91 = vector.shape_cast %83 : vector<8x8xf32> to vector<8x1x8xf32>
    %92 = vector.broadcast %91 : vector<8x1x8xf32> to vector<8x8x8xf32>
    %93 = arith.mulf %0, %92 : vector<8x8x8xf32>
    %cst_25 = arith.constant dense<0.000000e+00> : vector<8x8xf32>
    %94 = vector.multi_reduction <add>, %93, %cst_25 [2] : vector<8x8x8xf32> to vector<8x8xf32>
    %95 = arith.mulf %1, %94 : vector<8x8xf32>
    %cst_26 = arith.constant dense<0.000000e+00> : vector<8xf32>
    %96 = vector.multi_reduction <add>, %95, %cst_26 [1] : vector<8x8xf32> to vector<8xf32>
    %97 = vector.shape_cast %96 : vector<8xf32> to vector<8x1xf32>
    %98 = vector.extract_strided_slice %4 {offsets = [0, 7], sizes = [8, 16], strides = [1, 1]} : vector<8x31xf32> to vector<8x16xf32>
    %99 = vector.broadcast %97 : vector<8x1xf32> to vector<8x16xf32>
    %100 = arith.mulf %99, %98 : vector<8x16xf32>
    %101 = arith.addf %90, %100 : vector<8x16xf32>
    %102 = vector.shape_cast %94 : vector<8x8xf32> to vector<8x1x8xf32>
    %103 = vector.broadcast %102 : vector<8x1x8xf32> to vector<8x8x8xf32>
    %104 = arith.mulf %0, %103 : vector<8x8x8xf32>
    %cst_27 = arith.constant dense<0.000000e+00> : vector<8x8xf32>
    %105 = vector.multi_reduction <add>, %104, %cst_27 [2] : vector<8x8x8xf32> to vector<8x8xf32>
    %106 = arith.mulf %1, %105 : vector<8x8xf32>
    %cst_28 = arith.constant dense<0.000000e+00> : vector<8xf32>
    %107 = vector.multi_reduction <add>, %106, %cst_28 [1] : vector<8x8xf32> to vector<8xf32>
    %108 = vector.shape_cast %107 : vector<8xf32> to vector<8x1xf32>
    %109 = vector.extract_strided_slice %4 {offsets = [0, 6], sizes = [8, 16], strides = [1, 1]} : vector<8x31xf32> to vector<8x16xf32>
    %110 = vector.broadcast %108 : vector<8x1xf32> to vector<8x16xf32>
    %111 = arith.mulf %110, %109 : vector<8x16xf32>
    %112 = arith.addf %101, %111 : vector<8x16xf32>
    %113 = vector.shape_cast %105 : vector<8x8xf32> to vector<8x1x8xf32>
    %114 = vector.broadcast %113 : vector<8x1x8xf32> to vector<8x8x8xf32>
    %115 = arith.mulf %0, %114 : vector<8x8x8xf32>
    %cst_29 = arith.constant dense<0.000000e+00> : vector<8x8xf32>
    %116 = vector.multi_reduction <add>, %115, %cst_29 [2] : vector<8x8x8xf32> to vector<8x8xf32>
    %117 = arith.mulf %1, %116 : vector<8x8xf32>
    %cst_30 = arith.constant dense<0.000000e+00> : vector<8xf32>
    %118 = vector.multi_reduction <add>, %117, %cst_30 [1] : vector<8x8xf32> to vector<8xf32>
    %119 = vector.shape_cast %118 : vector<8xf32> to vector<8x1xf32>
    %120 = vector.extract_strided_slice %4 {offsets = [0, 5], sizes = [8, 16], strides = [1, 1]} : vector<8x31xf32> to vector<8x16xf32>
    %121 = vector.broadcast %119 : vector<8x1xf32> to vector<8x16xf32>
    %122 = arith.mulf %121, %120 : vector<8x16xf32>
    %123 = arith.addf %112, %122 : vector<8x16xf32>
    %124 = vector.shape_cast %116 : vector<8x8xf32> to vector<8x1x8xf32>
    %125 = vector.broadcast %124 : vector<8x1x8xf32> to vector<8x8x8xf32>
    %126 = arith.mulf %0, %125 : vector<8x8x8xf32>
    %cst_31 = arith.constant dense<0.000000e+00> : vector<8x8xf32>
    %127 = vector.multi_reduction <add>, %126, %cst_31 [2] : vector<8x8x8xf32> to vector<8x8xf32>
    %128 = arith.mulf %1, %127 : vector<8x8xf32>
    %cst_32 = arith.constant dense<0.000000e+00> : vector<8xf32>
    %129 = vector.multi_reduction <add>, %128, %cst_32 [1] : vector<8x8xf32> to vector<8xf32>
    %130 = vector.shape_cast %129 : vector<8xf32> to vector<8x1xf32>
    %131 = vector.extract_strided_slice %4 {offsets = [0, 4], sizes = [8, 16], strides = [1, 1]} : vector<8x31xf32> to vector<8x16xf32>
    %132 = vector.broadcast %130 : vector<8x1xf32> to vector<8x16xf32>
    %133 = arith.mulf %132, %131 : vector<8x16xf32>
    %134 = arith.addf %123, %133 : vector<8x16xf32>
    %135 = vector.shape_cast %127 : vector<8x8xf32> to vector<8x1x8xf32>
    %136 = vector.broadcast %135 : vector<8x1x8xf32> to vector<8x8x8xf32>
    %137 = arith.mulf %0, %136 : vector<8x8x8xf32>
    %cst_33 = arith.constant dense<0.000000e+00> : vector<8x8xf32>
    %138 = vector.multi_reduction <add>, %137, %cst_33 [2] : vector<8x8x8xf32> to vector<8x8xf32>
    %139 = arith.mulf %1, %138 : vector<8x8xf32>
    %cst_34 = arith.constant dense<0.000000e+00> : vector<8xf32>
    %140 = vector.multi_reduction <add>, %139, %cst_34 [1] : vector<8x8xf32> to vector<8xf32>
    %141 = vector.shape_cast %140 : vector<8xf32> to vector<8x1xf32>
    %142 = vector.extract_strided_slice %4 {offsets = [0, 3], sizes = [8, 16], strides = [1, 1]} : vector<8x31xf32> to vector<8x16xf32>
    %143 = vector.broadcast %141 : vector<8x1xf32> to vector<8x16xf32>
    %144 = arith.mulf %143, %142 : vector<8x16xf32>
    %145 = arith.addf %134, %144 : vector<8x16xf32>
    %146 = vector.shape_cast %138 : vector<8x8xf32> to vector<8x1x8xf32>
    %147 = vector.broadcast %146 : vector<8x1x8xf32> to vector<8x8x8xf32>
    %148 = arith.mulf %0, %147 : vector<8x8x8xf32>
    %cst_35 = arith.constant dense<0.000000e+00> : vector<8x8xf32>
    %149 = vector.multi_reduction <add>, %148, %cst_35 [2] : vector<8x8x8xf32> to vector<8x8xf32>
    %150 = arith.mulf %1, %149 : vector<8x8xf32>
    %cst_36 = arith.constant dense<0.000000e+00> : vector<8xf32>
    %151 = vector.multi_reduction <add>, %150, %cst_36 [1] : vector<8x8xf32> to vector<8xf32>
    %152 = vector.shape_cast %151 : vector<8xf32> to vector<8x1xf32>
    %153 = vector.extract_strided_slice %4 {offsets = [0, 2], sizes = [8, 16], strides = [1, 1]} : vector<8x31xf32> to vector<8x16xf32>
    %154 = vector.broadcast %152 : vector<8x1xf32> to vector<8x16xf32>
    %155 = arith.mulf %154, %153 : vector<8x16xf32>
    %156 = arith.addf %145, %155 : vector<8x16xf32>
    %157 = vector.shape_cast %149 : vector<8x8xf32> to vector<8x1x8xf32>
    %158 = vector.broadcast %157 : vector<8x1x8xf32> to vector<8x8x8xf32>
    %159 = arith.mulf %0, %158 : vector<8x8x8xf32>
    %cst_37 = arith.constant dense<0.000000e+00> : vector<8x8xf32>
    %160 = vector.multi_reduction <add>, %159, %cst_37 [2] : vector<8x8x8xf32> to vector<8x8xf32>
    %161 = arith.mulf %1, %160 : vector<8x8xf32>
    %cst_38 = arith.constant dense<0.000000e+00> : vector<8xf32>
    %162 = vector.multi_reduction <add>, %161, %cst_38 [1] : vector<8x8xf32> to vector<8xf32>
    %163 = vector.shape_cast %162 : vector<8xf32> to vector<8x1xf32>
    %164 = vector.extract_strided_slice %4 {offsets = [0, 1], sizes = [8, 16], strides = [1, 1]} : vector<8x31xf32> to vector<8x16xf32>
    %165 = vector.broadcast %163 : vector<8x1xf32> to vector<8x16xf32>
    %166 = arith.mulf %165, %164 : vector<8x16xf32>
    %167 = arith.addf %156, %166 : vector<8x16xf32>
    %168 = vector.shape_cast %160 : vector<8x8xf32> to vector<8x1x8xf32>
    %169 = vector.broadcast %168 : vector<8x1x8xf32> to vector<8x8x8xf32>
    %170 = arith.mulf %0, %169 : vector<8x8x8xf32>
    %cst_39 = arith.constant dense<0.000000e+00> : vector<8x8xf32>
    %171 = vector.multi_reduction <add>, %170, %cst_39 [2] : vector<8x8x8xf32> to vector<8x8xf32>
    %172 = arith.mulf %1, %171 : vector<8x8xf32>
    %cst_40 = arith.constant dense<0.000000e+00> : vector<8xf32>
    %173 = vector.multi_reduction <add>, %172, %cst_40 [1] : vector<8x8xf32> to vector<8xf32>
    %174 = vector.shape_cast %173 : vector<8xf32> to vector<8x1xf32>
    %175 = vector.extract_strided_slice %4 {offsets = [0, 0], sizes = [8, 16], strides = [1, 1]} : vector<8x31xf32> to vector<8x16xf32>
    %176 = vector.broadcast %174 : vector<8x1xf32> to vector<8x16xf32>
    %177 = arith.mulf %176, %175 : vector<8x16xf32>
    %178 = arith.addf %167, %177 : vector<8x16xf32>
    %c0_41 = arith.constant 0 : index
    %c0_42 = arith.constant 0 : index
    %179 = vector.load %arg5[%c0_41, %c0_42] : memref<8x16xf32, #tpu.memory_space<vmem>>, vector<8x16xf32>
    tpu.vector_store %arg5[%c0_41, %c0_42], %178 {strides = array<i32>} : memref<8x16xf32, #tpu.memory_space<vmem>>, vector<8x16xf32>,
    return
  }
}

</mosaic_0001>

<llo_original>
// kernel: custom-call.23
$region0: #{custom-call.23}
  %s0 = inlined_call_operand.vmem [shape: f32[4,8,8], index: 0, kind: input, shape index: {}]
  %s1 = inlined_call_operand.vmem [shape: f32[4,8,8], index: 1, kind: output, shape index: {0}]
  %s2 = inlined_call_operand.hbm [shape: s32[4,8], index: 2, kind: output, shape index: {1}]
  %s3 = inlined_call_operand.vmem [shape: s32[4,8], index: 3, kind: output, shape index: {2}]
  %4 = xla_tuple %s1, %s2, %s3
  $region1: #{custom-call.23} parent=0
    #allocation0 [shape = 'u8[8192]{0}', space=vmem, size = 0x2000, scoped, tag = 'operand span for operand 0']
    #allocation1 [shape = 'u8[8192]{0}', space=vmem, size = 0x2000, scoped, tag = 'operand span for operand 1']
    #allocation2 [shape = 'u8[4096]{0}', space=vmem, size = 0x1000, scoped, tag = 'operand span for operand 2']
    #allocation3 [shape = 'u8[4096]{0}', space=vmem, size = 0x1000, scoped, tag = 'packed  for operand 2']
    #allocation4 [shape = 's32[2]{0}', space=sflag, size = 0x8, scoped, tag = 'scoped memory for custom-call.23']
    #allocation5 [shape = 'u8[4096]{0}', space=vmem, size = 0x1000, scoped, tag = 'operand span for operand 3']
    #allocation6 [shape = 'u8[4096]{0}', space=vmem, size = 0x1000, scoped, tag = 'packed  for operand 3']
    %5 = vsyncpa [#allocation4], 0
    %s6 = scalar_lea.sflag [#allocation4], 1
    %7 = vsyncpa %s6, 0
    loop: start=0, step=1, limit=6
    $region2: #{custom-call.23} parent=1 // loop_pre_header
      _
    $region3: #{custom-call.23} parent=1 // loop_header
      %s9 = sphi 0, %s13
      %p10 = scmp.ge.s32.totalorder %s9, 6
      %s21 = sphi 0, %s23
      %s24 = sphi 0, %s21
      %s25 = sphi 0, %s24
      %s41 = sphi 0, %s25
      %s49 = sphi 0, %s51
      %s52 = sphi 0, %s49
      %s53 = sphi 0, %s52
      %s69 = sphi 0, %s53
    $region4: #{custom-call.23} parent=1 // loop_header_branch
      %12 = sbr.rel (%p10) target = $region8
    $region5: #{custom-call.23} parent=1 // loop_body
      %s14 = ssub.s32 %s9, 1
      %s15 = ssub.s32 %s9, 2
      %s16 = sadd.s32 %s9, 1
      %s17 = sshrl.u32 %s9, 3
      %s18 = sshrl.u32 %s16, 3
      %s19 = ssub.s32 %s17, %s18
      %p20 = scmp.eq.s32.totalorder %s19, 0
      %s22 = sadd.s32 %s21, 1
      %s23 = scalar_select %p20, %s21, %s22
      %p26 = pneg %p20
      %p27 = scmp.eq.s32.totalorder %s9, 3
      %p28 = por %p26, %p27
      %p29 = scmp.ne.s32.totalorder %s21, %s24
      %p30 = scmp.eq.s32.totalorder %s9, 0
      %p31 = por %p29, %p30
      %p32 = scmp.ne.s32.totalorder %s21, %s24
      %p33 = scmp.eq.s32.totalorder %s14, 3
      %p34 = por %p32, %p33
      %p35 = scmp.ne.s32.totalorder %s24, %s25
      %p36 = scmp.eq.s32.totalorder %s14, 0
      %p37 = por %p35, %p36
      %p38 = scmp.ne.s32.totalorder %s24, %s25
      %p39 = scmp.eq.s32.totalorder %s15, 3
      %p40 = por %p38, %p39
      %p42 = scmp.ne.s32.totalorder %s25, %s41
      %p43 = scmp.eq.s32.totalorder %s15, 0
      %p44 = por %p42, %p43
      %s45 = sshrl.u32 %s9, 3
      %s46 = sshrl.u32 %s16, 3
      %s47 = ssub.s32 %s45, %s46
      %p48 = scmp.eq.s32.totalorder %s47, 0
      %s50 = sadd.s32 %s49, 1
      %s51 = scalar_select %p48, %s49, %s50
      %p54 = pneg %p48
      %p55 = scmp.eq.s32.totalorder %s9, 3
      %p56 = por %p54, %p55
      %p57 = scmp.ne.s32.totalorder %s49, %s52
      %p58 = scmp.eq.s32.totalorder %s9, 0
      %p59 = por %p57, %p58
      %p60 = scmp.ne.s32.totalorder %s49, %s52
      %p61 = scmp.eq.s32.totalorder %s14, 3
      %p62 = por %p60, %p61
      %p63 = scmp.ne.s32.totalorder %s52, %s53
      %p64 = scmp.eq.s32.totalorder %s14, 0
      %p65 = por %p63, %p64
      %p66 = scmp.ne.s32.totalorder %s52, %s53
      %p67 = scmp.eq.s32.totalorder %s15, 3
      %p68 = por %p66, %p67
      %p70 = scmp.ne.s32.totalorder %s53, %s69
      %p71 = scmp.eq.s32.totalorder %s15, 0
      %p72 = por %p70, %p71
      %p73 = scmp.le.s32.totalorder 1, %s9
      %p74 = scmp.lt.s32.totalorder %s9, 5
      %p75 = pnand %p73, %p74
      %p76 = pneg %p75
      // Predicated region
      $region9: #{custom-call.23} parent=5 // pred_check
        _
      $region10: #{custom-call.23} parent=5 // pred_check_branch
        %78 = sbr.rel (%p75) target = $region12
      $region11: #{custom-call.23} parent=5 // pred_region
        %s79 = ssub.s32 %s9, 1
      $region12: #{custom-call.23} parent=5 // pred_fallthru
        _
      %p80 = scmp.lt.s32.totalorder %s9, 4
      // Predicated region
      $region13: #{custom-call.23} parent=5 // pred_check
        %p81 = pneg %p80
      $region14: #{custom-call.23} parent=5 // pred_check_branch
        %83 = sbr.rel (%p81) target = $region16
      $region15: #{custom-call.23} parent=5 // pred_region
        %s84 = sand.u32 %s9, 1
        %s85 = sand.u32 %s9, 1
        %s86 = smul.addr %s85, 8
        %s87 = scalar_lea.vmem [#allocation0], %s86
        %s88 = smul.addr %s9, 8
        %s89 = scalar_lea.vmem %s0, %s88
        // Predicated region
        $region17: #{custom-call.23} parent=15 // pred_check
          _
        $region18: #{custom-call.23} parent=15 // pred_check_branch
          %91 = sbr.rel (0) target = $region20
        $region19: #{custom-call.23} parent=15 // pred_region
          // Predicated region
          $region21: #{custom-call.23} parent=19 // pred_check
            _
          $region22: #{custom-call.23} parent=19 // pred_check_branch
            %93 = sbr.rel (0) target = $region24
          $region23: #{custom-call.23} parent=19 // pred_region
            // Predicated region
            $region36: #{custom-call.23} parent=23 // pred_check
              _
            $region37: #{custom-call.23} parent=23 // pred_check_branch
              %108 = sbr.rel (0) target = $region39
            $region38: #{custom-call.23} parent=23 // pred_region
              loop: start=0, step=1, limit=1
              $region40: #{custom-call.23} parent=38 // loop_pre_header
                _
              $region41: #{custom-call.23} parent=38 // loop_header
                %s110 = sphi 0, %s114
                %p111 = scmp.ge.s32.totalorder %s110, 1
                %s115 = sphi %s89, %s89
                %s116 = sphi %s87, %s87
              $region42: #{custom-call.23} parent=38 // loop_header_branch
                %113 = sbr.rel (%p111) target = $region46
              $region43: #{custom-call.23} parent=38 // loop_body
                %v117 = vld [vmem:[%s115] sm:$0xff]
                %118 = vst [vmem:[%s116] sm:$0xff] %v117
              $region44: #{custom-call.23} parent=38 // loop_footer
                %s114 = sadd.s32 1, %s110
              $region45: #{custom-call.23} parent=38 // loop_footer_branch
                %109 = sbr.rel target = $region41
              $region46: #{custom-call.23} parent=38 // loop_exit
                _
            $region39: #{custom-call.23} parent=23 // pred_fallthru
              _
            // Predicated region
            $region47: #{custom-call.23} parent=23 // pred_check
              _
            $region48: #{custom-call.23} parent=23 // pred_check_branch
              %120 = sbr.rel target = $region50
            $region49: #{custom-call.23} parent=23 // pred_region
              _
            $region50: #{custom-call.23} parent=23 // pred_fallthru
              _
          $region24: #{custom-call.23} parent=19 // pred_fallthru
            _
          // Predicated region
          $region25: #{custom-call.23} parent=19 // pred_check
            _
          $region26: #{custom-call.23} parent=19 // pred_check_branch
            %95 = sbr.rel target = $region28
          $region27: #{custom-call.23} parent=19 // pred_region
            loop: start=0, step=1, limit=1
            $region29: #{custom-call.23} parent=27 // loop_pre_header
              _
            $region30: #{custom-call.23} parent=27 // loop_header
              %s98 = sphi 0, %s102
              %p99 = scmp.ge.s32.totalorder %s98, 1
              %s103 = sphi %s89, %s89
              %s104 = sphi %s87, %s87
            $region31: #{custom-call.23} parent=27 // loop_header_branch
              %101 = sbr.rel (%p99) target = $region35
            $region32: #{custom-call.23} parent=27 // loop_body
              %v105 = vld [vmem:[%s103] sm:$0xff]
              %106 = vst [vmem:[%s104] sm:$0xff] %v105
            $region33: #{custom-call.23} parent=27 // loop_footer
              %s102 = sadd.s32 1, %s98
            $region34: #{custom-call.23} parent=27 // loop_footer_branch
              %97 = sbr.rel target = $region30
            $region35: #{custom-call.23} parent=27 // loop_exit
              _
          $region28: #{custom-call.23} parent=19 // pred_fallthru
            _
        $region20: #{custom-call.23} parent=15 // pred_fallthru
          _
        %121 = vnop
      $region16: #{custom-call.23} parent=5 // pred_fallthru
        _
      %p122 = scmp.le.s32.totalorder 1, %s9
      %p123 = scmp.lt.s32.totalorder %s9, 5
      %p124 = pnand %p122, %p123
      %p125 = pneg %p124
      // Predicated region
      $region51: #{custom-call.23} parent=5 // pred_check
        _
      $region52: #{custom-call.23} parent=5 // pred_check_branch
        %127 = sbr.rel (%p124) target = $region54
      $region53: #{custom-call.23} parent=5 // pred_region
        #allocation7 [shape = 's32[8,128]{1,0}', space=vmem, size = 0x1000, scoped, tag = 'scratch for permutations']
        %s128 = ssub.s32 %s9, 1
        %s129 = sand.u32 %s14, 1
        %s130 = sand.u32 %s14, 1
        %s131 = smul.addr %s130, 8
        %s132 = scalar_lea.vmem [#allocation0], %s131
        %s133 = sand.u32 %s14, 1
        %s134 = sand.u32 %s14, 1
        %s135 = smul.addr %s134, 8
        %s136 = scalar_lea.vmem [#allocation0], %s135
        %s137 = sand.u32 %s14, 1
        %s138 = sand.u32 %s14, 1
        %s139 = smul.addr %s138, 8
        %s140 = scalar_lea.vmem [#allocation1], %s139
        %p141 = pneg %p37
        %p142 = pneg %p34
        %s143 = sand.u32 %s24, 1
        %s144 = scalar_lea.sflag [#allocation4], %s143
        %s145 = sand.u32 %s24, 1
        %s146 = smul.addr %s145, 4
        %s147 = scalar_lea.vmem [#allocation3], %s146
        %p148 = pneg %p65
        %p149 = pneg %p62
        %s150 = sand.u32 %s52, 1
        %s151 = sand.u32 %s52, 1
        %s152 = smul.addr %s151, 4
        %s153 = scalar_lea.vmem [#allocation6], %s152
        %s154 = sshrl.u32 %s14, 3
        %s155 = sshrl.u32 %s14, 3
        %v156 = vld [vmem:[%s132] sm:$0xff]
        %157 = vst [vmem:[%s140] sm:$0xff] %v156
        %s158 = sand.u32 %s14, 7
        %s159 = scalar_lea.vmem [#allocation2], %s158
        %s160 = sand.u32 %s14, 7
        %s161 = scalar_lea.vmem [#allocation5], %s160
        %162 = vst [vmem:[%s159] sm:$0x1] 0
        %v163 = vlaneseq
        %v164 = vshrl.u32 %v163, 7
        %v165 = vmov %v164
        %167 = vst [vmem:[#allocation7] sm:$0xff] %v165
        loop: start=0, step=1, limit=8
        $region56: #{custom-call.23} parent=53 // loop_pre_header
          _
        $region57: #{custom-call.23} parent=53 // loop_header
          %s169 = sphi 0, %s173
          %p170 = scmp.ge.s32.totalorder %s169, 8
        $region58: #{custom-call.23} parent=53 // loop_header_branch
          %172 = sbr.rel (%p170) target = $region62
        $region59: #{custom-call.23} parent=53 // loop_body
          %v174 = vstv %s169
          %v175 = vlaneseq
          %v176 = vshrl.u32 %v175, 7
          %v177 = vmov %v176
          %v178 = vld [vmem:[%s140] sm:$0xff]
          %v179 = vand.u32 2147483647, %v178
          %v181 = vstv %s169
          %vm182 = vcmp.ge.s32.totalorder %v177, %v181
          %vm183 = vcmp.lt.s32.totalorder %v177, 8
          %vm184 = vmand %vm182, %vm183
          %vm185 = vcmp.lt.f32.partialorder -inf, %v179
          %vm186 = vmand %vm184, %vm185
          %v187 = vsel %vm186, %v177, %v174
          %v188 = vsel %vm186, %v179, -inf
          %v189 = vrot.slane %v188, 1
          %v190 = vrot.slane %v187, 1
          %vm191 = vcmp.ge.f32.partialorder %v189, %v188
          %v192 = vsel %vm191, %v189, %v188
          %v193 = vsel %vm191, %v190, %v187
          %v194 = vrot.slane %v189, 1
          %v195 = vrot.slane %v190, 1
          %vm196 = vcmp.ge.f32.partialorder %v194, %v192
          %v197 = vsel %vm196, %v194, %v192
          %v198 = vsel %vm196, %v195, %v193
          %v199 = vrot.slane %v194, 1
          %v200 = vrot.slane %v195, 1
          %vm201 = vcmp.ge.f32.partialorder %v199, %v197
          %v202 = vsel %vm201, %v199, %v197
          %v203 = vsel %vm201, %v200, %v198
          %v204 = vrot.slane %v199, 1
          %v205 = vrot.slane %v200, 1
          %vm206 = vcmp.ge.f32.partialorder %v204, %v202
          %v207 = vsel %vm206, %v204, %v202
          %v208 = vsel %vm206, %v205, %v203
          %v209 = vrot.slane %v204, 1
          %v210 = vrot.slane %v205, 1
          %vm211 = vcmp.ge.f32.partialorder %v209, %v207
          %v212 = vsel %vm211, %v209, %v207
          %v213 = vsel %vm211, %v210, %v208
          %v214 = vrot.slane %v209, 1
          %v215 = vrot.slane %v210, 1
          %vm216 = vcmp.ge.f32.partialorder %v214, %v212
          %v217 = vsel %vm216, %v214, %v212
          %v218 = vsel %vm216, %v215, %v213
          %v219 = vrot.slane %v214, 1
          %v220 = vrot.slane %v215, 1
          %vm221 = vcmp.ge.f32.partialorder %v219, %v217
          %v222 = vsel %vm221, %v219, %v217
          %v223 = vsel %vm221, %v220, %v218
          %s224 = ssub.s32 128, %s169
          %225 = vrot.lane.b32.xlu0 %v223, %s224
          %v226 = vpop.permute.xlu0 %225
          %s227 = vtos %v226
          %v228 = vstv %s169
          %v229 = vlaneseq
          %v230 = vand.u32 %v229, 127
          %vm231 = vcmp.eq.s32.totalorder %v230, %v228
          %v232 = vstv %s227
          %v233 = vld [vmem:[%s159] ss:$0 sm:$0xff]
          %v234 = vsel %vm231, %v232, %v233
          %235 = vst [vmem:[%s159] sm:$0x1] %v234
          %s236 = scalar_lea.vmem %s140, %s169 [#allocation1]
          %s237 = scalar_lea.vmem %s140, %s227 [#allocation1]
          %v238 = vld [vmem:[%s236] ss:$0 sm:$0xff]
          %v239 = vld [vmem:[%s237] ss:$0 sm:$0xff]
          %240 = vst [vmem:[%s237] sm:$0x1] %v238
          %241 = vst [vmem:[%s236] sm:$0x1] %v239
          %s242 = scalar_lea.vmem [#allocation7], %s169
          %s243 = scalar_lea.vmem [#allocation7], %s227
          %v244 = vld [vmem:[%s242] ss:$0 sm:$0xff]
          %v245 = vld [vmem:[%s243] ss:$0 sm:$0xff]
          %246 = vst [vmem:[%s243] sm:$0x1] %v244
          %247 = vst [vmem:[%s242] sm:$0x1] %v245
          %vm248 = vcmp.ne.f32.partialorder %v239, 0.0
          %vm249 = vmand %vm231, %vm248
          %v250 = vsel %vm249, %v239, 1.0
          %v251 = vlaneseq
          %v252 = vand.u32 %v251, 127
          %v253 = vstv %s169
          %vm254 = vcmp.gt.s32.totalorder %v252, %v253
          %v255 = vsel %vm254, %v239, 0.0
          %v256 = vlaneseq
          %v257 = vshrl.u32 %v256, 7
          %v258 = vmov %v257
          %v259 = vld [vmem:[%s140] sm:$0xff]
          %v261 = vstv %s169
          %vm262 = vcmp.gt.s32.totalorder %v258, %v261
          %v263 = vsel %vm262, %v250, 1.0
          %v264 = vrcp.pop %v263
          %v265 = vmul.f32 %v259, %v264
          %vm266 = vmand %vm262, %vm231
          %v267 = vsel %vm266, %v265, 0.0
          %268 = vadd.xlane.f32.xlu0 %v267
          %v269 = vpop.xlane.xlu0 %268
          %v270 = vmul.f32 %v269, %v255
          %v271 = vsub.f32 %v265, %v270
          %272 = vst [vmem:[%s140] sm:$0xff] %v271
        $region60: #{custom-call.23} parent=53 // loop_footer
          %s173 = sadd.s32 1, %s169
        $region61: #{custom-call.23} parent=53 // loop_footer_branch
          %168 = sbr.rel target = $region57
        $region62: #{custom-call.23} parent=53 // loop_exit
          _
        %v273 = vld [vmem:[#allocation7] sm:$0xff]
        %s274 = scalar_lea.vmem [#allocation7], 8
        %s275 = scalar_lea.vmem [#allocation7], 16
        %s276 = scalar_lea.vmem [#allocation7], 24
        %s277 = scalar_lea.vmem [#allocation7], 32
        %s278 = scalar_lea.vmem [#allocation7], 40
        %s279 = scalar_lea.vmem [#allocation7], 48
        %s280 = scalar_lea.vmem [#allocation7], 56
        %s281 = scalar_lea.vmem [#allocation7], 64
        %s282 = scalar_lea.vmem [#allocation7], 72
        %s283 = scalar_lea.vmem [#allocation7], 80
        %s284 = scalar_lea.vmem [#allocation7], 88
        %s285 = scalar_lea.vmem [#allocation7], 96
        %s286 = scalar_lea.vmem [#allocation7], 104
        %s287 = scalar_lea.vmem [#allocation7], 112
        %s288 = scalar_lea.vmem [#allocation7], 120
        %289 = vxpose.xlu0.b32.start [1/16] %v273, 128
        %290 = vxpose.xlu0.b32.cont [2/16] 0, 128
        %291 = vxpose.xlu0.b32.cont [3/16] 0, 128
        %292 = vxpose.xlu0.b32.cont [4/16] 0, 128
        %293 = vxpose.xlu0.b32.cont [5/16] 0, 128
        %294 = vxpose.xlu0.b32.cont [6/16] 0, 128
        %295 = vxpose.xlu0.b32.cont [7/16] 0, 128
        %296 = vxpose.xlu0.b32.cont [8/16] 0, 128
        %297 = vxpose.xlu0.b32.cont [9/16] 0, 128
        %298 = vxpose.xlu0.b32.cont [10/16] 0, 128
        %299 = vxpose.xlu0.b32.cont [11/16] 0, 128
        %300 = vxpose.xlu0.b32.cont [12/16] 0, 128
        %301 = vxpose.xlu0.b32.cont [13/16] 0, 128
        %302 = vxpose.xlu0.b32.cont [14/16] 0, 128
        %303 = vxpose.xlu0.b32.cont [15/16] 0, 128
        %304 = vxpose.xlu0.b32.end [16/16] 0, 128
        %v305 = vpop.trf.xlu0
        %v306 = vpop.trf.xlu0
        %v307 = vpop.trf.xlu0
        %v308 = vpop.trf.xlu0
        %v309 = vpop.trf.xlu0
        %v310 = vpop.trf.xlu0
        %v311 = vpop.trf.xlu0
        %v312 = vpop.trf.xlu0
        %v313 = vpop.trf.xlu0
        %v314 = vpop.trf.xlu0
        %v315 = vpop.trf.xlu0
        %v316 = vpop.trf.xlu0
        %v317 = vpop.trf.xlu0
        %v318 = vpop.trf.xlu0
        %v319 = vpop.trf.xlu0
        %v320 = vpop.trf.xlu0
        %321 = vst [vmem:[%s161] sm:$0x1] %v305
        %s323 = sshllo.u32 0, 4
        %v325 = vld [vmem:[#allocation2] sm:%s323]
        %s326 = sshllo.u32 0, 4
        %327 = vst [vmem:[%s147] sm:%s326] %v325
        %s329 = sshllo.u32 0, 4
        %v331 = vld [vmem:[#allocation5] sm:%s329]
        %s332 = sshllo.u32 0, 4
        %333 = vst [vmem:[%s153] sm:%s332] %v331
        %s334 = sand.u32 %s14, 1
        %s335 = sand.u32 %s14, 1
        %s336 = smul.addr %s335, 8
        %s337 = scalar_lea.vmem [#allocation1], %s336
        %s338 = sand.u32 %s24, 1
        %s339 = scalar_lea.sflag [#allocation4], %s338
        %s340 = sand.u32 %s24, 1
        %s341 = smul.addr %s340, 4
        %s342 = scalar_lea.vmem [#allocation3], %s341
        %s343 = sand.u32 %s52, 1
        %s344 = sand.u32 %s52, 1
        %s345 = smul.addr %s344, 4
        %s346 = scalar_lea.vmem [#allocation6], %s345
        %s347 = smul.addr %s14, 8
        %s348 = scalar_lea.vmem %s1, %s347
        // Predicated region
        $region63: #{custom-call.23} parent=53 // pred_check
          _
        $region64: #{custom-call.23} parent=53 // pred_check_branch
          %350 = sbr.rel (0) target = $region66
        $region65: #{custom-call.23} parent=53 // pred_region
          // Predicated region
          $region67: #{custom-call.23} parent=65 // pred_check
            _
          $region68: #{custom-call.23} parent=65 // pred_check_branch
            %352 = sbr.rel (0) target = $region70
          $region69: #{custom-call.23} parent=65 // pred_region
            // Predicated region
            $region82: #{custom-call.23} parent=69 // pred_check
              _
            $region83: #{custom-call.23} parent=69 // pred_check_branch
              %367 = sbr.rel (0) target = $region85
            $region84: #{custom-call.23} parent=69 // pred_region
              loop: start=0, step=1, limit=1
              $region86: #{custom-call.23} parent=84 // loop_pre_header
                _
              $region87: #{custom-call.23} parent=84 // loop_header
                %s369 = sphi 0, %s373
                %p370 = scmp.ge.s32.totalorder %s369, 1
                %s374 = sphi %s337, %s337
                %s375 = sphi %s348, %s348
              $region88: #{custom-call.23} parent=84 // loop_header_branch
                %372 = sbr.rel (%p370) target = $region92
              $region89: #{custom-call.23} parent=84 // loop_body
                %v376 = vld [vmem:[%s374] sm:$0xff]
                %377 = vst [vmem:[%s375] sm:$0xff] %v376
              $region90: #{custom-call.23} parent=84 // loop_footer
                %s373 = sadd.s32 1, %s369
              $region91: #{custom-call.23} parent=84 // loop_footer_branch
                %368 = sbr.rel target = $region87
              $region92: #{custom-call.23} parent=84 // loop_exit
                _
            $region85: #{custom-call.23} parent=69 // pred_fallthru
              _
            // Predicated region
            $region93: #{custom-call.23} parent=69 // pred_check
              _
            $region94: #{custom-call.23} parent=69 // pred_check_branch
              %379 = sbr.rel target = $region96
            $region95: #{custom-call.23} parent=69 // pred_region
              _
            $region96: #{custom-call.23} parent=69 // pred_fallthru
              _
          $region70: #{custom-call.23} parent=65 // pred_fallthru
            _
          // Predicated region
          $region71: #{custom-call.23} parent=65 // pred_check
            _
          $region72: #{custom-call.23} parent=65 // pred_check_branch
            %354 = sbr.rel target = $region74
          $region73: #{custom-call.23} parent=65 // pred_region
            loop: start=0, step=1, limit=1
            $region75: #{custom-call.23} parent=73 // loop_pre_header
              _
            $region76: #{custom-call.23} parent=73 // loop_header
              %s357 = sphi 0, %s361
              %p358 = scmp.ge.s32.totalorder %s357, 1
              %s362 = sphi %s337, %s337
              %s363 = sphi %s348, %s348
            $region77: #{custom-call.23} parent=73 // loop_header_branch
              %360 = sbr.rel (%p358) target = $region81
            $region78: #{custom-call.23} parent=73 // loop_body
              %v364 = vld [vmem:[%s362] sm:$0xff]
              %365 = vst [vmem:[%s363] sm:$0xff] %v364
            $region79: #{custom-call.23} parent=73 // loop_footer
              %s361 = sadd.s32 1, %s357
            $region80: #{custom-call.23} parent=73 // loop_footer_branch
              %356 = sbr.rel target = $region76
            $region81: #{custom-call.23} parent=73 // loop_exit
              _
          $region74: #{custom-call.23} parent=65 // pred_fallthru
            _
        $region66: #{custom-call.23} parent=53 // pred_fallthru
          _
        %380 = vnop
        // Predicated region
        $region97: #{custom-call.23} parent=53 // pred_check
          %p381 = pneg %p34
        $region98: #{custom-call.23} parent=53 // pred_check_branch
          %383 = sbr.rel (%p381) target = $region100
        $region99: #{custom-call.23} parent=53 // pred_region
          %s384 = sshrl.u32 %s14, 3
          %s386 = ssub.s32 64, 64
          %387 = vsyncadd %s339, %s386
          %s388 = smul.addr %s384, 64
          %s389 = scalar_lea.hbm %s2, %s388
          %s391 = sshll.u32 %s342, 4
          %s392 = int_to_ptr.vmem [resolvable:$true] %s391
          %394 = dma.vmem_to_hbm [thread:$0]  %s392, 64, %s389, %s339
        $region100: #{custom-call.23} parent=53 // pred_fallthru
          _
        // Predicated region
        $region101: #{custom-call.23} parent=53 // pred_check
          %p395 = pneg %p62
        $region102: #{custom-call.23} parent=53 // pred_check_branch
          %397 = sbr.rel (%p395) target = $region104
        $region103: #{custom-call.23} parent=53 // pred_region
          %s398 = sshrl.u32 %s14, 3
          %s399 = smul.addr %s398, 4
          %s400 = scalar_lea.vmem %s3, %s399
          // Predicated region
          $region105: #{custom-call.23} parent=103 // pred_check
            _
          $region106: #{custom-call.23} parent=103 // pred_check_branch
            %402 = sbr.rel (0) target = $region108
          $region107: #{custom-call.23} parent=103 // pred_region
            // Predicated region
            $region109: #{custom-call.23} parent=107 // pred_check
              _
            $region110: #{custom-call.23} parent=107 // pred_check_branch
              %404 = sbr.rel target = $region112
            $region111: #{custom-call.23} parent=107 // pred_region
              // Predicated region
              $region124: #{custom-call.23} parent=111 // pred_check
                _
              $region125: #{custom-call.23} parent=111 // pred_check_branch
                %419 = sbr.rel (0) target = $region127
              $region126: #{custom-call.23} parent=111 // pred_region
                loop: start=0, step=1, limit=1
                $region128: #{custom-call.23} parent=126 // loop_pre_header
                  _
                $region129: #{custom-call.23} parent=126 // loop_header
                  %s422 = sphi 0, %s426
                  %p423 = scmp.ge.s32.totalorder %s422, 1
                  %s427 = sphi %s346, %s346
                  %s428 = sphi %s400, %s400
                $region130: #{custom-call.23} parent=126 // loop_header_branch
                  %425 = sbr.rel (%p423) target = $region134
                $region131: #{custom-call.23} parent=126 // loop_body
                  %v429 = vld [vmem:[%s427] sm:$0xf]
                  %430 = vst [vmem:[%s428] sm:$0xf] %v429
                $region132: #{custom-call.23} parent=126 // loop_footer
                  %s426 = sadd.s32 1, %s422
                $region133: #{custom-call.23} parent=126 // loop_footer_branch
                  %421 = sbr.rel target = $region129
                $region134: #{custom-call.23} parent=126 // loop_exit
                  _
              $region127: #{custom-call.23} parent=111 // pred_fallthru
                _
            $region112: #{custom-call.23} parent=107 // pred_fallthru
              _
            // Predicated region
            $region113: #{custom-call.23} parent=107 // pred_check
              _
            $region114: #{custom-call.23} parent=107 // pred_check_branch
              %406 = sbr.rel (0) target = $region116
            $region115: #{custom-call.23} parent=107 // pred_region
              loop: start=0, step=1, limit=1
              $region117: #{custom-call.23} parent=115 // loop_pre_header
                _
              $region118: #{custom-call.23} parent=115 // loop_header
                %s409 = sphi 0, %s413
                %p410 = scmp.ge.s32.totalorder %s409, 1
                %s414 = sphi %s346, %s346
                %s415 = sphi %s400, %s400
              $region119: #{custom-call.23} parent=115 // loop_header_branch
                %412 = sbr.rel (%p410) target = $region123
              $region120: #{custom-call.23} parent=115 // loop_body
                %v416 = vld [vmem:[%s414] sm:$0xf]
                %417 = vst [vmem:[%s415] sm:$0xf] %v416
              $region121: #{custom-call.23} parent=115 // loop_footer
                %s413 = sadd.s32 1, %s409
              $region122: #{custom-call.23} parent=115 // loop_footer_branch
                %408 = sbr.rel target = $region118
              $region123: #{custom-call.23} parent=115 // loop_exit
                _
            $region116: #{custom-call.23} parent=107 // pred_fallthru
              _
          $region108: #{custom-call.23} parent=103 // pred_fallthru
            _
          %431 = vnop
        $region104: #{custom-call.23} parent=53 // pred_fallthru
          _
      $region54: #{custom-call.23} parent=5 // pred_fallthru
        _
      %p432 = scmp.le.s32.totalorder 2, %s9
      // Predicated region
      $region135: #{custom-call.23} parent=5 // pred_check
        %p433 = pneg %p432
      $region136: #{custom-call.23} parent=5 // pred_check_branch
        %435 = sbr.rel (%p433) target = $region138
      $region137: #{custom-call.23} parent=5 // pred_region
        %s436 = ssub.s32 %s9, 2
        %s437 = sand.u32 %s15, 1
        %s438 = sand.u32 %s15, 1
        %s439 = smul.addr %s438, 8
        %s440 = scalar_lea.vmem [#allocation1], %s439
        // Predicated region
        $region139: #{custom-call.23} parent=137 // pred_check
          %p441 = pneg %p40
        $region140: #{custom-call.23} parent=137 // pred_check_branch
          %443 = sbr.rel (%p441) target = $region142
        $region141: #{custom-call.23} parent=137 // pred_region
          %s444 = sand.u32 %s25, 1
          %s445 = scalar_lea.sflag [#allocation4], %s444
          %s446 = sand.u32 %s25, 1
          %s447 = smul.addr %s446, 4
          %s448 = scalar_lea.vmem [#allocation3], %s447
          %449 = dma.done %s445, 64
        $region142: #{custom-call.23} parent=137 // pred_fallthru
          _
        // Predicated region
        $region143: #{custom-call.23} parent=137 // pred_check
          %p450 = pneg %p68
        $region144: #{custom-call.23} parent=137 // pred_check_branch
          %452 = sbr.rel (%p450) target = $region146
        $region145: #{custom-call.23} parent=137 // pred_region
          %s453 = sand.u32 %s53, 1
          %s454 = sand.u32 %s53, 1
          %s455 = smul.addr %s454, 4
          %s456 = scalar_lea.vmem [#allocation6], %s455
        $region146: #{custom-call.23} parent=137 // pred_fallthru
          _
      $region138: #{custom-call.23} parent=5 // pred_fallthru
        _
    $region6: #{custom-call.23} parent=1 // loop_footer
      %s13 = sadd.s32 1, %s9
    $region7: #{custom-call.23} parent=1 // loop_footer_branch
      %8 = sbr.rel target = $region3
    $region8: #{custom-call.23} parent=1 // loop_exit
      _
    %457 = vsyncpa [#allocation4], 1
    %s458 = scalar_lea.sflag [#allocation4], 1
    %459 = vsyncpa %s458, 1

// kernel: custom-call.14
$region0: #{custom-call.14}
  %s0 = inlined_call_operand.vmem [shape: f32[4,1,8,8], index: 0, kind: input, shape index: {}]
  %s1 = inlined_call_operand.vmem [shape: f32[4,1,8,8], index: 1, kind: output, shape index: {}]
  $region1: #{custom-call.14} parent=0
    #allocation0 [shape = 'u8[8192]{0}', space=vmem, size = 0x2000, scoped, tag = 'operand span for operand 0']
    #allocation1 [shape = 'u8[8192]{0}', space=vmem, size = 0x2000, scoped, tag = 'operand span for operand 1']
    loop: start=0, step=1, limit=6
    $region2: #{custom-call.14} parent=1 // loop_pre_header
      _
    $region3: #{custom-call.14} parent=1 // loop_header
      %s3 = sphi 0, %s7
      %p4 = scmp.ge.s32.totalorder %s3, 6
      %s10 = sphi 0, %s36
      %s11 = sphi 0, %s32
      %s12 = sphi 0, %s28
      %s13 = sphi 0, %s24
      %s14 = sphi 0, %s10
      %s15 = sphi 0, %s11
      %s16 = sphi 0, %s12
      %s17 = sphi 0, %s13
      %s18 = sphi 0, %s14
      %s19 = sphi 0, %s15
      %s20 = sphi 0, %s16
      %s21 = sphi 0, %s17
    $region4: #{custom-call.14} parent=1 // loop_header_branch
      %6 = sbr.rel (%p4) target = $region8
    $region5: #{custom-call.14} parent=1 // loop_body
      %s8 = ssub.s32 %s3, 1
      %s9 = ssub.s32 %s3, 2
      %s22 = sadd.s32 1, %s13
      %p23 = scmp.ge.s32.totalorder %s22, 1
      %s24 = scalar_select %p23, 0, %s22
      %s25 = sadd.s32 1, %s12
      %s26 = scalar_select %p23, %s25, %s12
      %p27 = scmp.ge.s32.totalorder %s26, 1
      %s28 = scalar_select %p27, 0, %s26
      %s29 = sadd.s32 1, %s11
      %s30 = scalar_select %p27, %s29, %s11
      %p31 = scmp.ge.s32.totalorder %s30, 1
      %s32 = scalar_select %p31, 0, %s30
      %s33 = sadd.s32 1, %s10
      %s34 = scalar_select %p31, %s33, %s10
      %p35 = scmp.ge.s32.totalorder %s34, 4
      %s36 = scalar_select %p35, 0, %s34
      %p37 = scmp.le.s32.totalorder 1, %s3
      %p38 = scmp.lt.s32.totalorder %s3, 5
      %p39 = pnand %p37, %p38
      %p40 = pneg %p39
      // Predicated region
      $region9: #{custom-call.14} parent=5 // pred_check
        _
      $region10: #{custom-call.14} parent=5 // pred_check_branch
        %42 = sbr.rel (%p39) target = $region12
      $region11: #{custom-call.14} parent=5 // pred_region
        %s43 = ssub.s32 %s3, 1
      $region12: #{custom-call.14} parent=5 // pred_fallthru
        _
      %p44 = scmp.lt.s32.totalorder %s3, 4
      // Predicated region
      $region13: #{custom-call.14} parent=5 // pred_check
        %p45 = pneg %p44
      $region14: #{custom-call.14} parent=5 // pred_check_branch
        %47 = sbr.rel (%p45) target = $region16
      $region15: #{custom-call.14} parent=5 // pred_region
        %s48 = sand.u32 %s3, 1
        %s49 = sand.u32 %s3, 1
        %s50 = smul.addr %s49, 8
        %s51 = scalar_lea.vmem [#allocation0], %s50
        %s52 = sadd.s32 %s13, %s12
        %s53 = sadd.s32 %s52, %s11
        %s54 = sadd.s32 %s53, %s10
        %s55 = smul.addr %s54, 8
        %s56 = scalar_lea.vmem %s0, %s55
        // Predicated region
        $region17: #{custom-call.14} parent=15 // pred_check
          _
        $region18: #{custom-call.14} parent=15 // pred_check_branch
          %58 = sbr.rel (0) target = $region20
        $region19: #{custom-call.14} parent=15 // pred_region
          // Predicated region
          $region21: #{custom-call.14} parent=19 // pred_check
            _
          $region22: #{custom-call.14} parent=19 // pred_check_branch
            %60 = sbr.rel (0) target = $region24
          $region23: #{custom-call.14} parent=19 // pred_region
            // Predicated region
            $region36: #{custom-call.14} parent=23 // pred_check
              _
            $region37: #{custom-call.14} parent=23 // pred_check_branch
              %75 = sbr.rel (0) target = $region39
            $region38: #{custom-call.14} parent=23 // pred_region
              loop: start=0, step=1, limit=1
              $region40: #{custom-call.14} parent=38 // loop_pre_header
                _
              $region41: #{custom-call.14} parent=38 // loop_header
                %s77 = sphi 0, %s81
                %p78 = scmp.ge.s32.totalorder %s77, 1
                %s82 = sphi %s56, %s56
                %s83 = sphi %s51, %s51
              $region42: #{custom-call.14} parent=38 // loop_header_branch
                %80 = sbr.rel (%p78) target = $region46
              $region43: #{custom-call.14} parent=38 // loop_body
                %v84 = vld [vmem:[%s82] sm:$0xff]
                %85 = vst [vmem:[%s83] sm:$0xff] %v84
              $region44: #{custom-call.14} parent=38 // loop_footer
                %s81 = sadd.s32 1, %s77
              $region45: #{custom-call.14} parent=38 // loop_footer_branch
                %76 = sbr.rel target = $region41
              $region46: #{custom-call.14} parent=38 // loop_exit
                _
            $region39: #{custom-call.14} parent=23 // pred_fallthru
              _
            // Predicated region
            $region47: #{custom-call.14} parent=23 // pred_check
              _
            $region48: #{custom-call.14} parent=23 // pred_check_branch
              %87 = sbr.rel target = $region50
            $region49: #{custom-call.14} parent=23 // pred_region
              _
            $region50: #{custom-call.14} parent=23 // pred_fallthru
              _
          $region24: #{custom-call.14} parent=19 // pred_fallthru
            _
          // Predicated region
          $region25: #{custom-call.14} parent=19 // pred_check
            _
          $region26: #{custom-call.14} parent=19 // pred_check_branch
            %62 = sbr.rel target = $region28
          $region27: #{custom-call.14} parent=19 // pred_region
            loop: start=0, step=1, limit=1
            $region29: #{custom-call.14} parent=27 // loop_pre_header
              _
            $region30: #{custom-call.14} parent=27 // loop_header
              %s65 = sphi 0, %s69
              %p66 = scmp.ge.s32.totalorder %s65, 1
              %s70 = sphi %s56, %s56
              %s71 = sphi %s51, %s51
            $region31: #{custom-call.14} parent=27 // loop_header_branch
              %68 = sbr.rel (%p66) target = $region35
            $region32: #{custom-call.14} parent=27 // loop_body
              %v72 = vld [vmem:[%s70] sm:$0xff]
              %73 = vst [vmem:[%s71] sm:$0xff] %v72
            $region33: #{custom-call.14} parent=27 // loop_footer
              %s69 = sadd.s32 1, %s65
            $region34: #{custom-call.14} parent=27 // loop_footer_branch
              %64 = sbr.rel target = $region30
            $region35: #{custom-call.14} parent=27 // loop_exit
              _
          $region28: #{custom-call.14} parent=19 // pred_fallthru
            _
        $region20: #{custom-call.14} parent=15 // pred_fallthru
          _
        %88 = vnop
      $region16: #{custom-call.14} parent=5 // pred_fallthru
        _
      %p89 = scmp.le.s32.totalorder 1, %s3
      %p90 = scmp.lt.s32.totalorder %s3, 5
      %p91 = pnand %p89, %p90
      %p92 = pneg %p91
      // Predicated region
      $region51: #{custom-call.14} parent=5 // pred_check
        _
      $region52: #{custom-call.14} parent=5 // pred_check_branch
        %94 = sbr.rel (%p91) target = $region54
      $region53: #{custom-call.14} parent=5 // pred_region
        #allocation2 [shape = 'f32[8,8]{1,0}', space=vmem, size = 0x1000, scoped, tag = 'rescaled input a']
        %s95 = ssub.s32 %s3, 1
        %s96 = sand.u32 %s8, 1
        %s97 = sand.u32 %s8, 1
        %s98 = smul.addr %s97, 8
        %s99 = scalar_lea.vmem [#allocation0], %s98
        %s100 = sand.u32 %s8, 1
        %s101 = sand.u32 %s8, 1
        %s102 = smul.addr %s101, 8
        %s103 = scalar_lea.vmem [#allocation0], %s102
        %s104 = sand.u32 %s8, 1
        %s105 = sand.u32 %s8, 1
        %s106 = smul.addr %s105, 8
        %s107 = scalar_lea.vmem [#allocation1], %s106
        %v108 = vlaneseq
        %v109 = vand.u32 %v108, 127
        %vm110 = vcmp.lt.s32.totalorder %v109, 8
        %v111 = vlaneseq
        %v112 = vshrl.u32 %v111, 7
        %vm114 = vcmp.eq.s32.totalorder %v112, %v109
        %v115 = vld [vmem:[%s99] sm:$0xff]
        %v116 = vsel %vm114, %v115, 0.0
        %117 = vadd.xlane.f32.xlu0 %v116
        %v118 = vpop.xlane.xlu0 %117
        %vm119 = vcmp.ge.s32.totalorder %v112, %v109
        %vm120 = vmand %vm119, %vm110
        %v121 = vsel %vm120, %v115, 0.0
        %v122 = vrcp.pop %v118
        %v123 = vmul.f32 %v121, %v122
        %124 = vst [vmem:[#allocation2] sm:$0xff] %v123
        %v125 = vlaneseq
        %v126 = vand.u32 %v125, 127
        %v127 = vlaneseq
        %v128 = vshrl.u32 %v127, 7
        %vm130 = vcmp.eq.s32.totalorder %v126, %v128
        %v131 = vlaneseq
        %v132 = vand.u32 %v131, 127
        %vm133 = vcmp.eq.s32.totalorder %v132, 0
        %v134 = vsel %vm133, 1.0, -1.0
        %v135 = vsel %vm130, %v134, 0.0
        %s136 = scalar_lea.vmem [#allocation2], 1
        %v137 = vld [vmem:[%s136] ss:$0 sm:$0xff]
        %v138 = vxor.u32 %v137, 2147483648
        %v139 = vlaneseq
        %v140 = vand.u32 %v139, 127
        %vm141 = vcmp.eq.s32.totalorder %v140, 1
        %v142 = vmul.f32 %v138, %v135
        %143 = vadd.xlane.f32.xlu0 %v142
        %v144 = vpop.xlane.xlu0 %143
        %v145 = vsel %vm141, %v144, %v135
        %s146 = scalar_lea.vmem [#allocation2], 2
        %v147 = vld [vmem:[%s146] ss:$0 sm:$0xff]
        %v148 = vxor.u32 %v147, 2147483648
        %v149 = vlaneseq
        %v150 = vand.u32 %v149, 127
        %vm151 = vcmp.eq.s32.totalorder %v150, 2
        %v152 = vmul.f32 %v148, %v145
        %153 = vadd.xlane.f32.xlu0 %v152
        %v154 = vpop.xlane.xlu0 %153
        %v155 = vsel %vm151, %v154, %v145
        %s156 = scalar_lea.vmem [#allocation2], 3
        %v157 = vld [vmem:[%s156] ss:$0 sm:$0xff]
        %v158 = vxor.u32 %v157, 2147483648
        %v159 = vlaneseq
        %v160 = vand.u32 %v159, 127
        %vm161 = vcmp.eq.s32.totalorder %v160, 3
        %v162 = vmul.f32 %v158, %v155
        %163 = vadd.xlane.f32.xlu0 %v162
        %v164 = vpop.xlane.xlu0 %163
        %v165 = vsel %vm161, %v164, %v155
        %s166 = scalar_lea.vmem [#allocation2], 4
        %v167 = vld [vmem:[%s166] ss:$0 sm:$0xff]
        %v168 = vxor.u32 %v167, 2147483648
        %v169 = vlaneseq
        %v170 = vand.u32 %v169, 127
        %vm171 = vcmp.eq.s32.totalorder %v170, 4
        %v172 = vmul.f32 %v168, %v165
        %173 = vadd.xlane.f32.xlu0 %v172
        %v174 = vpop.xlane.xlu0 %173
        %v175 = vsel %vm171, %v174, %v165
        %s176 = scalar_lea.vmem [#allocation2], 5
        %v177 = vld [vmem:[%s176] ss:$0 sm:$0xff]
        %v178 = vxor.u32 %v177, 2147483648
        %v179 = vlaneseq
        %v180 = vand.u32 %v179, 127
        %vm181 = vcmp.eq.s32.totalorder %v180, 5
        %v182 = vmul.f32 %v178, %v175
        %183 = vadd.xlane.f32.xlu0 %v182
        %v184 = vpop.xlane.xlu0 %183
        %v185 = vsel %vm181, %v184, %v175
        %s186 = scalar_lea.vmem [#allocation2], 6
        %v187 = vld [vmem:[%s186] ss:$0 sm:$0xff]
        %v188 = vxor.u32 %v187, 2147483648
        %v189 = vlaneseq
        %v190 = vand.u32 %v189, 127
        %vm191 = vcmp.eq.s32.totalorder %v190, 6
        %v192 = vmul.f32 %v188, %v185
        %193 = vadd.xlane.f32.xlu0 %v192
        %v194 = vpop.xlane.xlu0 %193
        %v195 = vsel %vm191, %v194, %v185
        %s196 = scalar_lea.vmem [#allocation2], 7
        %v197 = vld [vmem:[%s196] ss:$0 sm:$0xff]
        %v198 = vxor.u32 %v197, 2147483648
        %v199 = vlaneseq
        %v200 = vand.u32 %v199, 127
        %vm201 = vcmp.eq.s32.totalorder %v200, 7
        %v202 = vmul.f32 %v198, %v195
        %203 = vadd.xlane.f32.xlu0 %v202
        %v204 = vpop.xlane.xlu0 %203
        %v205 = vsel %vm201, %v204, %v195
        %v206 = vrcp.pop %v118
        %v207 = vmul.f32 %v205, %v206
        %vm208 = vweird.f32 %v118
        %v209 = vsel %vm208, %v205, %v207
        %210 = vst [vmem:[%s107] sm:$0xff] %v209
        %s211 = sand.u32 %s8, 1
        %s212 = sand.u32 %s8, 1
        %s213 = smul.addr %s212, 8
        %s214 = scalar_lea.vmem [#allocation1], %s213
        %s215 = sadd.s32 %s17, %s16
        %s216 = sadd.s32 %s215, %s15
        %s217 = sadd.s32 %s216, %s14
        %s218 = smul.addr %s217, 8
        %s219 = scalar_lea.vmem %s1, %s218
        // Predicated region
        $region55: #{custom-call.14} parent=53 // pred_check
          _
        $region56: #{custom-call.14} parent=53 // pred_check_branch
          %221 = sbr.rel (0) target = $region58
        $region57: #{custom-call.14} parent=53 // pred_region
          // Predicated region
          $region59: #{custom-call.14} parent=57 // pred_check
            _
          $region60: #{custom-call.14} parent=57 // pred_check_branch
            %223 = sbr.rel (0) target = $region62
          $region61: #{custom-call.14} parent=57 // pred_region
            // Predicated region
            $region74: #{custom-call.14} parent=61 // pred_check
              _
            $region75: #{custom-call.14} parent=61 // pred_check_branch
              %238 = sbr.rel (0) target = $region77
            $region76: #{custom-call.14} parent=61 // pred_region
              loop: start=0, step=1, limit=1
              $region78: #{custom-call.14} parent=76 // loop_pre_header
                _
              $region79: #{custom-call.14} parent=76 // loop_header
                %s240 = sphi 0, %s244
                %p241 = scmp.ge.s32.totalorder %s240, 1
                %s245 = sphi %s214, %s214
                %s246 = sphi %s219, %s219
              $region80: #{custom-call.14} parent=76 // loop_header_branch
                %243 = sbr.rel (%p241) target = $region84
              $region81: #{custom-call.14} parent=76 // loop_body
                %v247 = vld [vmem:[%s245] sm:$0xff]
                %248 = vst [vmem:[%s246] sm:$0xff] %v247
              $region82: #{custom-call.14} parent=76 // loop_footer
                %s244 = sadd.s32 1, %s240
              $region83: #{custom-call.14} parent=76 // loop_footer_branch
                %239 = sbr.rel target = $region79
              $region84: #{custom-call.14} parent=76 // loop_exit
                _
            $region77: #{custom-call.14} parent=61 // pred_fallthru
              _
            // Predicated region
            $region85: #{custom-call.14} parent=61 // pred_check
              _
            $region86: #{custom-call.14} parent=61 // pred_check_branch
              %250 = sbr.rel target = $region88
            $region87: #{custom-call.14} parent=61 // pred_region
              _
            $region88: #{custom-call.14} parent=61 // pred_fallthru
              _
          $region62: #{custom-call.14} parent=57 // pred_fallthru
            _
          // Predicated region
          $region63: #{custom-call.14} parent=57 // pred_check
            _
          $region64: #{custom-call.14} parent=57 // pred_check_branch
            %225 = sbr.rel target = $region66
          $region65: #{custom-call.14} parent=57 // pred_region
            loop: start=0, step=1, limit=1
            $region67: #{custom-call.14} parent=65 // loop_pre_header
              _
            $region68: #{custom-call.14} parent=65 // loop_header
              %s228 = sphi 0, %s232
              %p229 = scmp.ge.s32.totalorder %s228, 1
              %s233 = sphi %s214, %s214
              %s234 = sphi %s219, %s219
            $region69: #{custom-call.14} parent=65 // loop_header_branch
              %231 = sbr.rel (%p229) target = $region73
            $region70: #{custom-call.14} parent=65 // loop_body
              %v235 = vld [vmem:[%s233] sm:$0xff]
              %236 = vst [vmem:[%s234] sm:$0xff] %v235
            $region71: #{custom-call.14} parent=65 // loop_footer
              %s232 = sadd.s32 1, %s228
            $region72: #{custom-call.14} parent=65 // loop_footer_branch
              %227 = sbr.rel target = $region68
            $region73: #{custom-call.14} parent=65 // loop_exit
              _
          $region66: #{custom-call.14} parent=57 // pred_fallthru
            _
        $region58: #{custom-call.14} parent=53 // pred_fallthru
          _
        %251 = vnop
      $region54: #{custom-call.14} parent=5 // pred_fallthru
        _
      %p252 = scmp.le.s32.totalorder 2, %s3
      // Predicated region
      $region89: #{custom-call.14} parent=5 // pred_check
        %p253 = pneg %p252
      $region90: #{custom-call.14} parent=5 // pred_check_branch
        %255 = sbr.rel (%p253) target = $region92
      $region91: #{custom-call.14} parent=5 // pred_region
        %s256 = ssub.s32 %s3, 2
        %s257 = sand.u32 %s9, 1
        %s258 = sand.u32 %s9, 1
        %s259 = smul.addr %s258, 8
        %s260 = scalar_lea.vmem [#allocation1], %s259
      $region92: #{custom-call.14} parent=5 // pred_fallthru
        _
    $region6: #{custom-call.14} parent=1 // loop_footer
      %s7 = sadd.s32 1, %s3
    $region7: #{custom-call.14} parent=1 // loop_footer_branch
      %2 = sbr.rel target = $region3
    $region8: #{custom-call.14} parent=1 // loop_exit
      _

// kernel: custom-call.13
$region0: #{custom-call.13}
  %s0 = inlined_call_operand.vmem [shape: f32[4,1,8,8], index: 0, kind: input, shape index: {}]
  %s1 = inlined_call_operand.vmem [shape: f32[4,1,8,8], index: 1, kind: output, shape index: {}]
  $region1: #{custom-call.13} parent=0
    #allocation0 [shape = 'u8[8192]{0}', space=vmem, size = 0x2000, scoped, tag = 'operand span for operand 0']
    #allocation1 [shape = 'u8[8192]{0}', space=vmem, size = 0x2000, scoped, tag = 'operand span for operand 1']
    loop: start=0, step=1, limit=6
    $region2: #{custom-call.13} parent=1 // loop_pre_header
      _
    $region3: #{custom-call.13} parent=1 // loop_header
      %s3 = sphi 0, %s7
      %p4 = scmp.ge.s32.totalorder %s3, 6
      %s10 = sphi 0, %s36
      %s11 = sphi 0, %s32
      %s12 = sphi 0, %s28
      %s13 = sphi 0, %s24
      %s14 = sphi 0, %s10
      %s15 = sphi 0, %s11
      %s16 = sphi 0, %s12
      %s17 = sphi 0, %s13
      %s18 = sphi 0, %s14
      %s19 = sphi 0, %s15
      %s20 = sphi 0, %s16
      %s21 = sphi 0, %s17
    $region4: #{custom-call.13} parent=1 // loop_header_branch
      %6 = sbr.rel (%p4) target = $region8
    $region5: #{custom-call.13} parent=1 // loop_body
      %s8 = ssub.s32 %s3, 1
      %s9 = ssub.s32 %s3, 2
      %s22 = sadd.s32 1, %s13
      %p23 = scmp.ge.s32.totalorder %s22, 1
      %s24 = scalar_select %p23, 0, %s22
      %s25 = sadd.s32 1, %s12
      %s26 = scalar_select %p23, %s25, %s12
      %p27 = scmp.ge.s32.totalorder %s26, 1
      %s28 = scalar_select %p27, 0, %s26
      %s29 = sadd.s32 1, %s11
      %s30 = scalar_select %p27, %s29, %s11
      %p31 = scmp.ge.s32.totalorder %s30, 1
      %s32 = scalar_select %p31, 0, %s30
      %s33 = sadd.s32 1, %s10
      %s34 = scalar_select %p31, %s33, %s10
      %p35 = scmp.ge.s32.totalorder %s34, 4
      %s36 = scalar_select %p35, 0, %s34
      %p37 = scmp.le.s32.totalorder 1, %s3
      %p38 = scmp.lt.s32.totalorder %s3, 5
      %p39 = pnand %p37, %p38
      %p40 = pneg %p39
      // Predicated region
      $region9: #{custom-call.13} parent=5 // pred_check
        _
      $region10: #{custom-call.13} parent=5 // pred_check_branch
        %42 = sbr.rel (%p39) target = $region12
      $region11: #{custom-call.13} parent=5 // pred_region
        %s43 = ssub.s32 %s3, 1
      $region12: #{custom-call.13} parent=5 // pred_fallthru
        _
      %p44 = scmp.lt.s32.totalorder %s3, 4
      // Predicated region
      $region13: #{custom-call.13} parent=5 // pred_check
        %p45 = pneg %p44
      $region14: #{custom-call.13} parent=5 // pred_check_branch
        %47 = sbr.rel (%p45) target = $region16
      $region15: #{custom-call.13} parent=5 // pred_region
        %s48 = sand.u32 %s3, 1
        %s49 = sand.u32 %s3, 1
        %s50 = smul.addr %s49, 8
        %s51 = scalar_lea.vmem [#allocation0], %s50
        %s52 = sadd.s32 %s13, %s12
        %s53 = sadd.s32 %s52, %s11
        %s54 = sadd.s32 %s53, %s10
        %s55 = smul.addr %s54, 8
        %s56 = scalar_lea.vmem %s0, %s55
        // Predicated region
        $region17: #{custom-call.13} parent=15 // pred_check
          _
        $region18: #{custom-call.13} parent=15 // pred_check_branch
          %58 = sbr.rel (0) target = $region20
        $region19: #{custom-call.13} parent=15 // pred_region
          // Predicated region
          $region21: #{custom-call.13} parent=19 // pred_check
            _
          $region22: #{custom-call.13} parent=19 // pred_check_branch
            %60 = sbr.rel (0) target = $region24
          $region23: #{custom-call.13} parent=19 // pred_region
            // Predicated region
            $region36: #{custom-call.13} parent=23 // pred_check
              _
            $region37: #{custom-call.13} parent=23 // pred_check_branch
              %75 = sbr.rel (0) target = $region39
            $region38: #{custom-call.13} parent=23 // pred_region
              loop: start=0, step=1, limit=1
              $region40: #{custom-call.13} parent=38 // loop_pre_header
                _
              $region41: #{custom-call.13} parent=38 // loop_header
                %s77 = sphi 0, %s81
                %p78 = scmp.ge.s32.totalorder %s77, 1
                %s82 = sphi %s56, %s56
                %s83 = sphi %s51, %s51
              $region42: #{custom-call.13} parent=38 // loop_header_branch
                %80 = sbr.rel (%p78) target = $region46
              $region43: #{custom-call.13} parent=38 // loop_body
                %v84 = vld [vmem:[%s82] sm:$0xff]
                %85 = vst [vmem:[%s83] sm:$0xff] %v84
              $region44: #{custom-call.13} parent=38 // loop_footer
                %s81 = sadd.s32 1, %s77
              $region45: #{custom-call.13} parent=38 // loop_footer_branch
                %76 = sbr.rel target = $region41
              $region46: #{custom-call.13} parent=38 // loop_exit
                _
            $region39: #{custom-call.13} parent=23 // pred_fallthru
              _
            // Predicated region
            $region47: #{custom-call.13} parent=23 // pred_check
              _
            $region48: #{custom-call.13} parent=23 // pred_check_branch
              %87 = sbr.rel target = $region50
            $region49: #{custom-call.13} parent=23 // pred_region
              _
            $region50: #{custom-call.13} parent=23 // pred_fallthru
              _
          $region24: #{custom-call.13} parent=19 // pred_fallthru
            _
          // Predicated region
          $region25: #{custom-call.13} parent=19 // pred_check
            _
          $region26: #{custom-call.13} parent=19 // pred_check_branch
            %62 = sbr.rel target = $region28
          $region27: #{custom-call.13} parent=19 // pred_region
            loop: start=0, step=1, limit=1
            $region29: #{custom-call.13} parent=27 // loop_pre_header
              _
            $region30: #{custom-call.13} parent=27 // loop_header
              %s65 = sphi 0, %s69
              %p66 = scmp.ge.s32.totalorder %s65, 1
              %s70 = sphi %s56, %s56
              %s71 = sphi %s51, %s51
            $region31: #{custom-call.13} parent=27 // loop_header_branch
              %68 = sbr.rel (%p66) target = $region35
            $region32: #{custom-call.13} parent=27 // loop_body
              %v72 = vld [vmem:[%s70] sm:$0xff]
              %73 = vst [vmem:[%s71] sm:$0xff] %v72
            $region33: #{custom-call.13} parent=27 // loop_footer
              %s69 = sadd.s32 1, %s65
            $region34: #{custom-call.13} parent=27 // loop_footer_branch
              %64 = sbr.rel target = $region30
            $region35: #{custom-call.13} parent=27 // loop_exit
              _
          $region28: #{custom-call.13} parent=19 // pred_fallthru
            _
        $region20: #{custom-call.13} parent=15 // pred_fallthru
          _
        %88 = vnop
      $region16: #{custom-call.13} parent=5 // pred_fallthru
        _
      %p89 = scmp.le.s32.totalorder 1, %s3
      %p90 = scmp.lt.s32.totalorder %s3, 5
      %p91 = pnand %p89, %p90
      %p92 = pneg %p91
      // Predicated region
      $region51: #{custom-call.13} parent=5 // pred_check
        _
      $region52: #{custom-call.13} parent=5 // pred_check_branch
        %94 = sbr.rel (%p91) target = $region54
      $region53: #{custom-call.13} parent=5 // pred_region
        #allocation2 [shape = 'f32[8,8]{1,0}', space=vmem, size = 0x1000, scoped, tag = 'rescaled input a']
        %s95 = ssub.s32 %s3, 1
        %s96 = sand.u32 %s8, 1
        %s97 = sand.u32 %s8, 1
        %s98 = smul.addr %s97, 8
        %s99 = scalar_lea.vmem [#allocation0], %s98
        %s100 = sand.u32 %s8, 1
        %s101 = sand.u32 %s8, 1
        %s102 = smul.addr %s101, 8
        %s103 = scalar_lea.vmem [#allocation0], %s102
        %s104 = sand.u32 %s8, 1
        %s105 = sand.u32 %s8, 1
        %s106 = smul.addr %s105, 8
        %s107 = scalar_lea.vmem [#allocation1], %s106
        %v108 = vlaneseq
        %v109 = vand.u32 %v108, 127
        %vm110 = vcmp.lt.s32.totalorder %v109, 8
        %v111 = vlaneseq
        %v112 = vshrl.u32 %v111, 7
        %vm114 = vcmp.eq.s32.totalorder %v112, %v109
        %v115 = vld [vmem:[%s99] sm:$0xff]
        %v116 = vsel %vm114, %v115, 0.0
        %117 = vadd.xlane.f32.xlu0 %v116
        %v118 = vpop.xlane.xlu0 %117
        %vm119 = vcmp.le.s32.totalorder %v112, %v109
        %vm120 = vmand %vm119, %vm110
        %v121 = vsel %vm120, %v115, 0.0
        %v122 = vrcp.pop %v118
        %v123 = vmul.f32 %v121, %v122
        %124 = vst [vmem:[#allocation2] sm:$0xff] %v123
        %v125 = vlaneseq
        %v126 = vand.u32 %v125, 127
        %v127 = vlaneseq
        %v128 = vshrl.u32 %v127, 7
        %vm130 = vcmp.eq.s32.totalorder %v126, %v128
        %v131 = vlaneseq
        %v132 = vand.u32 %v131, 127
        %vm133 = vcmp.eq.s32.totalorder %v132, 7
        %v134 = vsel %vm133, 1.0, -1.0
        %v135 = vsel %vm130, %v134, 0.0
        %s136 = scalar_lea.vmem [#allocation2], 6
        %v137 = vld [vmem:[%s136] ss:$0 sm:$0xff]
        %v138 = vxor.u32 %v137, 2147483648
        %v139 = vlaneseq
        %v140 = vand.u32 %v139, 127
        %vm141 = vcmp.eq.s32.totalorder %v140, 6
        %v142 = vmul.f32 %v138, %v135
        %143 = vadd.xlane.f32.xlu0 %v142
        %v144 = vpop.xlane.xlu0 %143
        %v145 = vsel %vm141, %v144, %v135
        %s146 = scalar_lea.vmem [#allocation2], 5
        %v147 = vld [vmem:[%s146] ss:$0 sm:$0xff]
        %v148 = vxor.u32 %v147, 2147483648
        %v149 = vlaneseq
        %v150 = vand.u32 %v149, 127
        %vm151 = vcmp.eq.s32.totalorder %v150, 5
        %v152 = vmul.f32 %v148, %v145
        %153 = vadd.xlane.f32.xlu0 %v152
        %v154 = vpop.xlane.xlu0 %153
        %v155 = vsel %vm151, %v154, %v145
        %s156 = scalar_lea.vmem [#allocation2], 4
        %v157 = vld [vmem:[%s156] ss:$0 sm:$0xff]
        %v158 = vxor.u32 %v157, 2147483648
        %v159 = vlaneseq
        %v160 = vand.u32 %v159, 127
        %vm161 = vcmp.eq.s32.totalorder %v160, 4
        %v162 = vmul.f32 %v158, %v155
        %163 = vadd.xlane.f32.xlu0 %v162
        %v164 = vpop.xlane.xlu0 %163
        %v165 = vsel %vm161, %v164, %v155
        %s166 = scalar_lea.vmem [#allocation2], 3
        %v167 = vld [vmem:[%s166] ss:$0 sm:$0xff]
        %v168 = vxor.u32 %v167, 2147483648
        %v169 = vlaneseq
        %v170 = vand.u32 %v169, 127
        %vm171 = vcmp.eq.s32.totalorder %v170, 3
        %v172 = vmul.f32 %v168, %v165
        %173 = vadd.xlane.f32.xlu0 %v172
        %v174 = vpop.xlane.xlu0 %173
        %v175 = vsel %vm171, %v174, %v165
        %s176 = scalar_lea.vmem [#allocation2], 2
        %v177 = vld [vmem:[%s176] ss:$0 sm:$0xff]
        %v178 = vxor.u32 %v177, 2147483648
        %v179 = vlaneseq
        %v180 = vand.u32 %v179, 127
        %vm181 = vcmp.eq.s32.totalorder %v180, 2
        %v182 = vmul.f32 %v178, %v175
        %183 = vadd.xlane.f32.xlu0 %v182
        %v184 = vpop.xlane.xlu0 %183
        %v185 = vsel %vm181, %v184, %v175
        %s186 = scalar_lea.vmem [#allocation2], 1
        %v187 = vld [vmem:[%s186] ss:$0 sm:$0xff]
        %v188 = vxor.u32 %v187, 2147483648
        %v189 = vlaneseq
        %v190 = vand.u32 %v189, 127
        %vm191 = vcmp.eq.s32.totalorder %v190, 1
        %v192 = vmul.f32 %v188, %v185
        %193 = vadd.xlane.f32.xlu0 %v192
        %v194 = vpop.xlane.xlu0 %193
        %v195 = vsel %vm191, %v194, %v185
        %v196 = vld [vmem:[#allocation2] ss:$0 sm:$0xff]
        %v197 = vxor.u32 %v196, 2147483648
        %v198 = vlaneseq
        %v199 = vand.u32 %v198, 127
        %vm200 = vcmp.eq.s32.totalorder %v199, 0
        %v201 = vmul.f32 %v197, %v195
        %202 = vadd.xlane.f32.xlu0 %v201
        %v203 = vpop.xlane.xlu0 %202
        %v204 = vsel %vm200, %v203, %v195
        %v205 = vrcp.pop %v118
        %v206 = vmul.f32 %v204, %v205
        %vm207 = vweird.f32 %v118
        %v208 = vsel %vm207, %v204, %v206
        %209 = vst [vmem:[%s107] sm:$0xff] %v208
        %s210 = sand.u32 %s8, 1
        %s211 = sand.u32 %s8, 1
        %s212 = smul.addr %s211, 8
        %s213 = scalar_lea.vmem [#allocation1], %s212
        %s214 = sadd.s32 %s17, %s16
        %s215 = sadd.s32 %s214, %s15
        %s216 = sadd.s32 %s215, %s14
        %s217 = smul.addr %s216, 8
        %s218 = scalar_lea.vmem %s1, %s217
        // Predicated region
        $region55: #{custom-call.13} parent=53 // pred_check
          _
        $region56: #{custom-call.13} parent=53 // pred_check_branch
          %220 = sbr.rel (0) target = $region58
        $region57: #{custom-call.13} parent=53 // pred_region
          // Predicated region
          $region59: #{custom-call.13} parent=57 // pred_check
            _
          $region60: #{custom-call.13} parent=57 // pred_check_branch
            %222 = sbr.rel (0) target = $region62
          $region61: #{custom-call.13} parent=57 // pred_region
            // Predicated region
            $region74: #{custom-call.13} parent=61 // pred_check
              _
            $region75: #{custom-call.13} parent=61 // pred_check_branch
              %237 = sbr.rel (0) target = $region77
            $region76: #{custom-call.13} parent=61 // pred_region
              loop: start=0, step=1, limit=1
              $region78: #{custom-call.13} parent=76 // loop_pre_header
                _
              $region79: #{custom-call.13} parent=76 // loop_header
                %s239 = sphi 0, %s243
                %p240 = scmp.ge.s32.totalorder %s239, 1
                %s244 = sphi %s213, %s213
                %s245 = sphi %s218, %s218
              $region80: #{custom-call.13} parent=76 // loop_header_branch
                %242 = sbr.rel (%p240) target = $region84
              $region81: #{custom-call.13} parent=76 // loop_body
                %v246 = vld [vmem:[%s244] sm:$0xff]
                %247 = vst [vmem:[%s245] sm:$0xff] %v246
              $region82: #{custom-call.13} parent=76 // loop_footer
                %s243 = sadd.s32 1, %s239
              $region83: #{custom-call.13} parent=76 // loop_footer_branch
                %238 = sbr.rel target = $region79
              $region84: #{custom-call.13} parent=76 // loop_exit
                _
            $region77: #{custom-call.13} parent=61 // pred_fallthru
              _
            // Predicated region
            $region85: #{custom-call.13} parent=61 // pred_check
              _
            $region86: #{custom-call.13} parent=61 // pred_check_branch
              %249 = sbr.rel target = $region88
            $region87: #{custom-call.13} parent=61 // pred_region
              _
            $region88: #{custom-call.13} parent=61 // pred_fallthru
              _
          $region62: #{custom-call.13} parent=57 // pred_fallthru
            _
          // Predicated region
          $region63: #{custom-call.13} parent=57 // pred_check
            _
          $region64: #{custom-call.13} parent=57 // pred_check_branch
            %224 = sbr.rel target = $region66
          $region65: #{custom-call.13} parent=57 // pred_region
            loop: start=0, step=1, limit=1
            $region67: #{custom-call.13} parent=65 // loop_pre_header
              _
            $region68: #{custom-call.13} parent=65 // loop_header
              %s227 = sphi 0, %s231
              %p228 = scmp.ge.s32.totalorder %s227, 1
              %s232 = sphi %s213, %s213
              %s233 = sphi %s218, %s218
            $region69: #{custom-call.13} parent=65 // loop_header_branch
              %230 = sbr.rel (%p228) target = $region73
            $region70: #{custom-call.13} parent=65 // loop_body
              %v234 = vld [vmem:[%s232] sm:$0xff]
              %235 = vst [vmem:[%s233] sm:$0xff] %v234
            $region71: #{custom-call.13} parent=65 // loop_footer
              %s231 = sadd.s32 1, %s227
            $region72: #{custom-call.13} parent=65 // loop_footer_branch
              %226 = sbr.rel target = $region68
            $region73: #{custom-call.13} parent=65 // loop_exit
              _
          $region66: #{custom-call.13} parent=57 // pred_fallthru
            _
        $region58: #{custom-call.13} parent=53 // pred_fallthru
          _
        %250 = vnop
      $region54: #{custom-call.13} parent=5 // pred_fallthru
        _
      %p251 = scmp.le.s32.totalorder 2, %s3
      // Predicated region
      $region89: #{custom-call.13} parent=5 // pred_check
        %p252 = pneg %p251
      $region90: #{custom-call.13} parent=5 // pred_check_branch
        %254 = sbr.rel (%p252) target = $region92
      $region91: #{custom-call.13} parent=5 // pred_region
        %s255 = ssub.s32 %s3, 2
        %s256 = sand.u32 %s9, 1
        %s257 = sand.u32 %s9, 1
        %s258 = smul.addr %s257, 8
        %s259 = scalar_lea.vmem [#allocation1], %s258
      $region92: #{custom-call.13} parent=5 // pred_fallthru
        _
    $region6: #{custom-call.13} parent=1 // loop_footer
      %s7 = sadd.s32 1, %s3
    $region7: #{custom-call.13} parent=1 // loop_footer_branch
      %2 = sbr.rel target = $region3
    $region8: #{custom-call.13} parent=1 // loop_exit
      _

// kernel: s4d_forward.1
$region0: #{s4d_forward.1}
  #allocation0 [shape = 'u32[]', space=smem, size = 0x4, offset = 0x4, fixed_abs, tag = 'smem constant byte address 0x4 - core index']
  #allocation1 [shape = 'u32[144,128]{1,0:T(1,128)}', space=vmem, size = 0x12000, scoped, tag = 'internal scratch']
  %s0 = inlined_call_operand.vmem [shape: f32[8,8,8], index: 0, kind: input, shape index: {}]
  %s1 = inlined_call_operand.vmem [shape: f32[8,8], index: 1, kind: input, shape index: {}]
  %s2 = inlined_call_operand.vmem [shape: f32[8,8], index: 2, kind: input, shape index: {}]
  %s3 = inlined_call_operand.vmem [shape: f32[8,1], index: 3, kind: input, shape index: {}]
  %s4 = inlined_call_operand.vmem [shape: f32[8,31], index: 4, kind: input, shape index: {}]
  %s5 = inlined_call_operand.hbm [shape: f32[8,16], index: 5, kind: output, shape index: {}]
  %s6 = sld [smem:[#allocation0]]
  $region30: #{s4d_forward.1} parent=0
    _
  %s8 = ssub.s32 1, %s6
  %s9 = scalar_select 0, %s8, %s6
  $region1: #{s4d_forward.1} parent=0
    #allocation2 [shape = 'u8[4096]{0}', space=vmem, size = 0x1000, scoped, tag = 'output window, operand 0, single buffered']
    #allocation3 [shape = 's32[1]{0}', space=sflag, size = 0x4, scoped, tag = 'scoped memory for s4d_forward.1']
    %10 = vsyncpa [#allocation3], 0
    // Predicated region
    $region2: #{s4d_forward.1} parent=1 // pred_check
      _
    $region3: #{s4d_forward.1} parent=1 // pred_check_branch
      %12 = sbr.rel (0) target = $region5
    $region4: #{s4d_forward.1} parent=1 // pred_region
      _
    $region5: #{s4d_forward.1} parent=1 // pred_fallthru
      _
    // Predicated region
    $region6: #{s4d_forward.1} parent=1 // pred_check
      _
    $region7: #{s4d_forward.1} parent=1 // pred_check_branch
      %14 = sbr.rel (0) target = $region9
    $region8: #{s4d_forward.1} parent=1 // pred_region
      _
    $region9: #{s4d_forward.1} parent=1 // pred_fallthru
      _
    // Predicated region
    $region10: #{s4d_forward.1} parent=1 // pred_check
      _
    $region11: #{s4d_forward.1} parent=1 // pred_check_branch
      %16 = sbr.rel (0) target = $region13
    $region12: #{s4d_forward.1} parent=1 // pred_region
      _
    $region13: #{s4d_forward.1} parent=1 // pred_fallthru
      _
    // Predicated region
    $region14: #{s4d_forward.1} parent=1 // pred_check
      _
    $region15: #{s4d_forward.1} parent=1 // pred_check_branch
      %18 = sbr.rel (0) target = $region17
    $region16: #{s4d_forward.1} parent=1 // pred_region
      _
    $region17: #{s4d_forward.1} parent=1 // pred_fallthru
      _
    // Predicated region
    $region18: #{s4d_forward.1} parent=1 // pred_check
      _
    $region19: #{s4d_forward.1} parent=1 // pred_check_branch
      %20 = sbr.rel (0) target = $region21
    $region20: #{s4d_forward.1} parent=1 // pred_region
      _
    $region21: #{s4d_forward.1} parent=1 // pred_fallthru
      _
    %v21 = vld [vmem:[%s0] sm:$0xff]
    %v22 = vld [vmem:[%s0 + $0x8] sm:$0xff]
    %v23 = vld [vmem:[%s0 + $0x10] sm:$0xff]
    %v24 = vld [vmem:[%s0 + $0x18] sm:$0xff]
    %v25 = vld [vmem:[%s0 + $0x20] sm:$0xff]
    %v26 = vld [vmem:[%s0 + $0x28] sm:$0xff]
    %v27 = vld [vmem:[%s0 + $0x30] sm:$0xff]
    %v28 = vld [vmem:[%s0 + $0x38] sm:$0xff]
    %v29 = vld [vmem:[%s2] sm:$0xff]
    %v30 = vld [vmem:[%s1] sm:$0xff]
    %v31 = vld [vmem:[%s3] sm:$0xff]
    %v32 = vld [vmem:[%s4] sm:$0xff]
    %v33 = vmul.f32 %v29, %v30
    %vm34 = vcmask 64512
    %v35 = vsel %vm34, %v33, 0.0
    %36 = vadd.xlane.f32.xlu0 %v35
    %v37 = vpop.xlane.xlu0 %36
    %v38 = vadd.f32 %v37, %v31
    %40 = vset.pattern.permute.xlu0 0
    %41 = vperm.xlu0 %40, %v38
    %v42 = vpop.permute.xlu0 %41
    %v44 = vmul.f32 %v42, %v32
    %v45 = vadd.f32 %v44, 0.0
    %v47 = vcombine.high %v30, %v30
    %v49 = vunpack.c.l.s4 1966171168
    %v50 = vunpack.c.0.s8 %v49
    %v51 = vlaneseq
    %v52 = vshrl.u32 %v51, 7
    %v53 = vsub.s32 %v50, %v52
    %v54 = vrot.slane %v30, %v53
    %v56 = vunpack.c.l.s4 1966171168
    %v57 = vunpack.c.0.s8 %v56
    %v58 = vlaneseq
    %v59 = vshrl.u32 %v58, 7
    %v60 = vsub.s32 %v57, %v59
    %v61 = vrot.slane %v47, %v60
    %v62 = vcombine.high %v54, %v54
    %v63 = vcombine.high %v61, %v61
    %v65 = vunpack.c.l.s4 1966171168
    %v66 = vunpack.c.0.s8 %v65
    %v67 = vlaneseq
    %v68 = vshrl.u32 %v67, 7
    %v69 = vsub.s32 %v66, %v68
    %v70 = vrot.slane %v54, %v69
    %v72 = vunpack.c.l.s4 1966171168
    %v73 = vunpack.c.0.s8 %v72
    %v74 = vlaneseq
    %v75 = vshrl.u32 %v74, 7
    %v76 = vsub.s32 %v73, %v75
    %v77 = vrot.slane %v61, %v76
    %v79 = vunpack.c.l.s4 1966171168
    %v80 = vunpack.c.0.s8 %v79
    %v81 = vlaneseq
    %v82 = vshrl.u32 %v81, 7
    %v83 = vsub.s32 %v80, %v82
    %v84 = vrot.slane %v62, %v83
    %v86 = vunpack.c.l.s4 1966171168
    %v87 = vunpack.c.0.s8 %v86
    %v88 = vlaneseq
    %v89 = vshrl.u32 %v88, 7
    %v90 = vsub.s32 %v87, %v89
    %v91 = vrot.slane %v63, %v90
    %v92 = vcombine.high %v70, %v70
    %v93 = vcombine.high %v77, %v77
    %v94 = vcombine.high %v84, %v84
    %v95 = vcombine.high %v91, %v91
    %v96 = vlaneseq
    %v97 = vshrl.u32 %v96, 7
    %v98 = vsub.s32 0, %v97
    %v99 = vrot.slane %v70, %v98
    %v100 = vlaneseq
    %v101 = vshrl.u32 %v100, 7
    %v102 = vsub.s32 0, %v101
    %v103 = vrot.slane %v84, %v102
    %v104 = vlaneseq
    %v105 = vshrl.u32 %v104, 7
    %v106 = vsub.s32 0, %v105
    %v107 = vrot.slane %v92, %v106
    %v108 = vlaneseq
    %v109 = vshrl.u32 %v108, 7
    %v110 = vsub.s32 0, %v109
    %v111 = vrot.slane %v94, %v110
    %v112 = vlaneseq
    %v113 = vshrl.u32 %v112, 7
    %v114 = vsub.s32 0, %v113
    %v115 = vrot.slane %v77, %v114
    %v116 = vlaneseq
    %v117 = vshrl.u32 %v116, 7
    %v118 = vsub.s32 0, %v117
    %v119 = vrot.slane %v91, %v118
    %v120 = vlaneseq
    %v121 = vshrl.u32 %v120, 7
    %v122 = vsub.s32 0, %v121
    %v123 = vrot.slane %v93, %v122
    %v124 = vlaneseq
    %v125 = vshrl.u32 %v124, 7
    %v126 = vsub.s32 0, %v125
    %v127 = vrot.slane %v95, %v126
    %v136 = vmul.f32 %v21, %v99
    %v137 = vmul.f32 %v22, %v103
    %v138 = vmul.f32 %v23, %v107
    %v139 = vmul.f32 %v24, %v111
    %v140 = vmul.f32 %v25, %v115
    %v141 = vmul.f32 %v26, %v119
    %v142 = vmul.f32 %v27, %v123
    %v143 = vmul.f32 %v28, %v127
    %v144 = vsel %vm34, %v136, 0.0
    %145 = vadd.xlane.f32.xlu0 %v144
    %v146 = vpop.xlane.xlu0 %145
    %v147 = vsel %vm34, %v137, 0.0
    %148 = vadd.xlane.f32.xlu0 %v147
    %v149 = vpop.xlane.xlu0 %148
    %v150 = vsel %vm34, %v138, 0.0
    %151 = vadd.xlane.f32.xlu0 %v150
    %v152 = vpop.xlane.xlu0 %151
    %v153 = vsel %vm34, %v139, 0.0
    %154 = vadd.xlane.f32.xlu0 %v153
    %v155 = vpop.xlane.xlu0 %154
    %v156 = vsel %vm34, %v140, 0.0
    %157 = vadd.xlane.f32.xlu0 %v156
    %v158 = vpop.xlane.xlu0 %157
    %v159 = vsel %vm34, %v141, 0.0
    %160 = vadd.xlane.f32.xlu0 %v159
    %v161 = vpop.xlane.xlu0 %160
    %v162 = vsel %vm34, %v142, 0.0
    %163 = vadd.xlane.f32.xlu0 %v162
    %v164 = vpop.xlane.xlu0 %163
    %v165 = vsel %vm34, %v143, 0.0
    %166 = vadd.xlane.f32.xlu0 %v165
    %v167 = vpop.xlane.xlu0 %166
    %v176 = vlaneseq
    %v177 = vand.u32 %v176, 127
    %v178 = vlaneseq
    %v179 = vshrl.u32 %v178, 7
    %v180 = vsub.s32 %v177, %v179
    %v181 = vrot.slane %v146, %v180
    %v182 = vlaneseq
    %v183 = vshrl.u32 %v182, 7
    %v184 = vsub.s32 %v177, %v183
    %v185 = vrot.slane %v149, %v184
    %v186 = vlaneseq
    %v187 = vshrl.u32 %v186, 7
    %v188 = vsub.s32 %v177, %v187
    %v189 = vrot.slane %v152, %v188
    %v190 = vlaneseq
    %v191 = vshrl.u32 %v190, 7
    %v192 = vsub.s32 %v177, %v191
    %v193 = vrot.slane %v155, %v192
    %v194 = vlaneseq
    %v195 = vshrl.u32 %v194, 7
    %v196 = vsub.s32 %v177, %v195
    %v197 = vrot.slane %v158, %v196
    %v198 = vlaneseq
    %v199 = vshrl.u32 %v198, 7
    %v200 = vsub.s32 %v177, %v199
    %v201 = vrot.slane %v161, %v200
    %v202 = vlaneseq
    %v203 = vshrl.u32 %v202, 7
    %v204 = vsub.s32 %v177, %v203
    %v205 = vrot.slane %v164, %v204
    %v206 = vlaneseq
    %v207 = vshrl.u32 %v206, 7
    %v208 = vsub.s32 %v177, %v207
    %v209 = vrot.slane %v167, %v208
    %vm210 = vcmask 1041409
    %v211 = vsel %vm210, %v185, %v181
    %vm212 = vcmask 1042434
    %v213 = vsel %vm212, %v189, %v211
    %vm214 = vcmask 1043459
    %v215 = vsel %vm214, %v193, %v213
    %vm216 = vcmask 1044484
    %v217 = vsel %vm216, %v197, %v215
    %vm218 = vcmask 1045509
    %v219 = vsel %vm218, %v201, %v217
    %vm220 = vcmask 1046534
    %v221 = vsel %vm220, %v205, %v219
    %vm222 = vcmask 1047559
    %v223 = vsel %vm222, %v209, %v221
    %v225 = vmul.f32 %v29, %v223
    %v226 = vsel %vm34, %v225, 0.0
    %227 = vadd.xlane.f32.xlu0 %v226
    %v228 = vpop.xlane.xlu0 %227
    %v229 = vmul.f32 %v228, %v32
    %231 = vrot.lane.b32.xlu0 %v229, 1
    %v232 = vpop.permute.xlu0 %231
    %v234 = vadd.f32 %v45, %v232
    %v235 = vsel %vm212, %v181, %v181
    %v236 = vsel %vm214, %v181, %v235
    %v237 = vsel %vm216, %v181, %v236
    %v238 = vsel %vm218, %v181, %v237
    %v239 = vsel %vm220, %v181, %v238
    %v240 = vsel %vm222, %v181, %v239
    %v241 = vsel %vm212, %v185, %v185
    %v242 = vsel %vm214, %v185, %v241
    %v243 = vsel %vm216, %v185, %v242
    %v244 = vsel %vm218, %v185, %v243
    %v245 = vsel %vm220, %v185, %v244
    %v246 = vsel %vm222, %v185, %v245
    %v247 = vsel %vm212, %v189, %v189
    %v248 = vsel %vm214, %v189, %v247
    %v249 = vsel %vm216, %v189, %v248
    %v250 = vsel %vm218, %v189, %v249
    %v251 = vsel %vm220, %v189, %v250
    %v252 = vsel %vm222, %v189, %v251
    %v253 = vsel %vm212, %v193, %v193
    %v254 = vsel %vm214, %v193, %v253
    %v255 = vsel %vm216, %v193, %v254
    %v256 = vsel %vm218, %v193, %v255
    %v257 = vsel %vm220, %v193, %v256
    %v258 = vsel %vm222, %v193, %v257
    %v259 = vsel %vm212, %v197, %v197
    %v260 = vsel %vm214, %v197, %v259
    %v261 = vsel %vm216, %v197, %v260
    %v262 = vsel %vm218, %v197, %v261
    %v263 = vsel %vm220, %v197, %v262
    %v264 = vsel %vm222, %v197, %v263
    %v265 = vsel %vm212, %v201, %v201
    %v266 = vsel %vm214, %v201, %v265
    %v267 = vsel %vm216, %v201, %v266
    %v268 = vsel %vm218, %v201, %v267
    %v269 = vsel %vm220, %v201, %v268
    %v270 = vsel %vm222, %v201, %v269
    %v271 = vsel %vm212, %v205, %v205
    %v272 = vsel %vm214, %v205, %v271
    %v273 = vsel %vm216, %v205, %v272
    %v274 = vsel %vm218, %v205, %v273
    %v275 = vsel %vm220, %v205, %v274
    %v276 = vsel %vm222, %v205, %v275
    %v277 = vsel %vm212, %v209, %v209
    %v278 = vsel %vm214, %v209, %v277
    %v279 = vsel %vm216, %v209, %v278
    %v280 = vsel %vm218, %v209, %v279
    %v281 = vsel %vm220, %v209, %v280
    %v282 = vsel %vm222, %v209, %v281
    %v291 = vmul.f32 %v21, %v240
    %v292 = vmul.f32 %v22, %v246
    %v293 = vmul.f32 %v23, %v252
    %v294 = vmul.f32 %v24, %v258
    %v295 = vmul.f32 %v25, %v264
    %v296 = vmul.f32 %v26, %v270
    %v297 = vmul.f32 %v27, %v276
    %v298 = vmul.f32 %v28, %v282
    %v299 = vsel %vm34, %v291, 0.0
    %300 = vadd.xlane.f32.xlu0 %v299
    %v301 = vpop.xlane.xlu0 %300
    %v302 = vsel %vm34, %v292, 0.0
    %303 = vadd.xlane.f32.xlu0 %v302
    %v304 = vpop.xlane.xlu0 %303
    %v305 = vsel %vm34, %v293, 0.0
    %306 = vadd.xlane.f32.xlu0 %v305
    %v307 = vpop.xlane.xlu0 %306
    %v308 = vsel %vm34, %v294, 0.0
    %309 = vadd.xlane.f32.xlu0 %v308
    %v310 = vpop.xlane.xlu0 %309
    %v311 = vsel %vm34, %v295, 0.0
    %312 = vadd.xlane.f32.xlu0 %v311
    %v313 = vpop.xlane.xlu0 %312
    %v314 = vsel %vm34, %v296, 0.0
    %315 = vadd.xlane.f32.xlu0 %v314
    %v316 = vpop.xlane.xlu0 %315
    %v317 = vsel %vm34, %v297, 0.0
    %318 = vadd.xlane.f32.xlu0 %v317
    %v319 = vpop.xlane.xlu0 %318
    %v320 = vsel %vm34, %v298, 0.0
    %321 = vadd.xlane.f32.xlu0 %v320
    %v322 = vpop.xlane.xlu0 %321
    %v331 = vlaneseq
    %v332 = vshrl.u32 %v331, 7
    %v333 = vsub.s32 %v177, %v332
    %v334 = vrot.slane %v301, %v333
    %v335 = vlaneseq
    %v336 = vshrl.u32 %v335, 7
    %v337 = vsub.s32 %v177, %v336
    %v338 = vrot.slane %v304, %v337
    %v339 = vlaneseq
    %v340 = vshrl.u32 %v339, 7
    %v341 = vsub.s32 %v177, %v340
    %v342 = vrot.slane %v307, %v341
    %v343 = vlaneseq
    %v344 = vshrl.u32 %v343, 7
    %v345 = vsub.s32 %v177, %v344
    %v346 = vrot.slane %v310, %v345
    %v347 = vlaneseq
    %v348 = vshrl.u32 %v347, 7
    %v349 = vsub.s32 %v177, %v348
    %v350 = vrot.slane %v313, %v349
    %v351 = vlaneseq
    %v352 = vshrl.u32 %v351, 7
    %v353 = vsub.s32 %v177, %v352
    %v354 = vrot.slane %v316, %v353
    %v355 = vlaneseq
    %v356 = vshrl.u32 %v355, 7
    %v357 = vsub.s32 %v177, %v356
    %v358 = vrot.slane %v319, %v357
    %v359 = vlaneseq
    %v360 = vshrl.u32 %v359, 7
    %v361 = vsub.s32 %v177, %v360
    %v362 = vrot.slane %v322, %v361
    %v363 = vsel %vm210, %v338, %v334
    %v364 = vsel %vm212, %v342, %v363
    %v365 = vsel %vm214, %v346, %v364
    %v366 = vsel %vm216, %v350, %v365
    %v367 = vsel %vm218, %v354, %v366
    %v368 = vsel %vm220, %v358, %v367
    %v369 = vsel %vm222, %v362, %v368
    %v371 = vmul.f32 %v29, %v369
    %v372 = vsel %vm34, %v371, 0.0
    %373 = vadd.xlane.f32.xlu0 %v372
    %v374 = vpop.xlane.xlu0 %373
    %v375 = vmul.f32 %v374, %v32
    %377 = vrot.lane.b32.xlu0 %v375, 2
    %v378 = vpop.permute.xlu0 %377
    %v380 = vadd.f32 %v234, %v378
    %v381 = vsel %vm212, %v334, %v334
    %v382 = vsel %vm214, %v334, %v381
    %v383 = vsel %vm216, %v334, %v382
    %v384 = vsel %vm218, %v334, %v383
    %v385 = vsel %vm220, %v334, %v384
    %v386 = vsel %vm222, %v334, %v385
    %v387 = vsel %vm212, %v338, %v338
    %v388 = vsel %vm214, %v338, %v387
    %v389 = vsel %vm216, %v338, %v388
    %v390 = vsel %vm218, %v338, %v389
    %v391 = vsel %vm220, %v338, %v390
    %v392 = vsel %vm222, %v338, %v391
    %v393 = vsel %vm212, %v342, %v342
    %v394 = vsel %vm214, %v342, %v393
    %v395 = vsel %vm216, %v342, %v394
    %v396 = vsel %vm218, %v342, %v395
    %v397 = vsel %vm220, %v342, %v396
    %v398 = vsel %vm222, %v342, %v397
    %v399 = vsel %vm212, %v346, %v346
    %v400 = vsel %vm214, %v346, %v399
    %v401 = vsel %vm216, %v346, %v400
    %v402 = vsel %vm218, %v346, %v401
    %v403 = vsel %vm220, %v346, %v402
    %v404 = vsel %vm222, %v346, %v403
    %v405 = vsel %vm212, %v350, %v350
    %v406 = vsel %vm214, %v350, %v405
    %v407 = vsel %vm216, %v350, %v406
    %v408 = vsel %vm218, %v350, %v407
    %v409 = vsel %vm220, %v350, %v408
    %v410 = vsel %vm222, %v350, %v409
    %v411 = vsel %vm212, %v354, %v354
    %v412 = vsel %vm214, %v354, %v411
    %v413 = vsel %vm216, %v354, %v412
    %v414 = vsel %vm218, %v354, %v413
    %v415 = vsel %vm220, %v354, %v414
    %v416 = vsel %vm222, %v354, %v415
    %v417 = vsel %vm212, %v358, %v358
    %v418 = vsel %vm214, %v358, %v417
    %v419 = vsel %vm216, %v358, %v418
    %v420 = vsel %vm218, %v358, %v419
    %v421 = vsel %vm220, %v358, %v420
    %v422 = vsel %vm222, %v358, %v421
    %v423 = vsel %vm212, %v362, %v362
    %v424 = vsel %vm214, %v362, %v423
    %v425 = vsel %vm216, %v362, %v424
    %v426 = vsel %vm218, %v362, %v425
    %v427 = vsel %vm220, %v362, %v426
    %v428 = vsel %vm222, %v362, %v427
    %v437 = vmul.f32 %v21, %v386
    %v438 = vmul.f32 %v22, %v392
    %v439 = vmul.f32 %v23, %v398
    %v440 = vmul.f32 %v24, %v404
    %v441 = vmul.f32 %v25, %v410
    %v442 = vmul.f32 %v26, %v416
    %v443 = vmul.f32 %v27, %v422
    %v444 = vmul.f32 %v28, %v428
    %v445 = vsel %vm34, %v437, 0.0
    %446 = vadd.xlane.f32.xlu0 %v445
    %v447 = vpop.xlane.xlu0 %446
    %v448 = vsel %vm34, %v438, 0.0
    %449 = vadd.xlane.f32.xlu0 %v448
    %v450 = vpop.xlane.xlu0 %449
    %v451 = vsel %vm34, %v439, 0.0
    %452 = vadd.xlane.f32.xlu0 %v451
    %v453 = vpop.xlane.xlu0 %452
    %v454 = vsel %vm34, %v440, 0.0
    %455 = vadd.xlane.f32.xlu0 %v454
    %v456 = vpop.xlane.xlu0 %455
    %v457 = vsel %vm34, %v441, 0.0
    %458 = vadd.xlane.f32.xlu0 %v457
    %v459 = vpop.xlane.xlu0 %458
    %v460 = vsel %vm34, %v442, 0.0
    %461 = vadd.xlane.f32.xlu0 %v460
    %v462 = vpop.xlane.xlu0 %461
    %v463 = vsel %vm34, %v443, 0.0
    %464 = vadd.xlane.f32.xlu0 %v463
    %v465 = vpop.xlane.xlu0 %464
    %v466 = vsel %vm34, %v444, 0.0
    %467 = vadd.xlane.f32.xlu0 %v466
    %v468 = vpop.xlane.xlu0 %467
    %v477 = vlaneseq
    %v478 = vshrl.u32 %v477, 7
    %v479 = vsub.s32 %v177, %v478
    %v480 = vrot.slane %v447, %v479
    %v481 = vlaneseq
    %v482 = vshrl.u32 %v481, 7
    %v483 = vsub.s32 %v177, %v482
    %v484 = vrot.slane %v450, %v483
    %v485 = vlaneseq
    %v486 = vshrl.u32 %v485, 7
    %v487 = vsub.s32 %v177, %v486
    %v488 = vrot.slane %v453, %v487
    %v489 = vlaneseq
    %v490 = vshrl.u32 %v489, 7
    %v491 = vsub.s32 %v177, %v490
    %v492 = vrot.slane %v456, %v491
    %v493 = vlaneseq
    %v494 = vshrl.u32 %v493, 7
    %v495 = vsub.s32 %v177, %v494
    %v496 = vrot.slane %v459, %v495
    %v497 = vlaneseq
    %v498 = vshrl.u32 %v497, 7
    %v499 = vsub.s32 %v177, %v498
    %v500 = vrot.slane %v462, %v499
    %v501 = vlaneseq
    %v502 = vshrl.u32 %v501, 7
    %v503 = vsub.s32 %v177, %v502
    %v504 = vrot.slane %v465, %v503
    %v505 = vlaneseq
    %v506 = vshrl.u32 %v505, 7
    %v507 = vsub.s32 %v177, %v506
    %v508 = vrot.slane %v468, %v507
    %v509 = vsel %vm210, %v484, %v480
    %v510 = vsel %vm212, %v488, %v509
    %v511 = vsel %vm214, %v492, %v510
    %v512 = vsel %vm216, %v496, %v511
    %v513 = vsel %vm218, %v500, %v512
    %v514 = vsel %vm220, %v504, %v513
    %v515 = vsel %vm222, %v508, %v514
    %v517 = vmul.f32 %v29, %v515
    %v518 = vsel %vm34, %v517, 0.0
    %519 = vadd.xlane.f32.xlu0 %v518
    %v520 = vpop.xlane.xlu0 %519
    %v521 = vmul.f32 %v520, %v32
    %523 = vrot.lane.b32.xlu0 %v521, 3
    %v524 = vpop.permute.xlu0 %523
    %v526 = vadd.f32 %v380, %v524
    %v527 = vsel %vm212, %v480, %v480
    %v528 = vsel %vm214, %v480, %v527
    %v529 = vsel %vm216, %v480, %v528
    %v530 = vsel %vm218, %v480, %v529
    %v531 = vsel %vm220, %v480, %v530
    %v532 = vsel %vm222, %v480, %v531
    %v533 = vsel %vm212, %v484, %v484
    %v534 = vsel %vm214, %v484, %v533
    %v535 = vsel %vm216, %v484, %v534
    %v536 = vsel %vm218, %v484, %v535
    %v537 = vsel %vm220, %v484, %v536
    %v538 = vsel %vm222, %v484, %v537
    %v539 = vsel %vm212, %v488, %v488
    %v540 = vsel %vm214, %v488, %v539
    %v541 = vsel %vm216, %v488, %v540
    %v542 = vsel %vm218, %v488, %v541
    %v543 = vsel %vm220, %v488, %v542
    %v544 = vsel %vm222, %v488, %v543
    %v545 = vsel %vm212, %v492, %v492
    %v546 = vsel %vm214, %v492, %v545
    %v547 = vsel %vm216, %v492, %v546
    %v548 = vsel %vm218, %v492, %v547
    %v549 = vsel %vm220, %v492, %v548
    %v550 = vsel %vm222, %v492, %v549
    %v551 = vsel %vm212, %v496, %v496
    %v552 = vsel %vm214, %v496, %v551
    %v553 = vsel %vm216, %v496, %v552
    %v554 = vsel %vm218, %v496, %v553
    %v555 = vsel %vm220, %v496, %v554
    %v556 = vsel %vm222, %v496, %v555
    %v557 = vsel %vm212, %v500, %v500
    %v558 = vsel %vm214, %v500, %v557
    %v559 = vsel %vm216, %v500, %v558
    %v560 = vsel %vm218, %v500, %v559
    %v561 = vsel %vm220, %v500, %v560
    %v562 = vsel %vm222, %v500, %v561
    %v563 = vsel %vm212, %v504, %v504
    %v564 = vsel %vm214, %v504, %v563
    %v565 = vsel %vm216, %v504, %v564
    %v566 = vsel %vm218, %v504, %v565
    %v567 = vsel %vm220, %v504, %v566
    %v568 = vsel %vm222, %v504, %v567
    %v569 = vsel %vm212, %v508, %v508
    %v570 = vsel %vm214, %v508, %v569
    %v571 = vsel %vm216, %v508, %v570
    %v572 = vsel %vm218, %v508, %v571
    %v573 = vsel %vm220, %v508, %v572
    %v574 = vsel %vm222, %v508, %v573
    %v583 = vmul.f32 %v21, %v532
    %v584 = vmul.f32 %v22, %v538
    %v585 = vmul.f32 %v23, %v544
    %v586 = vmul.f32 %v24, %v550
    %v587 = vmul.f32 %v25, %v556
    %v588 = vmul.f32 %v26, %v562
    %v589 = vmul.f32 %v27, %v568
    %v590 = vmul.f32 %v28, %v574
    %v591 = vsel %vm34, %v583, 0.0
    %592 = vadd.xlane.f32.xlu0 %v591
    %v593 = vpop.xlane.xlu0 %592
    %v594 = vsel %vm34, %v584, 0.0
    %595 = vadd.xlane.f32.xlu0 %v594
    %v596 = vpop.xlane.xlu0 %595
    %v597 = vsel %vm34, %v585, 0.0
    %598 = vadd.xlane.f32.xlu0 %v597
    %v599 = vpop.xlane.xlu0 %598
    %v600 = vsel %vm34, %v586, 0.0
    %601 = vadd.xlane.f32.xlu0 %v600
    %v602 = vpop.xlane.xlu0 %601
    %v603 = vsel %vm34, %v587, 0.0
    %604 = vadd.xlane.f32.xlu0 %v603
    %v605 = vpop.xlane.xlu0 %604
    %v606 = vsel %vm34, %v588, 0.0
    %607 = vadd.xlane.f32.xlu0 %v606
    %v608 = vpop.xlane.xlu0 %607
    %v609 = vsel %vm34, %v589, 0.0
    %610 = vadd.xlane.f32.xlu0 %v609
    %v611 = vpop.xlane.xlu0 %610
    %v612 = vsel %vm34, %v590, 0.0
    %613 = vadd.xlane.f32.xlu0 %v612
    %v614 = vpop.xlane.xlu0 %613
    %v623 = vlaneseq
    %v624 = vshrl.u32 %v623, 7
    %v625 = vsub.s32 %v177, %v624
    %v626 = vrot.slane %v593, %v625
    %v627 = vlaneseq
    %v628 = vshrl.u32 %v627, 7
    %v629 = vsub.s32 %v177, %v628
    %v630 = vrot.slane %v596, %v629
    %v631 = vlaneseq
    %v632 = vshrl.u32 %v631, 7
    %v633 = vsub.s32 %v177, %v632
    %v634 = vrot.slane %v599, %v633
    %v635 = vlaneseq
    %v636 = vshrl.u32 %v635, 7
    %v637 = vsub.s32 %v177, %v636
    %v638 = vrot.slane %v602, %v637
    %v639 = vlaneseq
    %v640 = vshrl.u32 %v639, 7
    %v641 = vsub.s32 %v177, %v640
    %v642 = vrot.slane %v605, %v641
    %v643 = vlaneseq
    %v644 = vshrl.u32 %v643, 7
    %v645 = vsub.s32 %v177, %v644
    %v646 = vrot.slane %v608, %v645
    %v647 = vlaneseq
    %v648 = vshrl.u32 %v647, 7
    %v649 = vsub.s32 %v177, %v648
    %v650 = vrot.slane %v611, %v649
    %v651 = vlaneseq
    %v652 = vshrl.u32 %v651, 7
    %v653 = vsub.s32 %v177, %v652
    %v654 = vrot.slane %v614, %v653
    %v655 = vsel %vm210, %v630, %v626
    %v656 = vsel %vm212, %v634, %v655
    %v657 = vsel %vm214, %v638, %v656
    %v658 = vsel %vm216, %v642, %v657
    %v659 = vsel %vm218, %v646, %v658
    %v660 = vsel %vm220, %v650, %v659
    %v661 = vsel %vm222, %v654, %v660
    %v663 = vmul.f32 %v29, %v661
    %v664 = vsel %vm34, %v663, 0.0
    %665 = vadd.xlane.f32.xlu0 %v664
    %v666 = vpop.xlane.xlu0 %665
    %v667 = vmul.f32 %v666, %v32
    %669 = vrot.lane.b32.xlu0 %v667, 4
    %v670 = vpop.permute.xlu0 %669
    %v672 = vadd.f32 %v526, %v670
    %v673 = vsel %vm212, %v626, %v626
    %v674 = vsel %vm214, %v626, %v673
    %v675 = vsel %vm216, %v626, %v674
    %v676 = vsel %vm218, %v626, %v675
    %v677 = vsel %vm220, %v626, %v676
    %v678 = vsel %vm222, %v626, %v677
    %v679 = vsel %vm212, %v630, %v630
    %v680 = vsel %vm214, %v630, %v679
    %v681 = vsel %vm216, %v630, %v680
    %v682 = vsel %vm218, %v630, %v681
    %v683 = vsel %vm220, %v630, %v682
    %v684 = vsel %vm222, %v630, %v683
    %v685 = vsel %vm212, %v634, %v634
    %v686 = vsel %vm214, %v634, %v685
    %v687 = vsel %vm216, %v634, %v686
    %v688 = vsel %vm218, %v634, %v687
    %v689 = vsel %vm220, %v634, %v688
    %v690 = vsel %vm222, %v634, %v689
    %v691 = vsel %vm212, %v638, %v638
    %v692 = vsel %vm214, %v638, %v691
    %v693 = vsel %vm216, %v638, %v692
    %v694 = vsel %vm218, %v638, %v693
    %v695 = vsel %vm220, %v638, %v694
    %v696 = vsel %vm222, %v638, %v695
    %v697 = vsel %vm212, %v642, %v642
    %v698 = vsel %vm214, %v642, %v697
    %v699 = vsel %vm216, %v642, %v698
    %v700 = vsel %vm218, %v642, %v699
    %v701 = vsel %vm220, %v642, %v700
    %v702 = vsel %vm222, %v642, %v701
    %v703 = vsel %vm212, %v646, %v646
    %v704 = vsel %vm214, %v646, %v703
    %v705 = vsel %vm216, %v646, %v704
    %v706 = vsel %vm218, %v646, %v705
    %v707 = vsel %vm220, %v646, %v706
    %v708 = vsel %vm222, %v646, %v707
    %v709 = vsel %vm212, %v650, %v650
    %v710 = vsel %vm214, %v650, %v709
    %v711 = vsel %vm216, %v650, %v710
    %v712 = vsel %vm218, %v650, %v711
    %v713 = vsel %vm220, %v650, %v712
    %v714 = vsel %vm222, %v650, %v713
    %v715 = vsel %vm212, %v654, %v654
    %v716 = vsel %vm214, %v654, %v715
    %v717 = vsel %vm216, %v654, %v716
    %v718 = vsel %vm218, %v654, %v717
    %v719 = vsel %vm220, %v654, %v718
    %v720 = vsel %vm222, %v654, %v719
    %v729 = vmul.f32 %v21, %v678
    %v730 = vmul.f32 %v22, %v684
    %v731 = vmul.f32 %v23, %v690
    %v732 = vmul.f32 %v24, %v696
    %v733 = vmul.f32 %v25, %v702
    %v734 = vmul.f32 %v26, %v708
    %v735 = vmul.f32 %v27, %v714
    %v736 = vmul.f32 %v28, %v720
    %v737 = vsel %vm34, %v729, 0.0
    %738 = vadd.xlane.f32.xlu0 %v737
    %v739 = vpop.xlane.xlu0 %738
    %v740 = vsel %vm34, %v730, 0.0
    %741 = vadd.xlane.f32.xlu0 %v740
    %v742 = vpop.xlane.xlu0 %741
    %v743 = vsel %vm34, %v731, 0.0
    %744 = vadd.xlane.f32.xlu0 %v743
    %v745 = vpop.xlane.xlu0 %744
    %v746 = vsel %vm34, %v732, 0.0
    %747 = vadd.xlane.f32.xlu0 %v746
    %v748 = vpop.xlane.xlu0 %747
    %v749 = vsel %vm34, %v733, 0.0
    %750 = vadd.xlane.f32.xlu0 %v749
    %v751 = vpop.xlane.xlu0 %750
    %v752 = vsel %vm34, %v734, 0.0
    %753 = vadd.xlane.f32.xlu0 %v752
    %v754 = vpop.xlane.xlu0 %753
    %v755 = vsel %vm34, %v735, 0.0
    %756 = vadd.xlane.f32.xlu0 %v755
    %v757 = vpop.xlane.xlu0 %756
    %v758 = vsel %vm34, %v736, 0.0
    %759 = vadd.xlane.f32.xlu0 %v758
    %v760 = vpop.xlane.xlu0 %759
    %v769 = vlaneseq
    %v770 = vshrl.u32 %v769, 7
    %v771 = vsub.s32 %v177, %v770
    %v772 = vrot.slane %v739, %v771
    %v773 = vlaneseq
    %v774 = vshrl.u32 %v773, 7
    %v775 = vsub.s32 %v177, %v774
    %v776 = vrot.slane %v742, %v775
    %v777 = vlaneseq
    %v778 = vshrl.u32 %v777, 7
    %v779 = vsub.s32 %v177, %v778
    %v780 = vrot.slane %v745, %v779
    %v781 = vlaneseq
    %v782 = vshrl.u32 %v781, 7
    %v783 = vsub.s32 %v177, %v782
    %v784 = vrot.slane %v748, %v783
    %v785 = vlaneseq
    %v786 = vshrl.u32 %v785, 7
    %v787 = vsub.s32 %v177, %v786
    %v788 = vrot.slane %v751, %v787
    %v789 = vlaneseq
    %v790 = vshrl.u32 %v789, 7
    %v791 = vsub.s32 %v177, %v790
    %v792 = vrot.slane %v754, %v791
    %v793 = vlaneseq
    %v794 = vshrl.u32 %v793, 7
    %v795 = vsub.s32 %v177, %v794
    %v796 = vrot.slane %v757, %v795
    %v797 = vlaneseq
    %v798 = vshrl.u32 %v797, 7
    %v799 = vsub.s32 %v177, %v798
    %v800 = vrot.slane %v760, %v799
    %v801 = vsel %vm210, %v776, %v772
    %v802 = vsel %vm212, %v780, %v801
    %v803 = vsel %vm214, %v784, %v802
    %v804 = vsel %vm216, %v788, %v803
    %v805 = vsel %vm218, %v792, %v804
    %v806 = vsel %vm220, %v796, %v805
    %v807 = vsel %vm222, %v800, %v806
    %v809 = vmul.f32 %v29, %v807
    %v810 = vsel %vm34, %v809, 0.0
    %811 = vadd.xlane.f32.xlu0 %v810
    %v812 = vpop.xlane.xlu0 %811
    %v813 = vmul.f32 %v812, %v32
    %815 = vrot.lane.b32.xlu0 %v813, 5
    %v816 = vpop.permute.xlu0 %815
    %v818 = vadd.f32 %v672, %v816
    %v819 = vsel %vm212, %v772, %v772
    %v820 = vsel %vm214, %v772, %v819
    %v821 = vsel %vm216, %v772, %v820
    %v822 = vsel %vm218, %v772, %v821
    %v823 = vsel %vm220, %v772, %v822
    %v824 = vsel %vm222, %v772, %v823
    %v825 = vsel %vm212, %v776, %v776
    %v826 = vsel %vm214, %v776, %v825
    %v827 = vsel %vm216, %v776, %v826
    %v828 = vsel %vm218, %v776, %v827
    %v829 = vsel %vm220, %v776, %v828
    %v830 = vsel %vm222, %v776, %v829
    %v831 = vsel %vm212, %v780, %v780
    %v832 = vsel %vm214, %v780, %v831
    %v833 = vsel %vm216, %v780, %v832
    %v834 = vsel %vm218, %v780, %v833
    %v835 = vsel %vm220, %v780, %v834
    %v836 = vsel %vm222, %v780, %v835
    %v837 = vsel %vm212, %v784, %v784
    %v838 = vsel %vm214, %v784, %v837
    %v839 = vsel %vm216, %v784, %v838
    %v840 = vsel %vm218, %v784, %v839
    %v841 = vsel %vm220, %v784, %v840
    %v842 = vsel %vm222, %v784, %v841
    %v843 = vsel %vm212, %v788, %v788
    %v844 = vsel %vm214, %v788, %v843
    %v845 = vsel %vm216, %v788, %v844
    %v846 = vsel %vm218, %v788, %v845
    %v847 = vsel %vm220, %v788, %v846
    %v848 = vsel %vm222, %v788, %v847
    %v849 = vsel %vm212, %v792, %v792
    %v850 = vsel %vm214, %v792, %v849
    %v851 = vsel %vm216, %v792, %v850
    %v852 = vsel %vm218, %v792, %v851
    %v853 = vsel %vm220, %v792, %v852
    %v854 = vsel %vm222, %v792, %v853
    %v855 = vsel %vm212, %v796, %v796
    %v856 = vsel %vm214, %v796, %v855
    %v857 = vsel %vm216, %v796, %v856
    %v858 = vsel %vm218, %v796, %v857
    %v859 = vsel %vm220, %v796, %v858
    %v860 = vsel %vm222, %v796, %v859
    %v861 = vsel %vm212, %v800, %v800
    %v862 = vsel %vm214, %v800, %v861
    %v863 = vsel %vm216, %v800, %v862
    %v864 = vsel %vm218, %v800, %v863
    %v865 = vsel %vm220, %v800, %v864
    %v866 = vsel %vm222, %v800, %v865
    %v875 = vmul.f32 %v21, %v824
    %v876 = vmul.f32 %v22, %v830
    %v877 = vmul.f32 %v23, %v836
    %v878 = vmul.f32 %v24, %v842
    %v879 = vmul.f32 %v25, %v848
    %v880 = vmul.f32 %v26, %v854
    %v881 = vmul.f32 %v27, %v860
    %v882 = vmul.f32 %v28, %v866
    %v883 = vsel %vm34, %v875, 0.0
    %884 = vadd.xlane.f32.xlu0 %v883
    %v885 = vpop.xlane.xlu0 %884
    %v886 = vsel %vm34, %v876, 0.0
    %887 = vadd.xlane.f32.xlu0 %v886
    %v888 = vpop.xlane.xlu0 %887
    %v889 = vsel %vm34, %v877, 0.0
    %890 = vadd.xlane.f32.xlu0 %v889
    %v891 = vpop.xlane.xlu0 %890
    %v892 = vsel %vm34, %v878, 0.0
    %893 = vadd.xlane.f32.xlu0 %v892
    %v894 = vpop.xlane.xlu0 %893
    %v895 = vsel %vm34, %v879, 0.0
    %896 = vadd.xlane.f32.xlu0 %v895
    %v897 = vpop.xlane.xlu0 %896
    %v898 = vsel %vm34, %v880, 0.0
    %899 = vadd.xlane.f32.xlu0 %v898
    %v900 = vpop.xlane.xlu0 %899
    %v901 = vsel %vm34, %v881, 0.0
    %902 = vadd.xlane.f32.xlu0 %v901
    %v903 = vpop.xlane.xlu0 %902
    %v904 = vsel %vm34, %v882, 0.0
    %905 = vadd.xlane.f32.xlu0 %v904
    %v906 = vpop.xlane.xlu0 %905
    %v915 = vlaneseq
    %v916 = vshrl.u32 %v915, 7
    %v917 = vsub.s32 %v177, %v916
    %v918 = vrot.slane %v885, %v917
    %v919 = vlaneseq
    %v920 = vshrl.u32 %v919, 7
    %v921 = vsub.s32 %v177, %v920
    %v922 = vrot.slane %v888, %v921
    %v923 = vlaneseq
    %v924 = vshrl.u32 %v923, 7
    %v925 = vsub.s32 %v177, %v924
    %v926 = vrot.slane %v891, %v925
    %v927 = vlaneseq
    %v928 = vshrl.u32 %v927, 7
    %v929 = vsub.s32 %v177, %v928
    %v930 = vrot.slane %v894, %v929
    %v931 = vlaneseq
    %v932 = vshrl.u32 %v931, 7
    %v933 = vsub.s32 %v177, %v932
    %v934 = vrot.slane %v897, %v933
    %v935 = vlaneseq
    %v936 = vshrl.u32 %v935, 7
    %v937 = vsub.s32 %v177, %v936
    %v938 = vrot.slane %v900, %v937
    %v939 = vlaneseq
    %v940 = vshrl.u32 %v939, 7
    %v941 = vsub.s32 %v177, %v940
    %v942 = vrot.slane %v903, %v941
    %v943 = vlaneseq
    %v944 = vshrl.u32 %v943, 7
    %v945 = vsub.s32 %v177, %v944
    %v946 = vrot.slane %v906, %v945
    %v947 = vsel %vm210, %v922, %v918
    %v948 = vsel %vm212, %v926, %v947
    %v949 = vsel %vm214, %v930, %v948
    %v950 = vsel %vm216, %v934, %v949
    %v951 = vsel %vm218, %v938, %v950
    %v952 = vsel %vm220, %v942, %v951
    %v953 = vsel %vm222, %v946, %v952
    %v955 = vmul.f32 %v29, %v953
    %v956 = vsel %vm34, %v955, 0.0
    %957 = vadd.xlane.f32.xlu0 %v956
    %v958 = vpop.xlane.xlu0 %957
    %v959 = vmul.f32 %v958, %v32
    %961 = vrot.lane.b32.xlu0 %v959, 6
    %v962 = vpop.permute.xlu0 %961
    %v964 = vadd.f32 %v818, %v962
    %v965 = vsel %vm212, %v918, %v918
    %v966 = vsel %vm214, %v918, %v965
    %v967 = vsel %vm216, %v918, %v966
    %v968 = vsel %vm218, %v918, %v967
    %v969 = vsel %vm220, %v918, %v968
    %v970 = vsel %vm222, %v918, %v969
    %v971 = vsel %vm212, %v922, %v922
    %v972 = vsel %vm214, %v922, %v971
    %v973 = vsel %vm216, %v922, %v972
    %v974 = vsel %vm218, %v922, %v973
    %v975 = vsel %vm220, %v922, %v974
    %v976 = vsel %vm222, %v922, %v975
    %v977 = vsel %vm212, %v926, %v926
    %v978 = vsel %vm214, %v926, %v977
    %v979 = vsel %vm216, %v926, %v978
    %v980 = vsel %vm218, %v926, %v979
    %v981 = vsel %vm220, %v926, %v980
    %v982 = vsel %vm222, %v926, %v981
    %v983 = vsel %vm212, %v930, %v930
    %v984 = vsel %vm214, %v930, %v983
    %v985 = vsel %vm216, %v930, %v984
    %v986 = vsel %vm218, %v930, %v985
    %v987 = vsel %vm220, %v930, %v986
    %v988 = vsel %vm222, %v930, %v987
    %v989 = vsel %vm212, %v934, %v934
    %v990 = vsel %vm214, %v934, %v989
    %v991 = vsel %vm216, %v934, %v990
    %v992 = vsel %vm218, %v934, %v991
    %v993 = vsel %vm220, %v934, %v992
    %v994 = vsel %vm222, %v934, %v993
    %v995 = vsel %vm212, %v938, %v938
    %v996 = vsel %vm214, %v938, %v995
    %v997 = vsel %vm216, %v938, %v996
    %v998 = vsel %vm218, %v938, %v997
    %v999 = vsel %vm220, %v938, %v998
    %v1000 = vsel %vm222, %v938, %v999
    %v1001 = vsel %vm212, %v942, %v942
    %v1002 = vsel %vm214, %v942, %v1001
    %v1003 = vsel %vm216, %v942, %v1002
    %v1004 = vsel %vm218, %v942, %v1003
    %v1005 = vsel %vm220, %v942, %v1004
    %v1006 = vsel %vm222, %v942, %v1005
    %v1007 = vsel %vm212, %v946, %v946
    %v1008 = vsel %vm214, %v946, %v1007
    %v1009 = vsel %vm216, %v946, %v1008
    %v1010 = vsel %vm218, %v946, %v1009
    %v1011 = vsel %vm220, %v946, %v1010
    %v1012 = vsel %vm222, %v946, %v1011
    %v1021 = vmul.f32 %v21, %v970
    %v1022 = vmul.f32 %v22, %v976
    %v1023 = vmul.f32 %v23, %v982
    %v1024 = vmul.f32 %v24, %v988
    %v1025 = vmul.f32 %v25, %v994
    %v1026 = vmul.f32 %v26, %v1000
    %v1027 = vmul.f32 %v27, %v1006
    %v1028 = vmul.f32 %v28, %v1012
    %v1029 = vsel %vm34, %v1021, 0.0
    %1030 = vadd.xlane.f32.xlu0 %v1029
    %v1031 = vpop.xlane.xlu0 %1030
    %v1032 = vsel %vm34, %v1022, 0.0
    %1033 = vadd.xlane.f32.xlu0 %v1032
    %v1034 = vpop.xlane.xlu0 %1033
    %v1035 = vsel %vm34, %v1023, 0.0
    %1036 = vadd.xlane.f32.xlu0 %v1035
    %v1037 = vpop.xlane.xlu0 %1036
    %v1038 = vsel %vm34, %v1024, 0.0
    %1039 = vadd.xlane.f32.xlu0 %v1038
    %v1040 = vpop.xlane.xlu0 %1039
    %v1041 = vsel %vm34, %v1025, 0.0
    %1042 = vadd.xlane.f32.xlu0 %v1041
    %v1043 = vpop.xlane.xlu0 %1042
    %v1044 = vsel %vm34, %v1026, 0.0
    %1045 = vadd.xlane.f32.xlu0 %v1044
    %v1046 = vpop.xlane.xlu0 %1045
    %v1047 = vsel %vm34, %v1027, 0.0
    %1048 = vadd.xlane.f32.xlu0 %v1047
    %v1049 = vpop.xlane.xlu0 %1048
    %v1050 = vsel %vm34, %v1028, 0.0
    %1051 = vadd.xlane.f32.xlu0 %v1050
    %v1052 = vpop.xlane.xlu0 %1051
    %v1061 = vlaneseq
    %v1062 = vshrl.u32 %v1061, 7
    %v1063 = vsub.s32 %v177, %v1062
    %v1064 = vrot.slane %v1031, %v1063
    %v1065 = vlaneseq
    %v1066 = vshrl.u32 %v1065, 7
    %v1067 = vsub.s32 %v177, %v1066
    %v1068 = vrot.slane %v1034, %v1067
    %v1069 = vlaneseq
    %v1070 = vshrl.u32 %v1069, 7
    %v1071 = vsub.s32 %v177, %v1070
    %v1072 = vrot.slane %v1037, %v1071
    %v1073 = vlaneseq
    %v1074 = vshrl.u32 %v1073, 7
    %v1075 = vsub.s32 %v177, %v1074
    %v1076 = vrot.slane %v1040, %v1075
    %v1077 = vlaneseq
    %v1078 = vshrl.u32 %v1077, 7
    %v1079 = vsub.s32 %v177, %v1078
    %v1080 = vrot.slane %v1043, %v1079
    %v1081 = vlaneseq
    %v1082 = vshrl.u32 %v1081, 7
    %v1083 = vsub.s32 %v177, %v1082
    %v1084 = vrot.slane %v1046, %v1083
    %v1085 = vlaneseq
    %v1086 = vshrl.u32 %v1085, 7
    %v1087 = vsub.s32 %v177, %v1086
    %v1088 = vrot.slane %v1049, %v1087
    %v1089 = vlaneseq
    %v1090 = vshrl.u32 %v1089, 7
    %v1091 = vsub.s32 %v177, %v1090
    %v1092 = vrot.slane %v1052, %v1091
    %v1093 = vsel %vm210, %v1068, %v1064
    %v1094 = vsel %vm212, %v1072, %v1093
    %v1095 = vsel %vm214, %v1076, %v1094
    %v1096 = vsel %vm216, %v1080, %v1095
    %v1097 = vsel %vm218, %v1084, %v1096
    %v1098 = vsel %vm220, %v1088, %v1097
    %v1099 = vsel %vm222, %v1092, %v1098
    %v1101 = vmul.f32 %v29, %v1099
    %v1102 = vsel %vm34, %v1101, 0.0
    %1103 = vadd.xlane.f32.xlu0 %v1102
    %v1104 = vpop.xlane.xlu0 %1103
    %v1105 = vmul.f32 %v1104, %v32
    %1107 = vrot.lane.b32.xlu0 %v1105, 7
    %v1108 = vpop.permute.xlu0 %1107
    %v1110 = vadd.f32 %v964, %v1108
    %v1111 = vsel %vm212, %v1064, %v1064
    %v1112 = vsel %vm214, %v1064, %v1111
    %v1113 = vsel %vm216, %v1064, %v1112
    %v1114 = vsel %vm218, %v1064, %v1113
    %v1115 = vsel %vm220, %v1064, %v1114
    %v1116 = vsel %vm222, %v1064, %v1115
    %v1117 = vsel %vm212, %v1068, %v1068
    %v1118 = vsel %vm214, %v1068, %v1117
    %v1119 = vsel %vm216, %v1068, %v1118
    %v1120 = vsel %vm218, %v1068, %v1119
    %v1121 = vsel %vm220, %v1068, %v1120
    %v1122 = vsel %vm222, %v1068, %v1121
    %v1123 = vsel %vm212, %v1072, %v1072
    %v1124 = vsel %vm214, %v1072, %v1123
    %v1125 = vsel %vm216, %v1072, %v1124
    %v1126 = vsel %vm218, %v1072, %v1125
    %v1127 = vsel %vm220, %v1072, %v1126
    %v1128 = vsel %vm222, %v1072, %v1127
    %v1129 = vsel %vm212, %v1076, %v1076
    %v1130 = vsel %vm214, %v1076, %v1129
    %v1131 = vsel %vm216, %v1076, %v1130
    %v1132 = vsel %vm218, %v1076, %v1131
    %v1133 = vsel %vm220, %v1076, %v1132
    %v1134 = vsel %vm222, %v1076, %v1133
    %v1135 = vsel %vm212, %v1080, %v1080
    %v1136 = vsel %vm214, %v1080, %v1135
    %v1137 = vsel %vm216, %v1080, %v1136
    %v1138 = vsel %vm218, %v1080, %v1137
    %v1139 = vsel %vm220, %v1080, %v1138
    %v1140 = vsel %vm222, %v1080, %v1139
    %v1141 = vsel %vm212, %v1084, %v1084
    %v1142 = vsel %vm214, %v1084, %v1141
    %v1143 = vsel %vm216, %v1084, %v1142
    %v1144 = vsel %vm218, %v1084, %v1143
    %v1145 = vsel %vm220, %v1084, %v1144
    %v1146 = vsel %vm222, %v1084, %v1145
    %v1147 = vsel %vm212, %v1088, %v1088
    %v1148 = vsel %vm214, %v1088, %v1147
    %v1149 = vsel %vm216, %v1088, %v1148
    %v1150 = vsel %vm218, %v1088, %v1149
    %v1151 = vsel %vm220, %v1088, %v1150
    %v1152 = vsel %vm222, %v1088, %v1151
    %v1153 = vsel %vm212, %v1092, %v1092
    %v1154 = vsel %vm214, %v1092, %v1153
    %v1155 = vsel %vm216, %v1092, %v1154
    %v1156 = vsel %vm218, %v1092, %v1155
    %v1157 = vsel %vm220, %v1092, %v1156
    %v1158 = vsel %vm222, %v1092, %v1157
    %v1167 = vmul.f32 %v21, %v1116
    %v1168 = vmul.f32 %v22, %v1122
    %v1169 = vmul.f32 %v23, %v1128
    %v1170 = vmul.f32 %v24, %v1134
    %v1171 = vmul.f32 %v25, %v1140
    %v1172 = vmul.f32 %v26, %v1146
    %v1173 = vmul.f32 %v27, %v1152
    %v1174 = vmul.f32 %v28, %v1158
    %v1175 = vsel %vm34, %v1167, 0.0
    %1176 = vadd.xlane.f32.xlu0 %v1175
    %v1177 = vpop.xlane.xlu0 %1176
    %v1178 = vsel %vm34, %v1168, 0.0
    %1179 = vadd.xlane.f32.xlu0 %v1178
    %v1180 = vpop.xlane.xlu0 %1179
    %v1181 = vsel %vm34, %v1169, 0.0
    %1182 = vadd.xlane.f32.xlu0 %v1181
    %v1183 = vpop.xlane.xlu0 %1182
    %v1184 = vsel %vm34, %v1170, 0.0
    %1185 = vadd.xlane.f32.xlu0 %v1184
    %v1186 = vpop.xlane.xlu0 %1185
    %v1187 = vsel %vm34, %v1171, 0.0
    %1188 = vadd.xlane.f32.xlu0 %v1187
    %v1189 = vpop.xlane.xlu0 %1188
    %v1190 = vsel %vm34, %v1172, 0.0
    %1191 = vadd.xlane.f32.xlu0 %v1190
    %v1192 = vpop.xlane.xlu0 %1191
    %v1193 = vsel %vm34, %v1173, 0.0
    %1194 = vadd.xlane.f32.xlu0 %v1193
    %v1195 = vpop.xlane.xlu0 %1194
    %v1196 = vsel %vm34, %v1174, 0.0
    %1197 = vadd.xlane.f32.xlu0 %v1196
    %v1198 = vpop.xlane.xlu0 %1197
    %v1207 = vlaneseq
    %v1208 = vshrl.u32 %v1207, 7
    %v1209 = vsub.s32 %v177, %v1208
    %v1210 = vrot.slane %v1177, %v1209
    %v1211 = vlaneseq
    %v1212 = vshrl.u32 %v1211, 7
    %v1213 = vsub.s32 %v177, %v1212
    %v1214 = vrot.slane %v1180, %v1213
    %v1215 = vlaneseq
    %v1216 = vshrl.u32 %v1215, 7
    %v1217 = vsub.s32 %v177, %v1216
    %v1218 = vrot.slane %v1183, %v1217
    %v1219 = vlaneseq
    %v1220 = vshrl.u32 %v1219, 7
    %v1221 = vsub.s32 %v177, %v1220
    %v1222 = vrot.slane %v1186, %v1221
    %v1223 = vlaneseq
    %v1224 = vshrl.u32 %v1223, 7
    %v1225 = vsub.s32 %v177, %v1224
    %v1226 = vrot.slane %v1189, %v1225
    %v1227 = vlaneseq
    %v1228 = vshrl.u32 %v1227, 7
    %v1229 = vsub.s32 %v177, %v1228
    %v1230 = vrot.slane %v1192, %v1229
    %v1231 = vlaneseq
    %v1232 = vshrl.u32 %v1231, 7
    %v1233 = vsub.s32 %v177, %v1232
    %v1234 = vrot.slane %v1195, %v1233
    %v1235 = vlaneseq
    %v1236 = vshrl.u32 %v1235, 7
    %v1237 = vsub.s32 %v177, %v1236
    %v1238 = vrot.slane %v1198, %v1237
    %v1239 = vsel %vm210, %v1214, %v1210
    %v1240 = vsel %vm212, %v1218, %v1239
    %v1241 = vsel %vm214, %v1222, %v1240
    %v1242 = vsel %vm216, %v1226, %v1241
    %v1243 = vsel %vm218, %v1230, %v1242
    %v1244 = vsel %vm220, %v1234, %v1243
    %v1245 = vsel %vm222, %v1238, %v1244
    %v1247 = vmul.f32 %v29, %v1245
    %v1248 = vsel %vm34, %v1247, 0.0
    %1249 = vadd.xlane.f32.xlu0 %v1248
    %v1250 = vpop.xlane.xlu0 %1249
    %v1251 = vmul.f32 %v1250, %v32
    %1253 = vrot.lane.b32.xlu0 %v1251, 8
    %v1254 = vpop.permute.xlu0 %1253
    %v1256 = vadd.f32 %v1110, %v1254
    %v1257 = vsel %vm212, %v1210, %v1210
    %v1258 = vsel %vm214, %v1210, %v1257
    %v1259 = vsel %vm216, %v1210, %v1258
    %v1260 = vsel %vm218, %v1210, %v1259
    %v1261 = vsel %vm220, %v1210, %v1260
    %v1262 = vsel %vm222, %v1210, %v1261
    %v1263 = vsel %vm212, %v1214, %v1214
    %v1264 = vsel %vm214, %v1214, %v1263
    %v1265 = vsel %vm216, %v1214, %v1264
    %v1266 = vsel %vm218, %v1214, %v1265
    %v1267 = vsel %vm220, %v1214, %v1266
    %v1268 = vsel %vm222, %v1214, %v1267
    %v1269 = vsel %vm212, %v1218, %v1218
    %v1270 = vsel %vm214, %v1218, %v1269
    %v1271 = vsel %vm216, %v1218, %v1270
    %v1272 = vsel %vm218, %v1218, %v1271
    %v1273 = vsel %vm220, %v1218, %v1272
    %v1274 = vsel %vm222, %v1218, %v1273
    %v1275 = vsel %vm212, %v1222, %v1222
    %v1276 = vsel %vm214, %v1222, %v1275
    %v1277 = vsel %vm216, %v1222, %v1276
    %v1278 = vsel %vm218, %v1222, %v1277
    %v1279 = vsel %vm220, %v1222, %v1278
    %v1280 = vsel %vm222, %v1222, %v1279
    %v1281 = vsel %vm212, %v1226, %v1226
    %v1282 = vsel %vm214, %v1226, %v1281
    %v1283 = vsel %vm216, %v1226, %v1282
    %v1284 = vsel %vm218, %v1226, %v1283
    %v1285 = vsel %vm220, %v1226, %v1284
    %v1286 = vsel %vm222, %v1226, %v1285
    %v1287 = vsel %vm212, %v1230, %v1230
    %v1288 = vsel %vm214, %v1230, %v1287
    %v1289 = vsel %vm216, %v1230, %v1288
    %v1290 = vsel %vm218, %v1230, %v1289
    %v1291 = vsel %vm220, %v1230, %v1290
    %v1292 = vsel %vm222, %v1230, %v1291
    %v1293 = vsel %vm212, %v1234, %v1234
    %v1294 = vsel %vm214, %v1234, %v1293
    %v1295 = vsel %vm216, %v1234, %v1294
    %v1296 = vsel %vm218, %v1234, %v1295
    %v1297 = vsel %vm220, %v1234, %v1296
    %v1298 = vsel %vm222, %v1234, %v1297
    %v1299 = vsel %vm212, %v1238, %v1238
    %v1300 = vsel %vm214, %v1238, %v1299
    %v1301 = vsel %vm216, %v1238, %v1300
    %v1302 = vsel %vm218, %v1238, %v1301
    %v1303 = vsel %vm220, %v1238, %v1302
    %v1304 = vsel %vm222, %v1238, %v1303
    %v1313 = vmul.f32 %v21, %v1262
    %v1314 = vmul.f32 %v22, %v1268
    %v1315 = vmul.f32 %v23, %v1274
    %v1316 = vmul.f32 %v24, %v1280
    %v1317 = vmul.f32 %v25, %v1286
    %v1318 = vmul.f32 %v26, %v1292
    %v1319 = vmul.f32 %v27, %v1298
    %v1320 = vmul.f32 %v28, %v1304
    %v1321 = vsel %vm34, %v1313, 0.0
    %1322 = vadd.xlane.f32.xlu0 %v1321
    %v1323 = vpop.xlane.xlu0 %1322
    %v1324 = vsel %vm34, %v1314, 0.0
    %1325 = vadd.xlane.f32.xlu0 %v1324
    %v1326 = vpop.xlane.xlu0 %1325
    %v1327 = vsel %vm34, %v1315, 0.0
    %1328 = vadd.xlane.f32.xlu0 %v1327
    %v1329 = vpop.xlane.xlu0 %1328
    %v1330 = vsel %vm34, %v1316, 0.0
    %1331 = vadd.xlane.f32.xlu0 %v1330
    %v1332 = vpop.xlane.xlu0 %1331
    %v1333 = vsel %vm34, %v1317, 0.0
    %1334 = vadd.xlane.f32.xlu0 %v1333
    %v1335 = vpop.xlane.xlu0 %1334
    %v1336 = vsel %vm34, %v1318, 0.0
    %1337 = vadd.xlane.f32.xlu0 %v1336
    %v1338 = vpop.xlane.xlu0 %1337
    %v1339 = vsel %vm34, %v1319, 0.0
    %1340 = vadd.xlane.f32.xlu0 %v1339
    %v1341 = vpop.xlane.xlu0 %1340
    %v1342 = vsel %vm34, %v1320, 0.0
    %1343 = vadd.xlane.f32.xlu0 %v1342
    %v1344 = vpop.xlane.xlu0 %1343
    %v1353 = vlaneseq
    %v1354 = vshrl.u32 %v1353, 7
    %v1355 = vsub.s32 %v177, %v1354
    %v1356 = vrot.slane %v1323, %v1355
    %v1357 = vlaneseq
    %v1358 = vshrl.u32 %v1357, 7
    %v1359 = vsub.s32 %v177, %v1358
    %v1360 = vrot.slane %v1326, %v1359
    %v1361 = vlaneseq
    %v1362 = vshrl.u32 %v1361, 7
    %v1363 = vsub.s32 %v177, %v1362
    %v1364 = vrot.slane %v1329, %v1363
    %v1365 = vlaneseq
    %v1366 = vshrl.u32 %v1365, 7
    %v1367 = vsub.s32 %v177, %v1366
    %v1368 = vrot.slane %v1332, %v1367
    %v1369 = vlaneseq
    %v1370 = vshrl.u32 %v1369, 7
    %v1371 = vsub.s32 %v177, %v1370
    %v1372 = vrot.slane %v1335, %v1371
    %v1373 = vlaneseq
    %v1374 = vshrl.u32 %v1373, 7
    %v1375 = vsub.s32 %v177, %v1374
    %v1376 = vrot.slane %v1338, %v1375
    %v1377 = vlaneseq
    %v1378 = vshrl.u32 %v1377, 7
    %v1379 = vsub.s32 %v177, %v1378
    %v1380 = vrot.slane %v1341, %v1379
    %v1381 = vlaneseq
    %v1382 = vshrl.u32 %v1381, 7
    %v1383 = vsub.s32 %v177, %v1382
    %v1384 = vrot.slane %v1344, %v1383
    %v1385 = vsel %vm210, %v1360, %v1356
    %v1386 = vsel %vm212, %v1364, %v1385
    %v1387 = vsel %vm214, %v1368, %v1386
    %v1388 = vsel %vm216, %v1372, %v1387
    %v1389 = vsel %vm218, %v1376, %v1388
    %v1390 = vsel %vm220, %v1380, %v1389
    %v1391 = vsel %vm222, %v1384, %v1390
    %v1393 = vmul.f32 %v29, %v1391
    %v1394 = vsel %vm34, %v1393, 0.0
    %1395 = vadd.xlane.f32.xlu0 %v1394
    %v1396 = vpop.xlane.xlu0 %1395
    %v1397 = vmul.f32 %v1396, %v32
    %1399 = vrot.lane.b32.xlu0 %v1397, 9
    %v1400 = vpop.permute.xlu0 %1399
    %v1402 = vadd.f32 %v1256, %v1400
    %v1403 = vsel %vm212, %v1356, %v1356
    %v1404 = vsel %vm214, %v1356, %v1403
    %v1405 = vsel %vm216, %v1356, %v1404
    %v1406 = vsel %vm218, %v1356, %v1405
    %v1407 = vsel %vm220, %v1356, %v1406
    %v1408 = vsel %vm222, %v1356, %v1407
    %v1409 = vsel %vm212, %v1360, %v1360
    %v1410 = vsel %vm214, %v1360, %v1409
    %v1411 = vsel %vm216, %v1360, %v1410
    %v1412 = vsel %vm218, %v1360, %v1411
    %v1413 = vsel %vm220, %v1360, %v1412
    %v1414 = vsel %vm222, %v1360, %v1413
    %v1415 = vsel %vm212, %v1364, %v1364
    %v1416 = vsel %vm214, %v1364, %v1415
    %v1417 = vsel %vm216, %v1364, %v1416
    %v1418 = vsel %vm218, %v1364, %v1417
    %v1419 = vsel %vm220, %v1364, %v1418
    %v1420 = vsel %vm222, %v1364, %v1419
    %v1421 = vsel %vm212, %v1368, %v1368
    %v1422 = vsel %vm214, %v1368, %v1421
    %v1423 = vsel %vm216, %v1368, %v1422
    %v1424 = vsel %vm218, %v1368, %v1423
    %v1425 = vsel %vm220, %v1368, %v1424
    %v1426 = vsel %vm222, %v1368, %v1425
    %v1427 = vsel %vm212, %v1372, %v1372
    %v1428 = vsel %vm214, %v1372, %v1427
    %v1429 = vsel %vm216, %v1372, %v1428
    %v1430 = vsel %vm218, %v1372, %v1429
    %v1431 = vsel %vm220, %v1372, %v1430
    %v1432 = vsel %vm222, %v1372, %v1431
    %v1433 = vsel %vm212, %v1376, %v1376
    %v1434 = vsel %vm214, %v1376, %v1433
    %v1435 = vsel %vm216, %v1376, %v1434
    %v1436 = vsel %vm218, %v1376, %v1435
    %v1437 = vsel %vm220, %v1376, %v1436
    %v1438 = vsel %vm222, %v1376, %v1437
    %v1439 = vsel %vm212, %v1380, %v1380
    %v1440 = vsel %vm214, %v1380, %v1439
    %v1441 = vsel %vm216, %v1380, %v1440
    %v1442 = vsel %vm218, %v1380, %v1441
    %v1443 = vsel %vm220, %v1380, %v1442
    %v1444 = vsel %vm222, %v1380, %v1443
    %v1445 = vsel %vm212, %v1384, %v1384
    %v1446 = vsel %vm214, %v1384, %v1445
    %v1447 = vsel %vm216, %v1384, %v1446
    %v1448 = vsel %vm218, %v1384, %v1447
    %v1449 = vsel %vm220, %v1384, %v1448
    %v1450 = vsel %vm222, %v1384, %v1449
    %v1459 = vmul.f32 %v21, %v1408
    %v1460 = vmul.f32 %v22, %v1414
    %v1461 = vmul.f32 %v23, %v1420
    %v1462 = vmul.f32 %v24, %v1426
    %v1463 = vmul.f32 %v25, %v1432
    %v1464 = vmul.f32 %v26, %v1438
    %v1465 = vmul.f32 %v27, %v1444
    %v1466 = vmul.f32 %v28, %v1450
    %v1467 = vsel %vm34, %v1459, 0.0
    %1468 = vadd.xlane.f32.xlu0 %v1467
    %v1469 = vpop.xlane.xlu0 %1468
    %v1470 = vsel %vm34, %v1460, 0.0
    %1471 = vadd.xlane.f32.xlu0 %v1470
    %v1472 = vpop.xlane.xlu0 %1471
    %v1473 = vsel %vm34, %v1461, 0.0
    %1474 = vadd.xlane.f32.xlu0 %v1473
    %v1475 = vpop.xlane.xlu0 %1474
    %v1476 = vsel %vm34, %v1462, 0.0
    %1477 = vadd.xlane.f32.xlu0 %v1476
    %v1478 = vpop.xlane.xlu0 %1477
    %v1479 = vsel %vm34, %v1463, 0.0
    %1480 = vadd.xlane.f32.xlu0 %v1479
    %v1481 = vpop.xlane.xlu0 %1480
    %v1482 = vsel %vm34, %v1464, 0.0
    %1483 = vadd.xlane.f32.xlu0 %v1482
    %v1484 = vpop.xlane.xlu0 %1483
    %v1485 = vsel %vm34, %v1465, 0.0
    %1486 = vadd.xlane.f32.xlu0 %v1485
    %v1487 = vpop.xlane.xlu0 %1486
    %v1488 = vsel %vm34, %v1466, 0.0
    %1489 = vadd.xlane.f32.xlu0 %v1488
    %v1490 = vpop.xlane.xlu0 %1489
    %v1499 = vlaneseq
    %v1500 = vshrl.u32 %v1499, 7
    %v1501 = vsub.s32 %v177, %v1500
    %v1502 = vrot.slane %v1469, %v1501
    %v1503 = vlaneseq
    %v1504 = vshrl.u32 %v1503, 7
    %v1505 = vsub.s32 %v177, %v1504
    %v1506 = vrot.slane %v1472, %v1505
    %v1507 = vlaneseq
    %v1508 = vshrl.u32 %v1507, 7
    %v1509 = vsub.s32 %v177, %v1508
    %v1510 = vrot.slane %v1475, %v1509
    %v1511 = vlaneseq
    %v1512 = vshrl.u32 %v1511, 7
    %v1513 = vsub.s32 %v177, %v1512
    %v1514 = vrot.slane %v1478, %v1513
    %v1515 = vlaneseq
    %v1516 = vshrl.u32 %v1515, 7
    %v1517 = vsub.s32 %v177, %v1516
    %v1518 = vrot.slane %v1481, %v1517
    %v1519 = vlaneseq
    %v1520 = vshrl.u32 %v1519, 7
    %v1521 = vsub.s32 %v177, %v1520
    %v1522 = vrot.slane %v1484, %v1521
    %v1523 = vlaneseq
    %v1524 = vshrl.u32 %v1523, 7
    %v1525 = vsub.s32 %v177, %v1524
    %v1526 = vrot.slane %v1487, %v1525
    %v1527 = vlaneseq
    %v1528 = vshrl.u32 %v1527, 7
    %v1529 = vsub.s32 %v177, %v1528
    %v1530 = vrot.slane %v1490, %v1529
    %v1531 = vsel %vm210, %v1506, %v1502
    %v1532 = vsel %vm212, %v1510, %v1531
    %v1533 = vsel %vm214, %v1514, %v1532
    %v1534 = vsel %vm216, %v1518, %v1533
    %v1535 = vsel %vm218, %v1522, %v1534
    %v1536 = vsel %vm220, %v1526, %v1535
    %v1537 = vsel %vm222, %v1530, %v1536
    %v1539 = vmul.f32 %v29, %v1537
    %v1540 = vsel %vm34, %v1539, 0.0
    %1541 = vadd.xlane.f32.xlu0 %v1540
    %v1542 = vpop.xlane.xlu0 %1541
    %v1543 = vmul.f32 %v1542, %v32
    %1545 = vrot.lane.b32.xlu0 %v1543, 10
    %v1546 = vpop.permute.xlu0 %1545
    %v1548 = vadd.f32 %v1402, %v1546
    %v1549 = vsel %vm212, %v1502, %v1502
    %v1550 = vsel %vm214, %v1502, %v1549
    %v1551 = vsel %vm216, %v1502, %v1550
    %v1552 = vsel %vm218, %v1502, %v1551
    %v1553 = vsel %vm220, %v1502, %v1552
    %v1554 = vsel %vm222, %v1502, %v1553
    %v1555 = vsel %vm212, %v1506, %v1506
    %v1556 = vsel %vm214, %v1506, %v1555
    %v1557 = vsel %vm216, %v1506, %v1556
    %v1558 = vsel %vm218, %v1506, %v1557
    %v1559 = vsel %vm220, %v1506, %v1558
    %v1560 = vsel %vm222, %v1506, %v1559
    %v1561 = vsel %vm212, %v1510, %v1510
    %v1562 = vsel %vm214, %v1510, %v1561
    %v1563 = vsel %vm216, %v1510, %v1562
    %v1564 = vsel %vm218, %v1510, %v1563
    %v1565 = vsel %vm220, %v1510, %v1564
    %v1566 = vsel %vm222, %v1510, %v1565
    %v1567 = vsel %vm212, %v1514, %v1514
    %v1568 = vsel %vm214, %v1514, %v1567
    %v1569 = vsel %vm216, %v1514, %v1568
    %v1570 = vsel %vm218, %v1514, %v1569
    %v1571 = vsel %vm220, %v1514, %v1570
    %v1572 = vsel %vm222, %v1514, %v1571
    %v1573 = vsel %vm212, %v1518, %v1518
    %v1574 = vsel %vm214, %v1518, %v1573
    %v1575 = vsel %vm216, %v1518, %v1574
    %v1576 = vsel %vm218, %v1518, %v1575
    %v1577 = vsel %vm220, %v1518, %v1576
    %v1578 = vsel %vm222, %v1518, %v1577
    %v1579 = vsel %vm212, %v1522, %v1522
    %v1580 = vsel %vm214, %v1522, %v1579
    %v1581 = vsel %vm216, %v1522, %v1580
    %v1582 = vsel %vm218, %v1522, %v1581
    %v1583 = vsel %vm220, %v1522, %v1582
    %v1584 = vsel %vm222, %v1522, %v1583
    %v1585 = vsel %vm212, %v1526, %v1526
    %v1586 = vsel %vm214, %v1526, %v1585
    %v1587 = vsel %vm216, %v1526, %v1586
    %v1588 = vsel %vm218, %v1526, %v1587
    %v1589 = vsel %vm220, %v1526, %v1588
    %v1590 = vsel %vm222, %v1526, %v1589
    %v1591 = vsel %vm212, %v1530, %v1530
    %v1592 = vsel %vm214, %v1530, %v1591
    %v1593 = vsel %vm216, %v1530, %v1592
    %v1594 = vsel %vm218, %v1530, %v1593
    %v1595 = vsel %vm220, %v1530, %v1594
    %v1596 = vsel %vm222, %v1530, %v1595
    %v1605 = vmul.f32 %v21, %v1554
    %v1606 = vmul.f32 %v22, %v1560
    %v1607 = vmul.f32 %v23, %v1566
    %v1608 = vmul.f32 %v24, %v1572
    %v1609 = vmul.f32 %v25, %v1578
    %v1610 = vmul.f32 %v26, %v1584
    %v1611 = vmul.f32 %v27, %v1590
    %v1612 = vmul.f32 %v28, %v1596
    %v1613 = vsel %vm34, %v1605, 0.0
    %1614 = vadd.xlane.f32.xlu0 %v1613
    %v1615 = vpop.xlane.xlu0 %1614
    %v1616 = vsel %vm34, %v1606, 0.0
    %1617 = vadd.xlane.f32.xlu0 %v1616
    %v1618 = vpop.xlane.xlu0 %1617
    %v1619 = vsel %vm34, %v1607, 0.0
    %1620 = vadd.xlane.f32.xlu0 %v1619
    %v1621 = vpop.xlane.xlu0 %1620
    %v1622 = vsel %vm34, %v1608, 0.0
    %1623 = vadd.xlane.f32.xlu0 %v1622
    %v1624 = vpop.xlane.xlu0 %1623
    %v1625 = vsel %vm34, %v1609, 0.0
    %1626 = vadd.xlane.f32.xlu0 %v1625
    %v1627 = vpop.xlane.xlu0 %1626
    %v1628 = vsel %vm34, %v1610, 0.0
    %1629 = vadd.xlane.f32.xlu0 %v1628
    %v1630 = vpop.xlane.xlu0 %1629
    %v1631 = vsel %vm34, %v1611, 0.0
    %1632 = vadd.xlane.f32.xlu0 %v1631
    %v1633 = vpop.xlane.xlu0 %1632
    %v1634 = vsel %vm34, %v1612, 0.0
    %1635 = vadd.xlane.f32.xlu0 %v1634
    %v1636 = vpop.xlane.xlu0 %1635
    %v1645 = vlaneseq
    %v1646 = vshrl.u32 %v1645, 7
    %v1647 = vsub.s32 %v177, %v1646
    %v1648 = vrot.slane %v1615, %v1647
    %v1649 = vlaneseq
    %v1650 = vshrl.u32 %v1649, 7
    %v1651 = vsub.s32 %v177, %v1650
    %v1652 = vrot.slane %v1618, %v1651
    %v1653 = vlaneseq
    %v1654 = vshrl.u32 %v1653, 7
    %v1655 = vsub.s32 %v177, %v1654
    %v1656 = vrot.slane %v1621, %v1655
    %v1657 = vlaneseq
    %v1658 = vshrl.u32 %v1657, 7
    %v1659 = vsub.s32 %v177, %v1658
    %v1660 = vrot.slane %v1624, %v1659
    %v1661 = vlaneseq
    %v1662 = vshrl.u32 %v1661, 7
    %v1663 = vsub.s32 %v177, %v1662
    %v1664 = vrot.slane %v1627, %v1663
    %v1665 = vlaneseq
    %v1666 = vshrl.u32 %v1665, 7
    %v1667 = vsub.s32 %v177, %v1666
    %v1668 = vrot.slane %v1630, %v1667
    %v1669 = vlaneseq
    %v1670 = vshrl.u32 %v1669, 7
    %v1671 = vsub.s32 %v177, %v1670
    %v1672 = vrot.slane %v1633, %v1671
    %v1673 = vlaneseq
    %v1674 = vshrl.u32 %v1673, 7
    %v1675 = vsub.s32 %v177, %v1674
    %v1676 = vrot.slane %v1636, %v1675
    %v1677 = vsel %vm210, %v1652, %v1648
    %v1678 = vsel %vm212, %v1656, %v1677
    %v1679 = vsel %vm214, %v1660, %v1678
    %v1680 = vsel %vm216, %v1664, %v1679
    %v1681 = vsel %vm218, %v1668, %v1680
    %v1682 = vsel %vm220, %v1672, %v1681
    %v1683 = vsel %vm222, %v1676, %v1682
    %v1685 = vmul.f32 %v29, %v1683
    %v1686 = vsel %vm34, %v1685, 0.0
    %1687 = vadd.xlane.f32.xlu0 %v1686
    %v1688 = vpop.xlane.xlu0 %1687
    %v1689 = vmul.f32 %v1688, %v32
    %1691 = vrot.lane.b32.xlu0 %v1689, 11
    %v1692 = vpop.permute.xlu0 %1691
    %v1694 = vadd.f32 %v1548, %v1692
    %v1695 = vsel %vm212, %v1648, %v1648
    %v1696 = vsel %vm214, %v1648, %v1695
    %v1697 = vsel %vm216, %v1648, %v1696
    %v1698 = vsel %vm218, %v1648, %v1697
    %v1699 = vsel %vm220, %v1648, %v1698
    %v1700 = vsel %vm222, %v1648, %v1699
    %v1701 = vsel %vm212, %v1652, %v1652
    %v1702 = vsel %vm214, %v1652, %v1701
    %v1703 = vsel %vm216, %v1652, %v1702
    %v1704 = vsel %vm218, %v1652, %v1703
    %v1705 = vsel %vm220, %v1652, %v1704
    %v1706 = vsel %vm222, %v1652, %v1705
    %v1707 = vsel %vm212, %v1656, %v1656
    %v1708 = vsel %vm214, %v1656, %v1707
    %v1709 = vsel %vm216, %v1656, %v1708
    %v1710 = vsel %vm218, %v1656, %v1709
    %v1711 = vsel %vm220, %v1656, %v1710
    %v1712 = vsel %vm222, %v1656, %v1711
    %v1713 = vsel %vm212, %v1660, %v1660
    %v1714 = vsel %vm214, %v1660, %v1713
    %v1715 = vsel %vm216, %v1660, %v1714
    %v1716 = vsel %vm218, %v1660, %v1715
    %v1717 = vsel %vm220, %v1660, %v1716
    %v1718 = vsel %vm222, %v1660, %v1717
    %v1719 = vsel %vm212, %v1664, %v1664
    %v1720 = vsel %vm214, %v1664, %v1719
    %v1721 = vsel %vm216, %v1664, %v1720
    %v1722 = vsel %vm218, %v1664, %v1721
    %v1723 = vsel %vm220, %v1664, %v1722
    %v1724 = vsel %vm222, %v1664, %v1723
    %v1725 = vsel %vm212, %v1668, %v1668
    %v1726 = vsel %vm214, %v1668, %v1725
    %v1727 = vsel %vm216, %v1668, %v1726
    %v1728 = vsel %vm218, %v1668, %v1727
    %v1729 = vsel %vm220, %v1668, %v1728
    %v1730 = vsel %vm222, %v1668, %v1729
    %v1731 = vsel %vm212, %v1672, %v1672
    %v1732 = vsel %vm214, %v1672, %v1731
    %v1733 = vsel %vm216, %v1672, %v1732
    %v1734 = vsel %vm218, %v1672, %v1733
    %v1735 = vsel %vm220, %v1672, %v1734
    %v1736 = vsel %vm222, %v1672, %v1735
    %v1737 = vsel %vm212, %v1676, %v1676
    %v1738 = vsel %vm214, %v1676, %v1737
    %v1739 = vsel %vm216, %v1676, %v1738
    %v1740 = vsel %vm218, %v1676, %v1739
    %v1741 = vsel %vm220, %v1676, %v1740
    %v1742 = vsel %vm222, %v1676, %v1741
    %v1751 = vmul.f32 %v21, %v1700
    %v1752 = vmul.f32 %v22, %v1706
    %v1753 = vmul.f32 %v23, %v1712
    %v1754 = vmul.f32 %v24, %v1718
    %v1755 = vmul.f32 %v25, %v1724
    %v1756 = vmul.f32 %v26, %v1730
    %v1757 = vmul.f32 %v27, %v1736
    %v1758 = vmul.f32 %v28, %v1742
    %v1759 = vsel %vm34, %v1751, 0.0
    %1760 = vadd.xlane.f32.xlu0 %v1759
    %v1761 = vpop.xlane.xlu0 %1760
    %v1762 = vsel %vm34, %v1752, 0.0
    %1763 = vadd.xlane.f32.xlu0 %v1762
    %v1764 = vpop.xlane.xlu0 %1763
    %v1765 = vsel %vm34, %v1753, 0.0
    %1766 = vadd.xlane.f32.xlu0 %v1765
    %v1767 = vpop.xlane.xlu0 %1766
    %v1768 = vsel %vm34, %v1754, 0.0
    %1769 = vadd.xlane.f32.xlu0 %v1768
    %v1770 = vpop.xlane.xlu0 %1769
    %v1771 = vsel %vm34, %v1755, 0.0
    %1772 = vadd.xlane.f32.xlu0 %v1771
    %v1773 = vpop.xlane.xlu0 %1772
    %v1774 = vsel %vm34, %v1756, 0.0
    %1775 = vadd.xlane.f32.xlu0 %v1774
    %v1776 = vpop.xlane.xlu0 %1775
    %v1777 = vsel %vm34, %v1757, 0.0
    %1778 = vadd.xlane.f32.xlu0 %v1777
    %v1779 = vpop.xlane.xlu0 %1778
    %v1780 = vsel %vm34, %v1758, 0.0
    %1781 = vadd.xlane.f32.xlu0 %v1780
    %v1782 = vpop.xlane.xlu0 %1781
    %v1791 = vlaneseq
    %v1792 = vshrl.u32 %v1791, 7
    %v1793 = vsub.s32 %v177, %v1792
    %v1794 = vrot.slane %v1761, %v1793
    %v1795 = vlaneseq
    %v1796 = vshrl.u32 %v1795, 7
    %v1797 = vsub.s32 %v177, %v1796
    %v1798 = vrot.slane %v1764, %v1797
    %v1799 = vlaneseq
    %v1800 = vshrl.u32 %v1799, 7
    %v1801 = vsub.s32 %v177, %v1800
    %v1802 = vrot.slane %v1767, %v1801
    %v1803 = vlaneseq
    %v1804 = vshrl.u32 %v1803, 7
    %v1805 = vsub.s32 %v177, %v1804
    %v1806 = vrot.slane %v1770, %v1805
    %v1807 = vlaneseq
    %v1808 = vshrl.u32 %v1807, 7
    %v1809 = vsub.s32 %v177, %v1808
    %v1810 = vrot.slane %v1773, %v1809
    %v1811 = vlaneseq
    %v1812 = vshrl.u32 %v1811, 7
    %v1813 = vsub.s32 %v177, %v1812
    %v1814 = vrot.slane %v1776, %v1813
    %v1815 = vlaneseq
    %v1816 = vshrl.u32 %v1815, 7
    %v1817 = vsub.s32 %v177, %v1816
    %v1818 = vrot.slane %v1779, %v1817
    %v1819 = vlaneseq
    %v1820 = vshrl.u32 %v1819, 7
    %v1821 = vsub.s32 %v177, %v1820
    %v1822 = vrot.slane %v1782, %v1821
    %v1823 = vsel %vm210, %v1798, %v1794
    %v1824 = vsel %vm212, %v1802, %v1823
    %v1825 = vsel %vm214, %v1806, %v1824
    %v1826 = vsel %vm216, %v1810, %v1825
    %v1827 = vsel %vm218, %v1814, %v1826
    %v1828 = vsel %vm220, %v1818, %v1827
    %v1829 = vsel %vm222, %v1822, %v1828
    %v1831 = vmul.f32 %v29, %v1829
    %v1832 = vsel %vm34, %v1831, 0.0
    %1833 = vadd.xlane.f32.xlu0 %v1832
    %v1834 = vpop.xlane.xlu0 %1833
    %v1835 = vmul.f32 %v1834, %v32
    %1837 = vrot.lane.b32.xlu0 %v1835, 12
    %v1838 = vpop.permute.xlu0 %1837
    %v1840 = vadd.f32 %v1694, %v1838
    %v1841 = vsel %vm212, %v1794, %v1794
    %v1842 = vsel %vm214, %v1794, %v1841
    %v1843 = vsel %vm216, %v1794, %v1842
    %v1844 = vsel %vm218, %v1794, %v1843
    %v1845 = vsel %vm220, %v1794, %v1844
    %v1846 = vsel %vm222, %v1794, %v1845
    %v1847 = vsel %vm212, %v1798, %v1798
    %v1848 = vsel %vm214, %v1798, %v1847
    %v1849 = vsel %vm216, %v1798, %v1848
    %v1850 = vsel %vm218, %v1798, %v1849
    %v1851 = vsel %vm220, %v1798, %v1850
    %v1852 = vsel %vm222, %v1798, %v1851
    %v1853 = vsel %vm212, %v1802, %v1802
    %v1854 = vsel %vm214, %v1802, %v1853
    %v1855 = vsel %vm216, %v1802, %v1854
    %v1856 = vsel %vm218, %v1802, %v1855
    %v1857 = vsel %vm220, %v1802, %v1856
    %v1858 = vsel %vm222, %v1802, %v1857
    %v1859 = vsel %vm212, %v1806, %v1806
    %v1860 = vsel %vm214, %v1806, %v1859
    %v1861 = vsel %vm216, %v1806, %v1860
    %v1862 = vsel %vm218, %v1806, %v1861
    %v1863 = vsel %vm220, %v1806, %v1862
    %v1864 = vsel %vm222, %v1806, %v1863
    %v1865 = vsel %vm212, %v1810, %v1810
    %v1866 = vsel %vm214, %v1810, %v1865
    %v1867 = vsel %vm216, %v1810, %v1866
    %v1868 = vsel %vm218, %v1810, %v1867
    %v1869 = vsel %vm220, %v1810, %v1868
    %v1870 = vsel %vm222, %v1810, %v1869
    %v1871 = vsel %vm212, %v1814, %v1814
    %v1872 = vsel %vm214, %v1814, %v1871
    %v1873 = vsel %vm216, %v1814, %v1872
    %v1874 = vsel %vm218, %v1814, %v1873
    %v1875 = vsel %vm220, %v1814, %v1874
    %v1876 = vsel %vm222, %v1814, %v1875
    %v1877 = vsel %vm212, %v1818, %v1818
    %v1878 = vsel %vm214, %v1818, %v1877
    %v1879 = vsel %vm216, %v1818, %v1878
    %v1880 = vsel %vm218, %v1818, %v1879
    %v1881 = vsel %vm220, %v1818, %v1880
    %v1882 = vsel %vm222, %v1818, %v1881
    %v1883 = vsel %vm212, %v1822, %v1822
    %v1884 = vsel %vm214, %v1822, %v1883
    %v1885 = vsel %vm216, %v1822, %v1884
    %v1886 = vsel %vm218, %v1822, %v1885
    %v1887 = vsel %vm220, %v1822, %v1886
    %v1888 = vsel %vm222, %v1822, %v1887
    %v1897 = vmul.f32 %v21, %v1846
    %v1898 = vmul.f32 %v22, %v1852
    %v1899 = vmul.f32 %v23, %v1858
    %v1900 = vmul.f32 %v24, %v1864
    %v1901 = vmul.f32 %v25, %v1870
    %v1902 = vmul.f32 %v26, %v1876
    %v1903 = vmul.f32 %v27, %v1882
    %v1904 = vmul.f32 %v28, %v1888
    %v1905 = vsel %vm34, %v1897, 0.0
    %1906 = vadd.xlane.f32.xlu0 %v1905
    %v1907 = vpop.xlane.xlu0 %1906
    %v1908 = vsel %vm34, %v1898, 0.0
    %1909 = vadd.xlane.f32.xlu0 %v1908
    %v1910 = vpop.xlane.xlu0 %1909
    %v1911 = vsel %vm34, %v1899, 0.0
    %1912 = vadd.xlane.f32.xlu0 %v1911
    %v1913 = vpop.xlane.xlu0 %1912
    %v1914 = vsel %vm34, %v1900, 0.0
    %1915 = vadd.xlane.f32.xlu0 %v1914
    %v1916 = vpop.xlane.xlu0 %1915
    %v1917 = vsel %vm34, %v1901, 0.0
    %1918 = vadd.xlane.f32.xlu0 %v1917
    %v1919 = vpop.xlane.xlu0 %1918
    %v1920 = vsel %vm34, %v1902, 0.0
    %1921 = vadd.xlane.f32.xlu0 %v1920
    %v1922 = vpop.xlane.xlu0 %1921
    %v1923 = vsel %vm34, %v1903, 0.0
    %1924 = vadd.xlane.f32.xlu0 %v1923
    %v1925 = vpop.xlane.xlu0 %1924
    %v1926 = vsel %vm34, %v1904, 0.0
    %1927 = vadd.xlane.f32.xlu0 %v1926
    %v1928 = vpop.xlane.xlu0 %1927
    %v1937 = vlaneseq
    %v1938 = vshrl.u32 %v1937, 7
    %v1939 = vsub.s32 %v177, %v1938
    %v1940 = vrot.slane %v1907, %v1939
    %v1941 = vlaneseq
    %v1942 = vshrl.u32 %v1941, 7
    %v1943 = vsub.s32 %v177, %v1942
    %v1944 = vrot.slane %v1910, %v1943
    %v1945 = vlaneseq
    %v1946 = vshrl.u32 %v1945, 7
    %v1947 = vsub.s32 %v177, %v1946
    %v1948 = vrot.slane %v1913, %v1947
    %v1949 = vlaneseq
    %v1950 = vshrl.u32 %v1949, 7
    %v1951 = vsub.s32 %v177, %v1950
    %v1952 = vrot.slane %v1916, %v1951
    %v1953 = vlaneseq
    %v1954 = vshrl.u32 %v1953, 7
    %v1955 = vsub.s32 %v177, %v1954
    %v1956 = vrot.slane %v1919, %v1955
    %v1957 = vlaneseq
    %v1958 = vshrl.u32 %v1957, 7
    %v1959 = vsub.s32 %v177, %v1958
    %v1960 = vrot.slane %v1922, %v1959
    %v1961 = vlaneseq
    %v1962 = vshrl.u32 %v1961, 7
    %v1963 = vsub.s32 %v177, %v1962
    %v1964 = vrot.slane %v1925, %v1963
    %v1965 = vlaneseq
    %v1966 = vshrl.u32 %v1965, 7
    %v1967 = vsub.s32 %v177, %v1966
    %v1968 = vrot.slane %v1928, %v1967
    %v1969 = vsel %vm210, %v1944, %v1940
    %v1970 = vsel %vm212, %v1948, %v1969
    %v1971 = vsel %vm214, %v1952, %v1970
    %v1972 = vsel %vm216, %v1956, %v1971
    %v1973 = vsel %vm218, %v1960, %v1972
    %v1974 = vsel %vm220, %v1964, %v1973
    %v1975 = vsel %vm222, %v1968, %v1974
    %v1977 = vmul.f32 %v29, %v1975
    %v1978 = vsel %vm34, %v1977, 0.0
    %1979 = vadd.xlane.f32.xlu0 %v1978
    %v1980 = vpop.xlane.xlu0 %1979
    %v1981 = vmul.f32 %v1980, %v32
    %1983 = vrot.lane.b32.xlu0 %v1981, 13
    %v1984 = vpop.permute.xlu0 %1983
    %v1986 = vadd.f32 %v1840, %v1984
    %v1987 = vsel %vm212, %v1940, %v1940
    %v1988 = vsel %vm214, %v1940, %v1987
    %v1989 = vsel %vm216, %v1940, %v1988
    %v1990 = vsel %vm218, %v1940, %v1989
    %v1991 = vsel %vm220, %v1940, %v1990
    %v1992 = vsel %vm222, %v1940, %v1991
    %v1993 = vsel %vm212, %v1944, %v1944
    %v1994 = vsel %vm214, %v1944, %v1993
    %v1995 = vsel %vm216, %v1944, %v1994
    %v1996 = vsel %vm218, %v1944, %v1995
    %v1997 = vsel %vm220, %v1944, %v1996
    %v1998 = vsel %vm222, %v1944, %v1997
    %v1999 = vsel %vm212, %v1948, %v1948
    %v2000 = vsel %vm214, %v1948, %v1999
    %v2001 = vsel %vm216, %v1948, %v2000
    %v2002 = vsel %vm218, %v1948, %v2001
    %v2003 = vsel %vm220, %v1948, %v2002
    %v2004 = vsel %vm222, %v1948, %v2003
    %v2005 = vsel %vm212, %v1952, %v1952
    %v2006 = vsel %vm214, %v1952, %v2005
    %v2007 = vsel %vm216, %v1952, %v2006
    %v2008 = vsel %vm218, %v1952, %v2007
    %v2009 = vsel %vm220, %v1952, %v2008
    %v2010 = vsel %vm222, %v1952, %v2009
    %v2011 = vsel %vm212, %v1956, %v1956
    %v2012 = vsel %vm214, %v1956, %v2011
    %v2013 = vsel %vm216, %v1956, %v2012
    %v2014 = vsel %vm218, %v1956, %v2013
    %v2015 = vsel %vm220, %v1956, %v2014
    %v2016 = vsel %vm222, %v1956, %v2015
    %v2017 = vsel %vm212, %v1960, %v1960
    %v2018 = vsel %vm214, %v1960, %v2017
    %v2019 = vsel %vm216, %v1960, %v2018
    %v2020 = vsel %vm218, %v1960, %v2019
    %v2021 = vsel %vm220, %v1960, %v2020
    %v2022 = vsel %vm222, %v1960, %v2021
    %v2023 = vsel %vm212, %v1964, %v1964
    %v2024 = vsel %vm214, %v1964, %v2023
    %v2025 = vsel %vm216, %v1964, %v2024
    %v2026 = vsel %vm218, %v1964, %v2025
    %v2027 = vsel %vm220, %v1964, %v2026
    %v2028 = vsel %vm222, %v1964, %v2027
    %v2029 = vsel %vm212, %v1968, %v1968
    %v2030 = vsel %vm214, %v1968, %v2029
    %v2031 = vsel %vm216, %v1968, %v2030
    %v2032 = vsel %vm218, %v1968, %v2031
    %v2033 = vsel %vm220, %v1968, %v2032
    %v2034 = vsel %vm222, %v1968, %v2033
    %v2043 = vmul.f32 %v21, %v1992
    %v2044 = vmul.f32 %v22, %v1998
    %v2045 = vmul.f32 %v23, %v2004
    %v2046 = vmul.f32 %v24, %v2010
    %v2047 = vmul.f32 %v25, %v2016
    %v2048 = vmul.f32 %v26, %v2022
    %v2049 = vmul.f32 %v27, %v2028
    %v2050 = vmul.f32 %v28, %v2034
    %v2051 = vsel %vm34, %v2043, 0.0
    %2052 = vadd.xlane.f32.xlu0 %v2051
    %v2053 = vpop.xlane.xlu0 %2052
    %v2054 = vsel %vm34, %v2044, 0.0
    %2055 = vadd.xlane.f32.xlu0 %v2054
    %v2056 = vpop.xlane.xlu0 %2055
    %v2057 = vsel %vm34, %v2045, 0.0
    %2058 = vadd.xlane.f32.xlu0 %v2057
    %v2059 = vpop.xlane.xlu0 %2058
    %v2060 = vsel %vm34, %v2046, 0.0
    %2061 = vadd.xlane.f32.xlu0 %v2060
    %v2062 = vpop.xlane.xlu0 %2061
    %v2063 = vsel %vm34, %v2047, 0.0
    %2064 = vadd.xlane.f32.xlu0 %v2063
    %v2065 = vpop.xlane.xlu0 %2064
    %v2066 = vsel %vm34, %v2048, 0.0
    %2067 = vadd.xlane.f32.xlu0 %v2066
    %v2068 = vpop.xlane.xlu0 %2067
    %v2069 = vsel %vm34, %v2049, 0.0
    %2070 = vadd.xlane.f32.xlu0 %v2069
    %v2071 = vpop.xlane.xlu0 %2070
    %v2072 = vsel %vm34, %v2050, 0.0
    %2073 = vadd.xlane.f32.xlu0 %v2072
    %v2074 = vpop.xlane.xlu0 %2073
    %v2083 = vlaneseq
    %v2084 = vshrl.u32 %v2083, 7
    %v2085 = vsub.s32 %v177, %v2084
    %v2086 = vrot.slane %v2053, %v2085
    %v2087 = vlaneseq
    %v2088 = vshrl.u32 %v2087, 7
    %v2089 = vsub.s32 %v177, %v2088
    %v2090 = vrot.slane %v2056, %v2089
    %v2091 = vlaneseq
    %v2092 = vshrl.u32 %v2091, 7
    %v2093 = vsub.s32 %v177, %v2092
    %v2094 = vrot.slane %v2059, %v2093
    %v2095 = vlaneseq
    %v2096 = vshrl.u32 %v2095, 7
    %v2097 = vsub.s32 %v177, %v2096
    %v2098 = vrot.slane %v2062, %v2097
    %v2099 = vlaneseq
    %v2100 = vshrl.u32 %v2099, 7
    %v2101 = vsub.s32 %v177, %v2100
    %v2102 = vrot.slane %v2065, %v2101
    %v2103 = vlaneseq
    %v2104 = vshrl.u32 %v2103, 7
    %v2105 = vsub.s32 %v177, %v2104
    %v2106 = vrot.slane %v2068, %v2105
    %v2107 = vlaneseq
    %v2108 = vshrl.u32 %v2107, 7
    %v2109 = vsub.s32 %v177, %v2108
    %v2110 = vrot.slane %v2071, %v2109
    %v2111 = vlaneseq
    %v2112 = vshrl.u32 %v2111, 7
    %v2113 = vsub.s32 %v177, %v2112
    %v2114 = vrot.slane %v2074, %v2113
    %v2115 = vsel %vm210, %v2090, %v2086
    %v2116 = vsel %vm212, %v2094, %v2115
    %v2117 = vsel %vm214, %v2098, %v2116
    %v2118 = vsel %vm216, %v2102, %v2117
    %v2119 = vsel %vm218, %v2106, %v2118
    %v2120 = vsel %vm220, %v2110, %v2119
    %v2121 = vsel %vm222, %v2114, %v2120
    %v2123 = vmul.f32 %v29, %v2121
    %v2124 = vsel %vm34, %v2123, 0.0
    %2125 = vadd.xlane.f32.xlu0 %v2124
    %v2126 = vpop.xlane.xlu0 %2125
    %v2127 = vmul.f32 %v2126, %v32
    %2129 = vrot.lane.b32.xlu0 %v2127, 14
    %v2130 = vpop.permute.xlu0 %2129
    %v2132 = vadd.f32 %v1986, %v2130
    %v2133 = vsel %vm212, %v2086, %v2086
    %v2134 = vsel %vm214, %v2086, %v2133
    %v2135 = vsel %vm216, %v2086, %v2134
    %v2136 = vsel %vm218, %v2086, %v2135
    %v2137 = vsel %vm220, %v2086, %v2136
    %v2138 = vsel %vm222, %v2086, %v2137
    %v2139 = vsel %vm212, %v2090, %v2090
    %v2140 = vsel %vm214, %v2090, %v2139
    %v2141 = vsel %vm216, %v2090, %v2140
    %v2142 = vsel %vm218, %v2090, %v2141
    %v2143 = vsel %vm220, %v2090, %v2142
    %v2144 = vsel %vm222, %v2090, %v2143
    %v2145 = vsel %vm212, %v2094, %v2094
    %v2146 = vsel %vm214, %v2094, %v2145
    %v2147 = vsel %vm216, %v2094, %v2146
    %v2148 = vsel %vm218, %v2094, %v2147
    %v2149 = vsel %vm220, %v2094, %v2148
    %v2150 = vsel %vm222, %v2094, %v2149
    %v2151 = vsel %vm212, %v2098, %v2098
    %v2152 = vsel %vm214, %v2098, %v2151
    %v2153 = vsel %vm216, %v2098, %v2152
    %v2154 = vsel %vm218, %v2098, %v2153
    %v2155 = vsel %vm220, %v2098, %v2154
    %v2156 = vsel %vm222, %v2098, %v2155
    %v2157 = vsel %vm212, %v2102, %v2102
    %v2158 = vsel %vm214, %v2102, %v2157
    %v2159 = vsel %vm216, %v2102, %v2158
    %v2160 = vsel %vm218, %v2102, %v2159
    %v2161 = vsel %vm220, %v2102, %v2160
    %v2162 = vsel %vm222, %v2102, %v2161
    %v2163 = vsel %vm212, %v2106, %v2106
    %v2164 = vsel %vm214, %v2106, %v2163
    %v2165 = vsel %vm216, %v2106, %v2164
    %v2166 = vsel %vm218, %v2106, %v2165
    %v2167 = vsel %vm220, %v2106, %v2166
    %v2168 = vsel %vm222, %v2106, %v2167
    %v2169 = vsel %vm212, %v2110, %v2110
    %v2170 = vsel %vm214, %v2110, %v2169
    %v2171 = vsel %vm216, %v2110, %v2170
    %v2172 = vsel %vm218, %v2110, %v2171
    %v2173 = vsel %vm220, %v2110, %v2172
    %v2174 = vsel %vm222, %v2110, %v2173
    %v2175 = vsel %vm212, %v2114, %v2114
    %v2176 = vsel %vm214, %v2114, %v2175
    %v2177 = vsel %vm216, %v2114, %v2176
    %v2178 = vsel %vm218, %v2114, %v2177
    %v2179 = vsel %vm220, %v2114, %v2178
    %v2180 = vsel %vm222, %v2114, %v2179
    %v2189 = vmul.f32 %v21, %v2138
    %v2190 = vmul.f32 %v22, %v2144
    %v2191 = vmul.f32 %v23, %v2150
    %v2192 = vmul.f32 %v24, %v2156
    %v2193 = vmul.f32 %v25, %v2162
    %v2194 = vmul.f32 %v26, %v2168
    %v2195 = vmul.f32 %v27, %v2174
    %v2196 = vmul.f32 %v28, %v2180
    %v2197 = vsel %vm34, %v2189, 0.0
    %2198 = vadd.xlane.f32.xlu0 %v2197
    %v2199 = vpop.xlane.xlu0 %2198
    %v2200 = vsel %vm34, %v2190, 0.0
    %2201 = vadd.xlane.f32.xlu0 %v2200
    %v2202 = vpop.xlane.xlu0 %2201
    %v2203 = vsel %vm34, %v2191, 0.0
    %2204 = vadd.xlane.f32.xlu0 %v2203
    %v2205 = vpop.xlane.xlu0 %2204
    %v2206 = vsel %vm34, %v2192, 0.0
    %2207 = vadd.xlane.f32.xlu0 %v2206
    %v2208 = vpop.xlane.xlu0 %2207
    %v2209 = vsel %vm34, %v2193, 0.0
    %2210 = vadd.xlane.f32.xlu0 %v2209
    %v2211 = vpop.xlane.xlu0 %2210
    %v2212 = vsel %vm34, %v2194, 0.0
    %2213 = vadd.xlane.f32.xlu0 %v2212
    %v2214 = vpop.xlane.xlu0 %2213
    %v2215 = vsel %vm34, %v2195, 0.0
    %2216 = vadd.xlane.f32.xlu0 %v2215
    %v2217 = vpop.xlane.xlu0 %2216
    %v2218 = vsel %vm34, %v2196, 0.0
    %2219 = vadd.xlane.f32.xlu0 %v2218
    %v2220 = vpop.xlane.xlu0 %2219
    %v2229 = vlaneseq
    %v2230 = vshrl.u32 %v2229, 7
    %v2231 = vsub.s32 %v177, %v2230
    %v2232 = vrot.slane %v2199, %v2231
    %v2233 = vlaneseq
    %v2234 = vshrl.u32 %v2233, 7
    %v2235 = vsub.s32 %v177, %v2234
    %v2236 = vrot.slane %v2202, %v2235
    %v2237 = vlaneseq
    %v2238 = vshrl.u32 %v2237, 7
    %v2239 = vsub.s32 %v177, %v2238
    %v2240 = vrot.slane %v2205, %v2239
    %v2241 = vlaneseq
    %v2242 = vshrl.u32 %v2241, 7
    %v2243 = vsub.s32 %v177, %v2242
    %v2244 = vrot.slane %v2208, %v2243
    %v2245 = vlaneseq
    %v2246 = vshrl.u32 %v2245, 7
    %v2247 = vsub.s32 %v177, %v2246
    %v2248 = vrot.slane %v2211, %v2247
    %v2249 = vlaneseq
    %v2250 = vshrl.u32 %v2249, 7
    %v2251 = vsub.s32 %v177, %v2250
    %v2252 = vrot.slane %v2214, %v2251
    %v2253 = vlaneseq
    %v2254 = vshrl.u32 %v2253, 7
    %v2255 = vsub.s32 %v177, %v2254
    %v2256 = vrot.slane %v2217, %v2255
    %v2257 = vlaneseq
    %v2258 = vshrl.u32 %v2257, 7
    %v2259 = vsub.s32 %v177, %v2258
    %v2260 = vrot.slane %v2220, %v2259
    %v2261 = vsel %vm210, %v2236, %v2232
    %v2262 = vsel %vm212, %v2240, %v2261
    %v2263 = vsel %vm214, %v2244, %v2262
    %v2264 = vsel %vm216, %v2248, %v2263
    %v2265 = vsel %vm218, %v2252, %v2264
    %v2266 = vsel %vm220, %v2256, %v2265
    %v2267 = vsel %vm222, %v2260, %v2266
    %v2269 = vmul.f32 %v29, %v2267
    %v2270 = vsel %vm34, %v2269, 0.0
    %2271 = vadd.xlane.f32.xlu0 %v2270
    %v2272 = vpop.xlane.xlu0 %2271
    %v2273 = vmul.f32 %v2272, %v32
    %2275 = vrot.lane.b32.xlu0 %v2273, 15
    %v2276 = vpop.permute.xlu0 %2275
    %v2278 = vadd.f32 %v2132, %v2276
    %2280 = vrot.lane.b32.xlu0 %v2278, 113
    %v2281 = vpop.permute.xlu0 %2280
    %vm2283 = vcmask 130048
    %2284 = vst.msk [vmem:[#allocation2] sm:$0xff] %vm2283, %v2281
    // Predicated region
    $region22: #{s4d_forward.1} parent=1 // pred_check
      _
    $region23: #{s4d_forward.1} parent=1 // pred_check_branch
      %2286 = sbr.rel (0) target = $region25
    $region24: #{s4d_forward.1} parent=1 // pred_region
      %s2288 = ssub.s32 128, 128
      %2289 = vsyncadd [#allocation3], %s2288
      %s2291 = sshll.u32 [#allocation2], 4
      %s2292 = int_to_ptr.vmem [resolvable:$true] %s2291
      %2294 = dma.vmem_to_hbm [thread:$0]  %s2292, 128, %s5, [#allocation3]
    $region25: #{s4d_forward.1} parent=1 // pred_fallthru
      _
    // Predicated region
    $region26: #{s4d_forward.1} parent=1 // pred_check
      _
    $region27: #{s4d_forward.1} parent=1 // pred_check_branch
      %2296 = sbr.rel (0) target = $region29
    $region28: #{s4d_forward.1} parent=1 // pred_region
      %2297 = dma.done [#allocation3], 128
    $region29: #{s4d_forward.1} parent=1 // pred_fallthru
      _
    %2298 = vsyncpa [#allocation3], 1

</llo_original>
